<compile_context>
chip_gen: v7x
topology: tpu7x:2x2x1
jax: 0.10.0
libtpu: 0.0.40
codegen_flags: <defaults>
</compile_context>

<pallas_src>
import functools

import jax
import jax.numpy as jnp
from jax import lax
from jax.experimental import pallas as pl
from jax.experimental.pallas import tpu as pltpu

_EPS = 1e-12  # matches torch.nn.functional.normalize default eps


def _round_up(x, m):
    return ((x + m - 1) // m) * m


def _vmem_capacity_bytes():
    """Per-TensorCore VMEM capacity; conservative fallback if the query fails."""
    try:
        return int(pltpu.get_tpu_info().vmem_capacity_bytes)
    except Exception:
        return 64 * 1024 * 1024  # smallest per-TC VMEM across v5e/v6e/v7x


def _softmax_xent_and_store(pos, neg, out_ref, batch, block_rows):
    """Concat-free CE with label 0, padded-row masking, per-block partial sum."""
    m = jnp.maximum(jnp.max(neg, axis=-1, keepdims=True), pos)            # (TB,1)
    sum_exp = jnp.exp(pos - m) + jnp.sum(jnp.exp(neg - m), axis=-1, keepdims=True)
    loss = m + jnp.log(sum_exp) - pos                                      # (TB,1)

    # Mask padded rows of the final partial batch block (jnp.where, not a
    # multiply: garbage rows may hold NaN/Inf and 0*NaN would leak).
    row0 = pl.program_id(0) * block_rows
    rows = row0 + lax.broadcasted_iota(jnp.int32, (block_rows, 1), 0)
    loss = jnp.where(rows < batch, loss, 0.0)

    out_ref[...] = jnp.full(out_ref.shape, jnp.sum(loss), dtype=jnp.float32)


def _info_nce_lane_dense_kernel(seg_ref, qp_ref, kp_ref, qn_ref, kn_ref, out_ref,
                                *, batch, block_rows, temperature):
    """Lane-dense path (D < 128): negatives arrive as (TB, N*D); the per-pair
    reductions over D are a single MXU matmul against a 0/1 segment matrix."""
    f32 = jnp.float32
    inv_t = f32(1.0 / temperature)
    eps2 = f32(_EPS * _EPS)

    # ---- positive logits (tiny): fused-normalized dot of (TB, D) rows ----
    qp = qp_ref[...].astype(f32)
    kp = kp_ref[...].astype(f32)
    pos_dot = jnp.sum(qp * kp, axis=-1, keepdims=True)
    qp_ss = jnp.sum(qp * qp, axis=-1, keepdims=True)
    kp_ss = jnp.sum(kp * kp, axis=-1, keepdims=True)
    pos = (pos_dot * lax.rsqrt(jnp.maximum(qp_ss, eps2))
                   * lax.rsqrt(jnp.maximum(kp_ss, eps2))) * inv_t         # (TB,1)

    # ---- negative logits: lane-dense products + MXU segmented reduce ----
    seg = seg_ref[...]                    # (N*D, N), 0/1 in the compute dtype
    exact_f32 = seg.dtype == jnp.float32
    qn = qn_ref[...]                      # (TB, N*D), HBM dtype
    kn = kn_ref[...]

    def seg_sum(a, b):
        p = (a * b).astype(seg.dtype)     # bf16 products if inputs are bf16
        if exact_f32:                     # f32: force exact multi-pass MXU
            return jnp.dot(p, seg, preferred_element_type=f32,
                           precision=lax.Precision.HIGHEST)
        return jnp.dot(p, seg, preferred_element_type=f32)   # f32 accumulation

    neg_dot = seg_sum(qn, kn)             # (TB, N)
    qn_ss = seg_sum(qn, qn)
    kn_ss = seg_sum(kn, kn)
    neg = (neg_dot * lax.rsqrt(jnp.maximum(qn_ss, eps2))
                   * lax.rsqrt(jnp.maximum(kn_ss, eps2))) * inv_t         # (TB,N)

    _softmax_xent_and_store(pos, neg, out_ref, batch, block_rows)


def _info_nce_3d_kernel(qp_ref, kp_ref, qn_ref, kn_ref, out_ref,
                        *, batch, block_rows, temperature):
    """Lane-aligned path (D % 128 == 0 or huge segment matrix): plain lane
    reductions over the last axis, f32 accumulation."""
    f32 = jnp.float32
    inv_t = f32(1.0 / temperature)
    eps2 = f32(_EPS * _EPS)

    def cos(q, k):
        dot = jnp.sum((q * k).astype(f32), axis=-1)
        q_ss = jnp.sum((q * q).astype(f32), axis=-1)
        k_ss = jnp.sum((k * k).astype(f32), axis=-1)
        return (dot * lax.rsqrt(jnp.maximum(q_ss, eps2))
                    * lax.rsqrt(jnp.maximum(k_ss, eps2)))

    pos = cos(qp_ref[...].astype(f32), kp_ref[...].astype(f32))[:, None] * inv_t
    neg = cos(qn_ref[...], kn_ref[...]) * inv_t                           # (TB,N)
    _softmax_xent_and_store(pos, neg, out_ref, batch, block_rows)


def custom_info_nce(query_pos, key_pos, query_neg, key_neg, temperature=0.1,
                    *, block_rows=None, vmem_limit_bytes=None,
                    tile_vmem_budget_bytes=None):
    """InfoNCE loss (reduction='mean'), matching utils/CustomInfoNCE.py."""
    assert query_pos.ndim == 2 and key_pos.ndim == 2
    assert query_neg.ndim == 3 and key_neg.ndim == 3
    B, D = query_pos.shape
    Bn, N, Dn = query_neg.shape
    assert key_pos.shape == (B, D)
    assert (Bn, Dn) == (B, D) and key_neg.shape == (B, N, D)

    in_itemsize = max(jnp.dtype(query_neg.dtype).itemsize,
                      jnp.dtype(query_pos.dtype).itemsize)
    # Products in bf16 (with f32 MXU accumulation) when inputs are bf16.
    compute_dtype = (jnp.bfloat16 if jnp.dtype(query_neg.dtype) == jnp.bfloat16
                     else jnp.float32)

    # --- per-generation VMEM budgets (v7x: 64 MiB/TC, v5e/v6e: 128 MiB) ------
    vmem_cap = _vmem_capacity_bytes()
    if vmem_limit_bytes is None:
        vmem_limit_bytes = max(32 << 20, min(int(0.75 * vmem_cap), 96 << 20))
    if tile_vmem_budget_bytes is None:
        tile_vmem_budget_bytes = int(0.55 * vmem_limit_bytes)

    # --- layout choice --------------------------------------------------------
    ND = N * D
    D_pad = _round_up(D, 128)
    seg_itemsize = jnp.dtype(compute_dtype).itemsize
    seg_bytes = _round_up(ND, 8) * _round_up(N, 128) * seg_itemsize
    lane_dense = (D % 128 != 0) and (seg_bytes <= (4 << 20))

    if lane_dense:
        neg_row_lanes = _round_up(ND, 128)   # VMEM lanes per row of qn or kn tile
        fixed_bytes = 2 * seg_bytes          # resident segment matrix (x2 safety)
    else:
        neg_row_lanes = N * D_pad            # D padded to 128 lanes per negative
        fixed_bytes = 0
    pos_row_lanes = D_pad

    # Double-buffered HBM-dtype DMA tiles (qn, kn, qp, kp) ...
    dma_per_row = 2 * (2 * neg_row_lanes + 2 * pos_row_lanes) * in_itemsize
    # ... plus in-kernel f32 product/cast temporaries on the negatives
    # (worst case ~3 live (TB, row)-sized f32 arrays between multiply & reduce).
    temp_per_row = 3 * neg_row_lanes * 4
    bytes_per_row = dma_per_row + temp_per_row

    # --- batch-tile selection --------------------------------------------------
    if block_rows is None:
        avail = max(tile_vmem_budget_bytes - fixed_bytes, 8 * bytes_per_row)
        tb = int(min(max(avail // bytes_per_row, 8), 1024))
        tb = max(8, (tb // 8) * 8)
        # Guarantee >= 2 grid blocks when B is large enough so both v7x
        # TensorCores get work (no effect on single-TC v5e/v6e beyond a cheap
        # extra grid step).
        if B >= 16:
            tb = min(tb, max(8, (pl.cdiv(B, 2) // 8) * 8))
    else:
        tb = int(block_rows)
    if tb >= B:
        tb = B                              # block == full dim: always legal
    else:
        assert tb % 8 == 0, "block_rows must be a multiple of 8 (or >= B)"
    num_blocks = pl.cdiv(B, tb)

    # Optional deeper input pipelining when tiles are small (hides DMA issue
    # latency); only if the extra buffer still fits the budget.
    extra_buf_bytes = 2 * tb * neg_row_lanes * in_itemsize
    deep_buffer = (num_blocks >= 4 and tb <= 64 and
                   fixed_bytes + tb * bytes_per_row + extra_buf_bytes
                   <= tile_vmem_budget_bytes)

    def _neg_spec(shape, index_map):
        if deep_buffer:
            return pl.BlockSpec(shape, index_map, pipeline_mode=pl.Buffered(3))
        return pl.BlockSpec(shape, index_map)

    # --- advisory cost estimate (helps XLA overlap the memory-bound call) -----
    bytes_accessed = (2 * B * ND + 2 * B * D) * in_itemsize + num_blocks * 8 * 128 * 4
    if lane_dense:
        flops = 3 * B * ND + 6 * B * ND * N + 6 * B * D + 16 * B * N
    else:
        flops = 9 * B * ND + 9 * B * D + 16 * B * N
    transcendentals = B * (N + 7)
    try:
        cost_estimate = pl.CostEstimate(flops=int(flops),
                                        transcendentals=int(transcendentals),
                                        bytes_accessed=int(bytes_accessed))
    except Exception:   # very old jax without CostEstimate: hint is optional
        cost_estimate = None

    # --- build the call ---------------------------------------------------------
    if lane_dense:
        qn_flat = query_neg.reshape(B, ND)   # contiguous reshape: free in HBM
        kn_flat = key_neg.reshape(B, ND)
        seg = (jnp.arange(ND, dtype=jnp.int32)[:, None] // D ==
               jnp.arange(N, dtype=jnp.int32)[None, :]).astype(compute_dtype)
        kernel = functools.partial(_info_nce_lane_dense_kernel, batch=B,
                                   block_rows=tb, temperature=float(temperature))
        in_specs = [
            pl.BlockSpec((ND, N), lambda i: (0, 0)),       # resident across grid
            pl.BlockSpec((tb, D), lambda i: (i, 0)),
            pl.BlockSpec((tb, D), lambda i: (i, 0)),
            _neg_spec((tb, ND), lambda i: (i, 0)),
            _neg_spec((tb, ND), lambda i: (i, 0)),
        ]
        args = (seg, query_pos, key_pos, qn_flat, kn_flat)
    else:
        kernel = functools.partial(_info_nce_3d_kernel, batch=B,
                                   block_rows=tb, temperature=float(temperature))
        in_specs = [
            pl.BlockSpec((tb, D), lambda i: (i, 0)),
            pl.BlockSpec((tb, D), lambda i: (i, 0)),
            _neg_spec((tb, N, D), lambda i: (i, 0, 0)),
            _neg_spec((tb, N, D), lambda i: (i, 0, 0)),
        ]
        args = (query_pos, key_pos, query_neg, key_neg)

    partials = pl.pallas_call(
        kernel,
        out_shape=jax.ShapeDtypeStruct((num_blocks, 8, 128), jnp.float32),
        grid_spec=pltpu.PrefetchScalarGridSpec(
            num_scalar_prefetch=0,
            grid=(num_blocks,),
            in_specs=in_specs,
            out_specs=pl.BlockSpec((1, 8, 128), lambda i: (i, 0, 0)),
        ),
        compiler_params=pltpu.CompilerParams(
            dimension_semantics=("parallel",),
            vmem_limit_bytes=int(vmem_limit_bytes),
        ),
        cost_estimate=cost_estimate,
    )(*args)

    # Tiny finalize outside the kernel: sum per-block partials, divide by B.
    return jnp.sum(partials[:, 0, 0]) / B


# --- pure-JAX reference (mirrors the PyTorch module) ---------------------------
def _l2_normalize(x, eps=_EPS):
    norm = jnp.sqrt(jnp.sum(x * x, axis=-1, keepdims=True))
    return x / jnp.maximum(norm, eps)


def _reference(query_pos, key_pos, query_neg, key_neg, temperature=0.1):
    qp = _l2_normalize(query_pos.astype(jnp.float32))
    kp = _l2_normalize(key_pos.astype(jnp.float32))
    qn = _l2_normalize(query_neg.astype(jnp.float32))
    kn = _l2_normalize(key_neg.astype(jnp.float32))
    pos = jnp.sum(qp * kp, axis=-1, keepdims=True)
    neg = jnp.sum(qn * kn, axis=-1)
    logits = jnp.concatenate([pos, neg], axis=1) / temperature
    log_probs = jax.nn.log_softmax(logits, axis=-1)
    return -jnp.mean(log_probs[:, 0])


if __name__ == "__main__":
    def _check(qp, kp, qn, kn, **kw):
        loss = custom_info_nce(qp, kp, qn, kn, temperature=0.1, **kw)
        loss = jax.block_until_ready(loss)
        ref = _reference(qp, kp, qn, kn, temperature=0.1)
        assert jnp.allclose(loss, ref, rtol=1e-5, atol=1e-5), (loss, ref)

    # Config 1: module-sized small shapes; exercises the lane-dense + MXU path.
    B, N, D = 8, 16, 32
    k1, k2, k3, k4 = jax.random.split(jax.random.PRNGKey(0), 4)
    _check(jax.random.normal(k1, (B, D), dtype=jnp.float32),
           jax.random.normal(k2, (B, D), dtype=jnp.float32),
           jax.random.normal(k3, (B, N, D), dtype=jnp.float32),
           jax.random.normal(k4, (B, N, D), dtype=jnp.float32))

    # Config 2: B not a multiple of the tile -> multi-block grid + row masking.
    B2 = 20
    k5, k6, k7, k8 = jax.random.split(jax.random.PRNGKey(1), 4)
    _check(jax.random.normal(k5, (B2, D), dtype=jnp.float32),
           jax.random.normal(k6, (B2, D), dtype=jnp.float32),
           jax.random.normal(k7, (B2, N, D), dtype=jnp.float32),
           jax.random.normal(k8, (B2, N, D), dtype=jnp.float32),
           block_rows=8)

    # Config 3: D = 128 -> lane-aligned 3D path (no segment matrix).
    B3, N3, D3 = 8, 4, 128
    k9, k10, k11, k12 = jax.random.split(jax.random.PRNGKey(2), 4)
    _check(jax.random.normal(k9, (B3, D3), dtype=jnp.float32),
           jax.random.normal(k10, (B3, D3), dtype=jnp.float32),
           jax.random.normal(k11, (B3, N3, D3), dtype=jnp.float32),
           jax.random.normal(k12, (B3, N3, D3), dtype=jnp.float32))

    print("KERNEL_OK")
</pallas_src>

<mosaic_0001>
module attributes {stable_mosaic.version = 11 : i64} {
  func.func @_info_nce_lane_dense_kernel(%arg0: i32, %arg1: memref<512x16xf32, #tpu.memory_space<vmem>>, %arg2: memref<8x32xf32, #tpu.memory_space<vmem>>, %arg3: memref<8x32xf32, #tpu.memory_space<vmem>>, %arg4: memref<8x512xf32, #tpu.memory_space<vmem>>, %arg5: memref<8x512xf32, #tpu.memory_space<vmem>>, %arg6: memref<1x8x128xf32, #tpu.memory_space<vmem>>) attributes {dimension_semantics = [#tpu.dimension_semantics<parallel>], iteration_bounds = array<i64: 1>, scalar_prefetch = 0 : i64, scratch_operands = 0 : i64, tpu.core_type = #tpu.core_type<tc>, window_params = [{pipeline_mode = #tpu.pipeline_mode<synchronous>, transform_indices = @transform_0, window_bounds = array<i64: 512, 16>}, {transform_indices = @transform_1, window_bounds = array<i64: 8, 32>}, {transform_indices = @transform_2, window_bounds = array<i64: 8, 32>}, {transform_indices = @transform_3, window_bounds = array<i64: 8, 512>}, {transform_indices = @transform_4, window_bounds = array<i64: 8, 512>}, {transform_indices = @transform_5, window_bounds = array<i64: 1, 8, 128>}]} {
    %c0 = arith.constant 0 : index
    %c0_0 = arith.constant 0 : index
    %0 = vector.load %arg2[%c0, %c0_0] : memref<8x32xf32, #tpu.memory_space<vmem>>, vector<8x32xf32>
    %c0_1 = arith.constant 0 : index
    %c0_2 = arith.constant 0 : index
    %1 = vector.load %arg3[%c0_1, %c0_2] : memref<8x32xf32, #tpu.memory_space<vmem>>, vector<8x32xf32>
    %2 = arith.mulf %0, %1 : vector<8x32xf32>
    %cst = arith.constant dense<0.000000e+00> : vector<8xf32>
    %3 = vector.multi_reduction <add>, %2, %cst [1] : vector<8x32xf32> to vector<8xf32>
    %4 = vector.shape_cast %3 : vector<8xf32> to vector<8x1xf32>
    %5 = arith.mulf %0, %0 : vector<8x32xf32>
    %cst_3 = arith.constant dense<0.000000e+00> : vector<8xf32>
    %6 = vector.multi_reduction <add>, %5, %cst_3 [1] : vector<8x32xf32> to vector<8xf32>
    %7 = vector.shape_cast %6 : vector<8xf32> to vector<8x1xf32>
    %8 = arith.mulf %1, %1 : vector<8x32xf32>
    %cst_4 = arith.constant dense<0.000000e+00> : vector<8xf32>
    %9 = vector.multi_reduction <add>, %8, %cst_4 [1] : vector<8x32xf32> to vector<8xf32>
    %10 = vector.shape_cast %9 : vector<8xf32> to vector<8x1xf32>
    %cst_5 = arith.constant 1.000000e-24 : f32
    %11 = vector.broadcast %cst_5 : f32 to vector<8x1xf32>
    %12 = arith.maximumf %7, %11 : vector<8x1xf32>
    %13 = math.rsqrt %12 : vector<8x1xf32>
    %14 = arith.mulf %4, %13 : vector<8x1xf32>
    %cst_6 = arith.constant 1.000000e-24 : f32
    %15 = vector.broadcast %cst_6 : f32 to vector<8x1xf32>
    %16 = arith.maximumf %10, %15 : vector<8x1xf32>
    %17 = math.rsqrt %16 : vector<8x1xf32>
    %18 = arith.mulf %14, %17 : vector<8x1xf32>
    %cst_7 = arith.constant 1.000000e+01 : f32
    %19 = vector.broadcast %cst_7 : f32 to vector<8x1xf32>
    %20 = arith.mulf %18, %19 : vector<8x1xf32>
    %c0_8 = arith.constant 0 : index
    %c0_9 = arith.constant 0 : index
    %21 = vector.load %arg1[%c0_8, %c0_9] : memref<512x16xf32, #tpu.memory_space<vmem>>, vector<512x16xf32>
    %c0_10 = arith.constant 0 : index
    %c0_11 = arith.constant 0 : index
    %22 = vector.load %arg4[%c0_10, %c0_11] : memref<8x512xf32, #tpu.memory_space<vmem>>, vector<8x512xf32>
    %c0_12 = arith.constant 0 : index
    %c0_13 = arith.constant 0 : index
    %23 = vector.load %arg5[%c0_12, %c0_13] : memref<8x512xf32, #tpu.memory_space<vmem>>, vector<8x512xf32>
    %24 = arith.mulf %22, %23 : vector<8x512xf32>
    %cst_14 = arith.constant dense<0.000000e+00> : vector<8x16xf32>
    %25 = tpu.matmul %24, %21, %cst_14 {dimension_numbers = #tpu.dot_dimension_numbers<[1], [0], [0], [1], [0, 0, 1, 1], [], []>, precision = #tpu.contract_precision<fp32>} : vector<8x512xf32>, vector<512x16xf32>, vector<8x16xf32> -> vector<8x16xf32>
    %26 = arith.mulf %22, %22 : vector<8x512xf32>
    %cst_15 = arith.constant dense<0.000000e+00> : vector<8x16xf32>
    %27 = tpu.matmul %26, %21, %cst_15 {dimension_numbers = #tpu.dot_dimension_numbers<[1], [0], [0], [1], [0, 0, 1, 1], [], []>, precision = #tpu.contract_precision<fp32>} : vector<8x512xf32>, vector<512x16xf32>, vector<8x16xf32> -> vector<8x16xf32>
    %28 = arith.mulf %23, %23 : vector<8x512xf32>
    %cst_16 = arith.constant dense<0.000000e+00> : vector<8x16xf32>
    %29 = tpu.matmul %28, %21, %cst_16 {dimension_numbers = #tpu.dot_dimension_numbers<[1], [0], [0], [1], [0, 0, 1, 1], [], []>, precision = #tpu.contract_precision<fp32>} : vector<8x512xf32>, vector<512x16xf32>, vector<8x16xf32> -> vector<8x16xf32>
    %cst_17 = arith.constant 1.000000e-24 : f32
    %30 = vector.broadcast %cst_17 : f32 to vector<8x16xf32>
    %31 = arith.maximumf %27, %30 : vector<8x16xf32>
    %32 = math.rsqrt %31 : vector<8x16xf32>
    %33 = arith.mulf %25, %32 : vector<8x16xf32>
    %cst_18 = arith.constant 1.000000e-24 : f32
    %34 = vector.broadcast %cst_18 : f32 to vector<8x16xf32>
    %35 = arith.maximumf %29, %34 : vector<8x16xf32>
    %36 = math.rsqrt %35 : vector<8x16xf32>
    %37 = arith.mulf %33, %36 : vector<8x16xf32>
    %cst_19 = arith.constant 1.000000e+01 : f32
    %38 = vector.broadcast %cst_19 : f32 to vector<8x16xf32>
    %39 = arith.mulf %37, %38 : vector<8x16xf32>
    %cst_20 = arith.constant dense<0xFF800000> : vector<8xf32>
    %40 = vector.multi_reduction <maximumf>, %39, %cst_20 [1] : vector<8x16xf32> to vector<8xf32>
    %41 = vector.shape_cast %40 : vector<8xf32> to vector<8x1xf32>
    %42 = arith.maximumf %41, %20 : vector<8x1xf32>
    %43 = arith.subf %20, %42 : vector<8x1xf32>
    %44 = math.exp %43 : vector<8x1xf32>
    %45 = vector.broadcast %42 : vector<8x1xf32> to vector<8x16xf32>
    %46 = arith.subf %39, %45 : vector<8x16xf32>
    %47 = math.exp %46 : vector<8x16xf32>
    %cst_21 = arith.constant dense<0.000000e+00> : vector<8xf32>
    %48 = vector.multi_reduction <add>, %47, %cst_21 [1] : vector<8x16xf32> to vector<8xf32>
    %49 = vector.shape_cast %48 : vector<8xf32> to vector<8x1xf32>
    %50 = arith.addf %44, %49 : vector<8x1xf32>
    %51 = math.log %50 : vector<8x1xf32>
    %52 = arith.addf %42, %51 : vector<8x1xf32>
    %53 = arith.subf %52, %20 : vector<8x1xf32>
    %c8_i32 = arith.constant 8 : i32
    %54 = arith.muli %arg0, %c8_i32 : i32
    %55 = tpu.iota {dimensions = array<i32: 0>} : vector<8x1xi32>
    %56 = vector.broadcast %54 : i32 to vector<8x1xi32>
    %57 = arith.addi %56, %55 : vector<8x1xi32>
    %c8_i32_22 = arith.constant 8 : i32
    %58 = vector.broadcast %c8_i32_22 : i32 to vector<8x1xi32>
    %59 = arith.cmpi slt, %57, %58 : vector<8x1xi32>
    %cst_23 = arith.constant 0.000000e+00 : f32
    %60 = vector.broadcast %cst_23 : f32 to vector<8x1xf32>
    %61 = arith.select %59, %53, %60 : vector<8x1xi1>, vector<8x1xf32>
    %62 = vector.shape_cast %61 : vector<8x1xf32> to vector<1x8x1xf32>
    %cst_24 = arith.constant dense<0.000000e+00> : vector<1xf32>
    %63 = vector.multi_reduction <add>, %62, %cst_24 [1, 2] : vector<1x8x1xf32> to vector<1xf32>
    %64 = vector.shape_cast %63 : vector<1xf32> to vector<1x1x1xf32>
    %65 = vector.extract %64[0, 0, 0] : f32 from vector<1x1x1xf32>
    %66 = vector.broadcast %65 : f32 to vector<1x8x128xf32>
    %c0_25 = arith.constant 0 : index
    %c0_26 = arith.constant 0 : index
    %c0_27 = arith.constant 0 : index
    %67 = vector.load %arg6[%c0_25, %c0_26, %c0_27] : memref<1x8x128xf32, #tpu.memory_space<vmem>>, vector<1x8x128xf32>
    tpu.vector_store %arg6[%c0_25, %c0_26, %c0_27], %66 {strides = array<i32>} : memref<1x8x128xf32, #tpu.memory_space<vmem>>, vector<1x8x128xf32>,
    return
  }
  func.func @transform_0(%arg0: i32) -> (i32, i32) {
    %c0_i32 = arith.constant 0 : i32
    %c0_i32_0 = arith.constant 0 : i32
    %c0_i32_1 = arith.constant 0 : i32
    return %c0_i32, %c0_i32_0 : i32, i32
  }
  func.func @transform_1(%arg0: i32) -> (i32, i32) {
    %c0_i32 = arith.constant 0 : i32
    %c0_i32_0 = arith.constant 0 : i32
    return %arg0, %c0_i32 : i32, i32
  }
  func.func @transform_2(%arg0: i32) -> (i32, i32) {
    %c0_i32 = arith.constant 0 : i32
    %c0_i32_0 = arith.constant 0 : i32
    return %arg0, %c0_i32 : i32, i32
  }
  func.func @transform_3(%arg0: i32) -> (i32, i32) {
    %c0_i32 = arith.constant 0 : i32
    %c0_i32_0 = arith.constant 0 : i32
    return %arg0, %c0_i32 : i32, i32
  }
  func.func @transform_4(%arg0: i32) -> (i32, i32) {
    %c0_i32 = arith.constant 0 : i32
    %c0_i32_0 = arith.constant 0 : i32
    return %arg0, %c0_i32 : i32, i32
  }
  func.func @transform_5(%arg0: i32) -> (i32, i32, i32) {
    %c0_i32 = arith.constant 0 : i32
    %c0_i32_0 = arith.constant 0 : i32
    %c0_i32_1 = arith.constant 0 : i32
    return %arg0, %c0_i32, %c0_i32_0 : i32, i32, i32
  }
}

</mosaic_0001>

<llo_original>
// kernel: tpu_custom_call.1
$region0: #{tpu_custom_call.1}
  #allocation0 [shape = 'u32[]', space=smem, size = 0x4, offset = 0x4, fixed_abs, tag = 'smem constant byte address 0x4 - core index']
  #allocation1 [shape = 'u32[144,128]{1,0:T(1,128)}', space=vmem, size = 0x12000, scoped, tag = 'internal scratch']
  %s0 = inlined_call_operand.vmem [shape: f32[512,16], index: 0, kind: input, shape index: {}]
  %s1 = inlined_call_operand.vmem [shape: f32[8,32], index: 1, kind: input, shape index: {}]
  %s2 = inlined_call_operand.vmem [shape: f32[8,32], index: 2, kind: input, shape index: {}]
  %s3 = inlined_call_operand.vmem [shape: f32[8,512], index: 3, kind: input, shape index: {}]
  %s4 = inlined_call_operand.vmem [shape: f32[8,512], index: 4, kind: input, shape index: {}]
  %s5 = inlined_call_operand.hbm [shape: f32[1,8,128], index: 5, kind: output, shape index: {}]
  %s6 = sld [smem:[#allocation0]]
  $region30: #{tpu_custom_call.1} parent=0
    _
  %s8 = ssub.s32 1, %s6
  %s9 = scalar_select 0, %s8, %s6
  $region1: #{tpu_custom_call.1} parent=0
    #allocation2 [shape = 'u8[4096]{0}', space=vmem, size = 0x1000, scoped, tag = 'output window, operand 0, single buffered']
    #allocation3 [shape = 's32[1]{0}', space=sflag, size = 0x4, scoped, tag = 'scoped memory for tpu_custom_call.1']
    %10 = vsyncpa [#allocation3], 0
    // Predicated region
    $region2: #{tpu_custom_call.1} parent=1 // pred_check
      _
    $region3: #{tpu_custom_call.1} parent=1 // pred_check_branch
      %12 = sbr.rel (0) target = $region5
    $region4: #{tpu_custom_call.1} parent=1 // pred_region
      _
    $region5: #{tpu_custom_call.1} parent=1 // pred_fallthru
      _
    // Predicated region
    $region6: #{tpu_custom_call.1} parent=1 // pred_check
      _
    $region7: #{tpu_custom_call.1} parent=1 // pred_check_branch
      %14 = sbr.rel (0) target = $region9
    $region8: #{tpu_custom_call.1} parent=1 // pred_region
      _
    $region9: #{tpu_custom_call.1} parent=1 // pred_fallthru
      _
    // Predicated region
    $region10: #{tpu_custom_call.1} parent=1 // pred_check
      _
    $region11: #{tpu_custom_call.1} parent=1 // pred_check_branch
      %16 = sbr.rel (0) target = $region13
    $region12: #{tpu_custom_call.1} parent=1 // pred_region
      _
    $region13: #{tpu_custom_call.1} parent=1 // pred_fallthru
      _
    // Predicated region
    $region14: #{tpu_custom_call.1} parent=1 // pred_check
      _
    $region15: #{tpu_custom_call.1} parent=1 // pred_check_branch
      %18 = sbr.rel (0) target = $region17
    $region16: #{tpu_custom_call.1} parent=1 // pred_region
      _
    $region17: #{tpu_custom_call.1} parent=1 // pred_fallthru
      _
    // Predicated region
    $region18: #{tpu_custom_call.1} parent=1 // pred_check
      _
    $region19: #{tpu_custom_call.1} parent=1 // pred_check_branch
      %20 = sbr.rel (0) target = $region21
    $region20: #{tpu_custom_call.1} parent=1 // pred_region
      _
    $region21: #{tpu_custom_call.1} parent=1 // pred_fallthru
      _
    %v21 = vld [vmem:[%s1] sm:$0xff]
    %v22 = vld [vmem:[%s2] sm:$0xff]
    %v23 = vmul.f32 %v21, %v22
    %vm24 = vcmask 261120
    %v25 = vsel %vm24, %v23, 0.0
    %26 = vadd.xlane.f32.xlu0 %v25
    %v27 = vpop.xlane.xlu0 %26
    %v28 = vmul.f32 %v21, %v21
    %v29 = vsel %vm24, %v28, 0.0
    %30 = vadd.xlane.f32.xlu0 %v29
    %v31 = vpop.xlane.xlu0 %30
    %v32 = vmul.f32 %v22, %v22
    %v33 = vsel %vm24, %v32, 0.0
    %34 = vadd.xlane.f32.xlu0 %v33
    %v35 = vpop.xlane.xlu0 %34
    %v36 = vmax.f32 %v31, 1e-24
    %v37 = vrsqrt.pop %v36
    %v38 = vmul.f32 %v27, %v37
    %v39 = vmax.f32 %v35, 1e-24
    %v40 = vrsqrt.pop %v39
    %v41 = vmul.f32 %v38, %v40
    %v42 = vmul.f32 %v41, 10.0
    %v43 = vld [vmem:[%s0] sm:$0xff]
    %v44 = vld [vmem:[%s0 + $0x8] sm:$0xff]
    %v45 = vld [vmem:[%s0 + $0x10] sm:$0xff]
    %v46 = vld [vmem:[%s0 + $0x18] sm:$0xff]
    %v47 = vld [vmem:[%s0 + $0x20] sm:$0xff]
    %v48 = vld [vmem:[%s0 + $0x28] sm:$0xff]
    %v49 = vld [vmem:[%s0 + $0x30] sm:$0xff]
    %v50 = vld [vmem:[%s0 + $0x38] sm:$0xff]
    %v51 = vld [vmem:[%s0 + $0x40] sm:$0xff]
    %v52 = vld [vmem:[%s0 + $0x48] sm:$0xff]
    %v53 = vld [vmem:[%s0 + $0x50] sm:$0xff]
    %v54 = vld [vmem:[%s0 + $0x58] sm:$0xff]
    %v55 = vld [vmem:[%s0 + $0x60] sm:$0xff]
    %v56 = vld [vmem:[%s0 + $0x68] sm:$0xff]
    %v57 = vld [vmem:[%s0 + $0x70] sm:$0xff]
    %v58 = vld [vmem:[%s0 + $0x78] sm:$0xff]
    %v59 = vld [vmem:[%s0 + $0x80] sm:$0xff]
    %v60 = vld [vmem:[%s0 + $0x88] sm:$0xff]
    %v61 = vld [vmem:[%s0 + $0x90] sm:$0xff]
    %v62 = vld [vmem:[%s0 + $0x98] sm:$0xff]
    %v63 = vld [vmem:[%s0 + $0xa0] sm:$0xff]
    %v64 = vld [vmem:[%s0 + $0xa8] sm:$0xff]
    %v65 = vld [vmem:[%s0 + $0xb0] sm:$0xff]
    %v66 = vld [vmem:[%s0 + $0xb8] sm:$0xff]
    %v67 = vld [vmem:[%s0 + $0xc0] sm:$0xff]
    %v68 = vld [vmem:[%s0 + $0xc8] sm:$0xff]
    %v69 = vld [vmem:[%s0 + $0xd0] sm:$0xff]
    %v70 = vld [vmem:[%s0 + $0xd8] sm:$0xff]
    %v71 = vld [vmem:[%s0 + $0xe0] sm:$0xff]
    %v72 = vld [vmem:[%s0 + $0xe8] sm:$0xff]
    %v73 = vld [vmem:[%s0 + $0xf0] sm:$0xff]
    %v74 = vld [vmem:[%s0 + $0xf8] sm:$0xff]
    %v75 = vld [vmem:[%s0 + $0x100] sm:$0xff]
    %v76 = vld [vmem:[%s0 + $0x108] sm:$0xff]
    %v77 = vld [vmem:[%s0 + $0x110] sm:$0xff]
    %v78 = vld [vmem:[%s0 + $0x118] sm:$0xff]
    %v79 = vld [vmem:[%s0 + $0x120] sm:$0xff]
    %v80 = vld [vmem:[%s0 + $0x128] sm:$0xff]
    %v81 = vld [vmem:[%s0 + $0x130] sm:$0xff]
    %v82 = vld [vmem:[%s0 + $0x138] sm:$0xff]
    %v83 = vld [vmem:[%s0 + $0x140] sm:$0xff]
    %v84 = vld [vmem:[%s0 + $0x148] sm:$0xff]
    %v85 = vld [vmem:[%s0 + $0x150] sm:$0xff]
    %v86 = vld [vmem:[%s0 + $0x158] sm:$0xff]
    %v87 = vld [vmem:[%s0 + $0x160] sm:$0xff]
    %v88 = vld [vmem:[%s0 + $0x168] sm:$0xff]
    %v89 = vld [vmem:[%s0 + $0x170] sm:$0xff]
    %v90 = vld [vmem:[%s0 + $0x178] sm:$0xff]
    %v91 = vld [vmem:[%s0 + $0x180] sm:$0xff]
    %v92 = vld [vmem:[%s0 + $0x188] sm:$0xff]
    %v93 = vld [vmem:[%s0 + $0x190] sm:$0xff]
    %v94 = vld [vmem:[%s0 + $0x198] sm:$0xff]
    %v95 = vld [vmem:[%s0 + $0x1a0] sm:$0xff]
    %v96 = vld [vmem:[%s0 + $0x1a8] sm:$0xff]
    %v97 = vld [vmem:[%s0 + $0x1b0] sm:$0xff]
    %v98 = vld [vmem:[%s0 + $0x1b8] sm:$0xff]
    %v99 = vld [vmem:[%s0 + $0x1c0] sm:$0xff]
    %v100 = vld [vmem:[%s0 + $0x1c8] sm:$0xff]
    %v101 = vld [vmem:[%s0 + $0x1d0] sm:$0xff]
    %v102 = vld [vmem:[%s0 + $0x1d8] sm:$0xff]
    %v103 = vld [vmem:[%s0 + $0x1e0] sm:$0xff]
    %v104 = vld [vmem:[%s0 + $0x1e8] sm:$0xff]
    %v105 = vld [vmem:[%s0 + $0x1f0] sm:$0xff]
    %v106 = vld [vmem:[%s0 + $0x1f8] sm:$0xff]
    %v107 = vld [vmem:[%s3] sm:$0xff]
    %v108 = vld [vmem:[%s3 + $0x8] sm:$0xff]
    %v109 = vld [vmem:[%s3 + $0x10] sm:$0xff]
    %v110 = vld [vmem:[%s3 + $0x18] sm:$0xff]
    %v111 = vld [vmem:[%s4] sm:$0xff]
    %v112 = vld [vmem:[%s4 + $0x8] sm:$0xff]
    %v113 = vld [vmem:[%s4 + $0x10] sm:$0xff]
    %v114 = vld [vmem:[%s4 + $0x18] sm:$0xff]
    %v115 = vmul.f32 %v107, %v111
    %v116 = vmul.f32 %v108, %v112
    %v117 = vmul.f32 %v109, %v113
    %v118 = vmul.f32 %v110, %v114
    %119 = vmatprep.subr.mxu0 0.0
    %v120 = vand.u32 %v43, 4294901760
    %121 = vmatpush1.msra.mxu0 %v120
    %122 = vmatprep.subr.mxu0 0.0
    %v123 = vand.u32 %v44, 4294901760
    %124 = vmatpush1.msra.mxu0 %v123
    %125 = vmatprep.subr.mxu0 0.0
    %v126 = vand.u32 %v45, 4294901760
    %127 = vmatpush1.msra.mxu0 %v126
    %128 = vmatprep.subr.mxu0 0.0
    %v129 = vand.u32 %v46, 4294901760
    %130 = vmatpush1.msra.mxu0 %v129
    %131 = vmatprep.subr.mxu0 0.0
    %v132 = vand.u32 %v47, 4294901760
    %133 = vmatpush1.msra.mxu0 %v132
    %134 = vmatprep.subr.mxu0 0.0
    %v135 = vand.u32 %v48, 4294901760
    %136 = vmatpush1.msra.mxu0 %v135
    %137 = vmatprep.subr.mxu0 0.0
    %v138 = vand.u32 %v49, 4294901760
    %139 = vmatpush1.msra.mxu0 %v138
    %140 = vmatprep.subr.mxu0 0.0
    %v141 = vand.u32 %v50, 4294901760
    %142 = vmatpush1.msra.mxu0 %v141
    %143 = vmatprep.subr.mxu0 0.0
    %v144 = vand.u32 %v51, 4294901760
    %145 = vmatpush1.msra.mxu0 %v144
    %146 = vmatprep.subr.mxu0 0.0
    %v147 = vand.u32 %v52, 4294901760
    %148 = vmatpush1.msra.mxu0 %v147
    %149 = vmatprep.subr.mxu0 0.0
    %v150 = vand.u32 %v53, 4294901760
    %151 = vmatpush1.msra.mxu0 %v150
    %152 = vmatprep.subr.mxu0 0.0
    %v153 = vand.u32 %v54, 4294901760
    %154 = vmatpush1.msra.mxu0 %v153
    %155 = vmatprep.subr.mxu0 0.0
    %v156 = vand.u32 %v55, 4294901760
    %157 = vmatpush1.msra.mxu0 %v156
    %158 = vmatprep.subr.mxu0 0.0
    %v159 = vand.u32 %v56, 4294901760
    %160 = vmatpush1.msra.mxu0 %v159
    %161 = vmatprep.subr.mxu0 0.0
    %v162 = vand.u32 %v57, 4294901760
    %163 = vmatpush1.msra.mxu0 %v162
    %164 = vmatprep.subr.mxu0 0.0
    %v165 = vand.u32 %v58, 4294901760
    %166 = vmatpush1.msra.mxu0 %v165
    %167 = vmatprep.subr.mxu0 0.0
    %v168 = vand.u32 %v59, 4294901760
    %169 = vmatpush1.msra.mxu0 %v168
    %170 = vmatprep.subr.mxu0 0.0
    %v171 = vand.u32 %v60, 4294901760
    %172 = vmatpush1.msra.mxu0 %v171
    %173 = vmatprep.subr.mxu0 0.0
    %v174 = vand.u32 %v61, 4294901760
    %175 = vmatpush1.msra.mxu0 %v174
    %176 = vmatprep.subr.mxu0 0.0
    %v177 = vand.u32 %v62, 4294901760
    %178 = vmatpush1.msra.mxu0 %v177
    %179 = vmatprep.subr.mxu0 0.0
    %v180 = vand.u32 %v63, 4294901760
    %181 = vmatpush1.msra.mxu0 %v180
    %182 = vmatprep.subr.mxu0 0.0
    %v183 = vand.u32 %v64, 4294901760
    %184 = vmatpush1.msra.mxu0 %v183
    %185 = vmatprep.subr.mxu0 0.0
    %v186 = vand.u32 %v65, 4294901760
    %187 = vmatpush1.msra.mxu0 %v186
    %188 = vmatprep.subr.mxu0 0.0
    %v189 = vand.u32 %v66, 4294901760
    %190 = vmatpush1.msra.mxu0 %v189
    %191 = vmatprep.subr.mxu0 0.0
    %v192 = vand.u32 %v67, 4294901760
    %193 = vmatpush1.msra.mxu0 %v192
    %194 = vmatprep.subr.mxu0 0.0
    %v195 = vand.u32 %v68, 4294901760
    %196 = vmatpush1.msra.mxu0 %v195
    %197 = vmatprep.subr.mxu0 0.0
    %v198 = vand.u32 %v69, 4294901760
    %199 = vmatpush1.msra.mxu0 %v198
    %200 = vmatprep.subr.mxu0 0.0
    %v201 = vand.u32 %v70, 4294901760
    %202 = vmatpush1.msra.mxu0 %v201
    %203 = vmatprep.subr.mxu0 0.0
    %v204 = vand.u32 %v71, 4294901760
    %205 = vmatpush1.msra.mxu0 %v204
    %206 = vmatprep.subr.mxu0 0.0
    %v207 = vand.u32 %v72, 4294901760
    %208 = vmatpush1.msra.mxu0 %v207
    %209 = vmatprep.subr.mxu0 0.0
    %v210 = vand.u32 %v73, 4294901760
    %211 = vmatpush1.msra.mxu0 %v210
    %212 = vmatprep.subr.mxu0 0.0
    %v213 = vand.u32 %v74, 4294901760
    %214 = vmatpush1.msra.mxu0 %v213
    %v215 = vand.u32 %v116, 4294901760
    %v216 = vsub.f32 %v116, %v215
    %v217 = vand.u32 %v216, 4294901760
    %v218 = vsub.f32 %v216, %v217
    %v219 = vand.u32 %v218, 4294901760
    %220 = vmatprep.mubr.f32.mxu0 %v219
    %v221 = vand.u32 %v115, 4294901760
    %v222 = vsub.f32 %v115, %v221
    %v223 = vand.u32 %v222, 4294901760
    %v224 = vsub.f32 %v222, %v223
    %v225 = vand.u32 %v224, 4294901760
    %226 = vmatmul.mubr.f32.gmra.mrb[0].mxu0 %v225
    %v227 = vpop.f32.mrb[0].mxu0
    %v228 = vadd.f32 0.0, %v227
    %v229 = vpop.f32.mrb[0].mxu0
    %230 = vdwg.mxu0
    %231 = vmatprep.subr.mxu0 0.0
    %v232 = vand.u32 %v43, 4294901760
    %v233 = vsub.f32 %v43, %v232
    %v234 = vand.u32 %v233, 4294901760
    %v235 = vsub.f32 %v233, %v234
    %v236 = vand.u32 %v235, 4294901760
    %237 = vmatpush1.msra.mxu0 %v236
    %238 = vmatprep.subr.mxu0 0.0
    %v239 = vand.u32 %v44, 4294901760
    %v240 = vsub.f32 %v44, %v239
    %v241 = vand.u32 %v240, 4294901760
    %v242 = vsub.f32 %v240, %v241
    %v243 = vand.u32 %v242, 4294901760
    %244 = vmatpush1.msra.mxu0 %v243
    %245 = vmatprep.subr.mxu0 0.0
    %v246 = vand.u32 %v45, 4294901760
    %v247 = vsub.f32 %v45, %v246
    %v248 = vand.u32 %v247, 4294901760
    %v249 = vsub.f32 %v247, %v248
    %v250 = vand.u32 %v249, 4294901760
    %251 = vmatpush1.msra.mxu0 %v250
    %252 = vmatprep.subr.mxu0 0.0
    %v253 = vand.u32 %v46, 4294901760
    %v254 = vsub.f32 %v46, %v253
    %v255 = vand.u32 %v254, 4294901760
    %v256 = vsub.f32 %v254, %v255
    %v257 = vand.u32 %v256, 4294901760
    %258 = vmatpush1.msra.mxu0 %v257
    %259 = vmatprep.subr.mxu0 0.0
    %v260 = vand.u32 %v47, 4294901760
    %v261 = vsub.f32 %v47, %v260
    %v262 = vand.u32 %v261, 4294901760
    %v263 = vsub.f32 %v261, %v262
    %v264 = vand.u32 %v263, 4294901760
    %265 = vmatpush1.msra.mxu0 %v264
    %266 = vmatprep.subr.mxu0 0.0
    %v267 = vand.u32 %v48, 4294901760
    %v268 = vsub.f32 %v48, %v267
    %v269 = vand.u32 %v268, 4294901760
    %v270 = vsub.f32 %v268, %v269
    %v271 = vand.u32 %v270, 4294901760
    %272 = vmatpush1.msra.mxu0 %v271
    %273 = vmatprep.subr.mxu0 0.0
    %v274 = vand.u32 %v49, 4294901760
    %v275 = vsub.f32 %v49, %v274
    %v276 = vand.u32 %v275, 4294901760
    %v277 = vsub.f32 %v275, %v276
    %v278 = vand.u32 %v277, 4294901760
    %279 = vmatpush1.msra.mxu0 %v278
    %280 = vmatprep.subr.mxu0 0.0
    %v281 = vand.u32 %v50, 4294901760
    %v282 = vsub.f32 %v50, %v281
    %v283 = vand.u32 %v282, 4294901760
    %v284 = vsub.f32 %v282, %v283
    %v285 = vand.u32 %v284, 4294901760
    %286 = vmatpush1.msra.mxu0 %v285
    %287 = vmatprep.subr.mxu0 0.0
    %v288 = vand.u32 %v51, 4294901760
    %v289 = vsub.f32 %v51, %v288
    %v290 = vand.u32 %v289, 4294901760
    %v291 = vsub.f32 %v289, %v290
    %v292 = vand.u32 %v291, 4294901760
    %293 = vmatpush1.msra.mxu0 %v292
    %294 = vmatprep.subr.mxu0 0.0
    %v295 = vand.u32 %v52, 4294901760
    %v296 = vsub.f32 %v52, %v295
    %v297 = vand.u32 %v296, 4294901760
    %v298 = vsub.f32 %v296, %v297
    %v299 = vand.u32 %v298, 4294901760
    %300 = vmatpush1.msra.mxu0 %v299
    %301 = vmatprep.subr.mxu0 0.0
    %v302 = vand.u32 %v53, 4294901760
    %v303 = vsub.f32 %v53, %v302
    %v304 = vand.u32 %v303, 4294901760
    %v305 = vsub.f32 %v303, %v304
    %v306 = vand.u32 %v305, 4294901760
    %307 = vmatpush1.msra.mxu0 %v306
    %308 = vmatprep.subr.mxu0 0.0
    %v309 = vand.u32 %v54, 4294901760
    %v310 = vsub.f32 %v54, %v309
    %v311 = vand.u32 %v310, 4294901760
    %v312 = vsub.f32 %v310, %v311
    %v313 = vand.u32 %v312, 4294901760
    %314 = vmatpush1.msra.mxu0 %v313
    %315 = vmatprep.subr.mxu0 0.0
    %v316 = vand.u32 %v55, 4294901760
    %v317 = vsub.f32 %v55, %v316
    %v318 = vand.u32 %v317, 4294901760
    %v319 = vsub.f32 %v317, %v318
    %v320 = vand.u32 %v319, 4294901760
    %321 = vmatpush1.msra.mxu0 %v320
    %322 = vmatprep.subr.mxu0 0.0
    %v323 = vand.u32 %v56, 4294901760
    %v324 = vsub.f32 %v56, %v323
    %v325 = vand.u32 %v324, 4294901760
    %v326 = vsub.f32 %v324, %v325
    %v327 = vand.u32 %v326, 4294901760
    %328 = vmatpush1.msra.mxu0 %v327
    %329 = vmatprep.subr.mxu0 0.0
    %v330 = vand.u32 %v57, 4294901760
    %v331 = vsub.f32 %v57, %v330
    %v332 = vand.u32 %v331, 4294901760
    %v333 = vsub.f32 %v331, %v332
    %v334 = vand.u32 %v333, 4294901760
    %335 = vmatpush1.msra.mxu0 %v334
    %336 = vmatprep.subr.mxu0 0.0
    %v337 = vand.u32 %v58, 4294901760
    %v338 = vsub.f32 %v58, %v337
    %v339 = vand.u32 %v338, 4294901760
    %v340 = vsub.f32 %v338, %v339
    %v341 = vand.u32 %v340, 4294901760
    %342 = vmatpush1.msra.mxu0 %v341
    %343 = vmatprep.subr.mxu0 0.0
    %v344 = vand.u32 %v59, 4294901760
    %v345 = vsub.f32 %v59, %v344
    %v346 = vand.u32 %v345, 4294901760
    %v347 = vsub.f32 %v345, %v346
    %v348 = vand.u32 %v347, 4294901760
    %349 = vmatpush1.msra.mxu0 %v348
    %350 = vmatprep.subr.mxu0 0.0
    %v351 = vand.u32 %v60, 4294901760
    %v352 = vsub.f32 %v60, %v351
    %v353 = vand.u32 %v352, 4294901760
    %v354 = vsub.f32 %v352, %v353
    %v355 = vand.u32 %v354, 4294901760
    %356 = vmatpush1.msra.mxu0 %v355
    %357 = vmatprep.subr.mxu0 0.0
    %v358 = vand.u32 %v61, 4294901760
    %v359 = vsub.f32 %v61, %v358
    %v360 = vand.u32 %v359, 4294901760
    %v361 = vsub.f32 %v359, %v360
    %v362 = vand.u32 %v361, 4294901760
    %363 = vmatpush1.msra.mxu0 %v362
    %364 = vmatprep.subr.mxu0 0.0
    %v365 = vand.u32 %v62, 4294901760
    %v366 = vsub.f32 %v62, %v365
    %v367 = vand.u32 %v366, 4294901760
    %v368 = vsub.f32 %v366, %v367
    %v369 = vand.u32 %v368, 4294901760
    %370 = vmatpush1.msra.mxu0 %v369
    %371 = vmatprep.subr.mxu0 0.0
    %v372 = vand.u32 %v63, 4294901760
    %v373 = vsub.f32 %v63, %v372
    %v374 = vand.u32 %v373, 4294901760
    %v375 = vsub.f32 %v373, %v374
    %v376 = vand.u32 %v375, 4294901760
    %377 = vmatpush1.msra.mxu0 %v376
    %378 = vmatprep.subr.mxu0 0.0
    %v379 = vand.u32 %v64, 4294901760
    %v380 = vsub.f32 %v64, %v379
    %v381 = vand.u32 %v380, 4294901760
    %v382 = vsub.f32 %v380, %v381
    %v383 = vand.u32 %v382, 4294901760
    %384 = vmatpush1.msra.mxu0 %v383
    %385 = vmatprep.subr.mxu0 0.0
    %v386 = vand.u32 %v65, 4294901760
    %v387 = vsub.f32 %v65, %v386
    %v388 = vand.u32 %v387, 4294901760
    %v389 = vsub.f32 %v387, %v388
    %v390 = vand.u32 %v389, 4294901760
    %391 = vmatpush1.msra.mxu0 %v390
    %392 = vmatprep.subr.mxu0 0.0
    %v393 = vand.u32 %v66, 4294901760
    %v394 = vsub.f32 %v66, %v393
    %v395 = vand.u32 %v394, 4294901760
    %v396 = vsub.f32 %v394, %v395
    %v397 = vand.u32 %v396, 4294901760
    %398 = vmatpush1.msra.mxu0 %v397
    %399 = vmatprep.subr.mxu0 0.0
    %v400 = vand.u32 %v67, 4294901760
    %v401 = vsub.f32 %v67, %v400
    %v402 = vand.u32 %v401, 4294901760
    %v403 = vsub.f32 %v401, %v402
    %v404 = vand.u32 %v403, 4294901760
    %405 = vmatpush1.msra.mxu0 %v404
    %406 = vmatprep.subr.mxu0 0.0
    %v407 = vand.u32 %v68, 4294901760
    %v408 = vsub.f32 %v68, %v407
    %v409 = vand.u32 %v408, 4294901760
    %v410 = vsub.f32 %v408, %v409
    %v411 = vand.u32 %v410, 4294901760
    %412 = vmatpush1.msra.mxu0 %v411
    %413 = vmatprep.subr.mxu0 0.0
    %v414 = vand.u32 %v69, 4294901760
    %v415 = vsub.f32 %v69, %v414
    %v416 = vand.u32 %v415, 4294901760
    %v417 = vsub.f32 %v415, %v416
    %v418 = vand.u32 %v417, 4294901760
    %419 = vmatpush1.msra.mxu0 %v418
    %420 = vmatprep.subr.mxu0 0.0
    %v421 = vand.u32 %v70, 4294901760
    %v422 = vsub.f32 %v70, %v421
    %v423 = vand.u32 %v422, 4294901760
    %v424 = vsub.f32 %v422, %v423
    %v425 = vand.u32 %v424, 4294901760
    %426 = vmatpush1.msra.mxu0 %v425
    %427 = vmatprep.subr.mxu0 0.0
    %v428 = vand.u32 %v71, 4294901760
    %v429 = vsub.f32 %v71, %v428
    %v430 = vand.u32 %v429, 4294901760
    %v431 = vsub.f32 %v429, %v430
    %v432 = vand.u32 %v431, 4294901760
    %433 = vmatpush1.msra.mxu0 %v432
    %434 = vmatprep.subr.mxu0 0.0
    %v435 = vand.u32 %v72, 4294901760
    %v436 = vsub.f32 %v72, %v435
    %v437 = vand.u32 %v436, 4294901760
    %v438 = vsub.f32 %v436, %v437
    %v439 = vand.u32 %v438, 4294901760
    %440 = vmatpush1.msra.mxu0 %v439
    %441 = vmatprep.subr.mxu0 0.0
    %v442 = vand.u32 %v73, 4294901760
    %v443 = vsub.f32 %v73, %v442
    %v444 = vand.u32 %v443, 4294901760
    %v445 = vsub.f32 %v443, %v444
    %v446 = vand.u32 %v445, 4294901760
    %447 = vmatpush1.msra.mxu0 %v446
    %448 = vmatprep.subr.mxu0 0.0
    %v449 = vand.u32 %v74, 4294901760
    %v450 = vsub.f32 %v74, %v449
    %v451 = vand.u32 %v450, 4294901760
    %v452 = vsub.f32 %v450, %v451
    %v453 = vand.u32 %v452, 4294901760
    %454 = vmatpush1.msra.mxu0 %v453
    %v455 = vand.u32 %v116, 4294901760
    %456 = vmatprep.mubr.f32.mxu0 %v455
    %v457 = vand.u32 %v115, 4294901760
    %458 = vmatmul.mubr.f32.gmra.mrb[0].mxu0 %v457
    %v459 = vpop.f32.mrb[0].mxu0
    %v460 = vadd.f32 %v228, %v459
    %v461 = vpop.f32.mrb[0].mxu0
    %462 = vdwg.mxu0
    %463 = vmatprep.subr.mxu0 0.0
    %v464 = vand.u32 %v43, 4294901760
    %v465 = vsub.f32 %v43, %v464
    %466 = vmatpush1.msra.mxu0 %v465
    %467 = vmatprep.subr.mxu0 0.0
    %v468 = vand.u32 %v44, 4294901760
    %v469 = vsub.f32 %v44, %v468
    %470 = vmatpush1.msra.mxu0 %v469
    %471 = vmatprep.subr.mxu0 0.0
    %v472 = vand.u32 %v45, 4294901760
    %v473 = vsub.f32 %v45, %v472
    %474 = vmatpush1.msra.mxu0 %v473
    %475 = vmatprep.subr.mxu0 0.0
    %v476 = vand.u32 %v46, 4294901760
    %v477 = vsub.f32 %v46, %v476
    %478 = vmatpush1.msra.mxu0 %v477
    %479 = vmatprep.subr.mxu0 0.0
    %v480 = vand.u32 %v47, 4294901760
    %v481 = vsub.f32 %v47, %v480
    %482 = vmatpush1.msra.mxu0 %v481
    %483 = vmatprep.subr.mxu0 0.0
    %v484 = vand.u32 %v48, 4294901760
    %v485 = vsub.f32 %v48, %v484
    %486 = vmatpush1.msra.mxu0 %v485
    %487 = vmatprep.subr.mxu0 0.0
    %v488 = vand.u32 %v49, 4294901760
    %v489 = vsub.f32 %v49, %v488
    %490 = vmatpush1.msra.mxu0 %v489
    %491 = vmatprep.subr.mxu0 0.0
    %v492 = vand.u32 %v50, 4294901760
    %v493 = vsub.f32 %v50, %v492
    %494 = vmatpush1.msra.mxu0 %v493
    %495 = vmatprep.subr.mxu0 0.0
    %v496 = vand.u32 %v51, 4294901760
    %v497 = vsub.f32 %v51, %v496
    %498 = vmatpush1.msra.mxu0 %v497
    %499 = vmatprep.subr.mxu0 0.0
    %v500 = vand.u32 %v52, 4294901760
    %v501 = vsub.f32 %v52, %v500
    %502 = vmatpush1.msra.mxu0 %v501
    %503 = vmatprep.subr.mxu0 0.0
    %v504 = vand.u32 %v53, 4294901760
    %v505 = vsub.f32 %v53, %v504
    %506 = vmatpush1.msra.mxu0 %v505
    %507 = vmatprep.subr.mxu0 0.0
    %v508 = vand.u32 %v54, 4294901760
    %v509 = vsub.f32 %v54, %v508
    %510 = vmatpush1.msra.mxu0 %v509
    %511 = vmatprep.subr.mxu0 0.0
    %v512 = vand.u32 %v55, 4294901760
    %v513 = vsub.f32 %v55, %v512
    %514 = vmatpush1.msra.mxu0 %v513
    %515 = vmatprep.subr.mxu0 0.0
    %v516 = vand.u32 %v56, 4294901760
    %v517 = vsub.f32 %v56, %v516
    %518 = vmatpush1.msra.mxu0 %v517
    %519 = vmatprep.subr.mxu0 0.0
    %v520 = vand.u32 %v57, 4294901760
    %v521 = vsub.f32 %v57, %v520
    %522 = vmatpush1.msra.mxu0 %v521
    %523 = vmatprep.subr.mxu0 0.0
    %v524 = vand.u32 %v58, 4294901760
    %v525 = vsub.f32 %v58, %v524
    %526 = vmatpush1.msra.mxu0 %v525
    %527 = vmatprep.subr.mxu0 0.0
    %v528 = vand.u32 %v59, 4294901760
    %v529 = vsub.f32 %v59, %v528
    %530 = vmatpush1.msra.mxu0 %v529
    %531 = vmatprep.subr.mxu0 0.0
    %v532 = vand.u32 %v60, 4294901760
    %v533 = vsub.f32 %v60, %v532
    %534 = vmatpush1.msra.mxu0 %v533
    %535 = vmatprep.subr.mxu0 0.0
    %v536 = vand.u32 %v61, 4294901760
    %v537 = vsub.f32 %v61, %v536
    %538 = vmatpush1.msra.mxu0 %v537
    %539 = vmatprep.subr.mxu0 0.0
    %v540 = vand.u32 %v62, 4294901760
    %v541 = vsub.f32 %v62, %v540
    %542 = vmatpush1.msra.mxu0 %v541
    %543 = vmatprep.subr.mxu0 0.0
    %v544 = vand.u32 %v63, 4294901760
    %v545 = vsub.f32 %v63, %v544
    %546 = vmatpush1.msra.mxu0 %v545
    %547 = vmatprep.subr.mxu0 0.0
    %v548 = vand.u32 %v64, 4294901760
    %v549 = vsub.f32 %v64, %v548
    %550 = vmatpush1.msra.mxu0 %v549
    %551 = vmatprep.subr.mxu0 0.0
    %v552 = vand.u32 %v65, 4294901760
    %v553 = vsub.f32 %v65, %v552
    %554 = vmatpush1.msra.mxu0 %v553
    %555 = vmatprep.subr.mxu0 0.0
    %v556 = vand.u32 %v66, 4294901760
    %v557 = vsub.f32 %v66, %v556
    %558 = vmatpush1.msra.mxu0 %v557
    %559 = vmatprep.subr.mxu0 0.0
    %v560 = vand.u32 %v67, 4294901760
    %v561 = vsub.f32 %v67, %v560
    %562 = vmatpush1.msra.mxu0 %v561
    %563 = vmatprep.subr.mxu0 0.0
    %v564 = vand.u32 %v68, 4294901760
    %v565 = vsub.f32 %v68, %v564
    %566 = vmatpush1.msra.mxu0 %v565
    %567 = vmatprep.subr.mxu0 0.0
    %v568 = vand.u32 %v69, 4294901760
    %v569 = vsub.f32 %v69, %v568
    %570 = vmatpush1.msra.mxu0 %v569
    %571 = vmatprep.subr.mxu0 0.0
    %v572 = vand.u32 %v70, 4294901760
    %v573 = vsub.f32 %v70, %v572
    %574 = vmatpush1.msra.mxu0 %v573
    %575 = vmatprep.subr.mxu0 0.0
    %v576 = vand.u32 %v71, 4294901760
    %v577 = vsub.f32 %v71, %v576
    %578 = vmatpush1.msra.mxu0 %v577
    %579 = vmatprep.subr.mxu0 0.0
    %v580 = vand.u32 %v72, 4294901760
    %v581 = vsub.f32 %v72, %v580
    %582 = vmatpush1.msra.mxu0 %v581
    %583 = vmatprep.subr.mxu0 0.0
    %v584 = vand.u32 %v73, 4294901760
    %v585 = vsub.f32 %v73, %v584
    %586 = vmatpush1.msra.mxu0 %v585
    %587 = vmatprep.subr.mxu0 0.0
    %v588 = vand.u32 %v74, 4294901760
    %v589 = vsub.f32 %v74, %v588
    %590 = vmatpush1.msra.mxu0 %v589
    %v591 = vand.u32 %v116, 4294901760
    %v592 = vsub.f32 %v116, %v591
    %593 = vmatprep.mubr.f32.mxu0 %v592
    %v594 = vand.u32 %v115, 4294901760
    %v595 = vsub.f32 %v115, %v594
    %596 = vmatmul.mubr.f32.gmra.mrb[0].mxu0 %v595
    %v597 = vpop.f32.mrb[0].mxu0
    %v598 = vadd.f32 %v460, %v597
    %v599 = vpop.f32.mrb[0].mxu0
    %600 = vdwg.mxu0
    %601 = vmatprep.subr.mxu0 0.0
    %v602 = vand.u32 %v43, 4294901760
    %603 = vmatpush1.msra.mxu0 %v602
    %604 = vmatprep.subr.mxu0 0.0
    %v605 = vand.u32 %v44, 4294901760
    %606 = vmatpush1.msra.mxu0 %v605
    %607 = vmatprep.subr.mxu0 0.0
    %v608 = vand.u32 %v45, 4294901760
    %609 = vmatpush1.msra.mxu0 %v608
    %610 = vmatprep.subr.mxu0 0.0
    %v611 = vand.u32 %v46, 4294901760
    %612 = vmatpush1.msra.mxu0 %v611
    %613 = vmatprep.subr.mxu0 0.0
    %v614 = vand.u32 %v47, 4294901760
    %615 = vmatpush1.msra.mxu0 %v614
    %616 = vmatprep.subr.mxu0 0.0
    %v617 = vand.u32 %v48, 4294901760
    %618 = vmatpush1.msra.mxu0 %v617
    %619 = vmatprep.subr.mxu0 0.0
    %v620 = vand.u32 %v49, 4294901760
    %621 = vmatpush1.msra.mxu0 %v620
    %622 = vmatprep.subr.mxu0 0.0
    %v623 = vand.u32 %v50, 4294901760
    %624 = vmatpush1.msra.mxu0 %v623
    %625 = vmatprep.subr.mxu0 0.0
    %v626 = vand.u32 %v51, 4294901760
    %627 = vmatpush1.msra.mxu0 %v626
    %628 = vmatprep.subr.mxu0 0.0
    %v629 = vand.u32 %v52, 4294901760
    %630 = vmatpush1.msra.mxu0 %v629
    %631 = vmatprep.subr.mxu0 0.0
    %v632 = vand.u32 %v53, 4294901760
    %633 = vmatpush1.msra.mxu0 %v632
    %634 = vmatprep.subr.mxu0 0.0
    %v635 = vand.u32 %v54, 4294901760
    %636 = vmatpush1.msra.mxu0 %v635
    %637 = vmatprep.subr.mxu0 0.0
    %v638 = vand.u32 %v55, 4294901760
    %639 = vmatpush1.msra.mxu0 %v638
    %640 = vmatprep.subr.mxu0 0.0
    %v641 = vand.u32 %v56, 4294901760
    %642 = vmatpush1.msra.mxu0 %v641
    %643 = vmatprep.subr.mxu0 0.0
    %v644 = vand.u32 %v57, 4294901760
    %645 = vmatpush1.msra.mxu0 %v644
    %646 = vmatprep.subr.mxu0 0.0
    %v647 = vand.u32 %v58, 4294901760
    %648 = vmatpush1.msra.mxu0 %v647
    %649 = vmatprep.subr.mxu0 0.0
    %v650 = vand.u32 %v59, 4294901760
    %651 = vmatpush1.msra.mxu0 %v650
    %652 = vmatprep.subr.mxu0 0.0
    %v653 = vand.u32 %v60, 4294901760
    %654 = vmatpush1.msra.mxu0 %v653
    %655 = vmatprep.subr.mxu0 0.0
    %v656 = vand.u32 %v61, 4294901760
    %657 = vmatpush1.msra.mxu0 %v656
    %658 = vmatprep.subr.mxu0 0.0
    %v659 = vand.u32 %v62, 4294901760
    %660 = vmatpush1.msra.mxu0 %v659
    %661 = vmatprep.subr.mxu0 0.0
    %v662 = vand.u32 %v63, 4294901760
    %663 = vmatpush1.msra.mxu0 %v662
    %664 = vmatprep.subr.mxu0 0.0
    %v665 = vand.u32 %v64, 4294901760
    %666 = vmatpush1.msra.mxu0 %v665
    %667 = vmatprep.subr.mxu0 0.0
    %v668 = vand.u32 %v65, 4294901760
    %669 = vmatpush1.msra.mxu0 %v668
    %670 = vmatprep.subr.mxu0 0.0
    %v671 = vand.u32 %v66, 4294901760
    %672 = vmatpush1.msra.mxu0 %v671
    %673 = vmatprep.subr.mxu0 0.0
    %v674 = vand.u32 %v67, 4294901760
    %675 = vmatpush1.msra.mxu0 %v674
    %676 = vmatprep.subr.mxu0 0.0
    %v677 = vand.u32 %v68, 4294901760
    %678 = vmatpush1.msra.mxu0 %v677
    %679 = vmatprep.subr.mxu0 0.0
    %v680 = vand.u32 %v69, 4294901760
    %681 = vmatpush1.msra.mxu0 %v680
    %682 = vmatprep.subr.mxu0 0.0
    %v683 = vand.u32 %v70, 4294901760
    %684 = vmatpush1.msra.mxu0 %v683
    %685 = vmatprep.subr.mxu0 0.0
    %v686 = vand.u32 %v71, 4294901760
    %687 = vmatpush1.msra.mxu0 %v686
    %688 = vmatprep.subr.mxu0 0.0
    %v689 = vand.u32 %v72, 4294901760
    %690 = vmatpush1.msra.mxu0 %v689
    %691 = vmatprep.subr.mxu0 0.0
    %v692 = vand.u32 %v73, 4294901760
    %693 = vmatpush1.msra.mxu0 %v692
    %694 = vmatprep.subr.mxu0 0.0
    %v695 = vand.u32 %v74, 4294901760
    %696 = vmatpush1.msra.mxu0 %v695
    %v697 = vand.u32 %v116, 4294901760
    %v698 = vsub.f32 %v116, %v697
    %v699 = vand.u32 %v698, 4294901760
    %700 = vmatprep.mubr.f32.mxu0 %v699
    %v701 = vand.u32 %v115, 4294901760
    %v702 = vsub.f32 %v115, %v701
    %v703 = vand.u32 %v702, 4294901760
    %704 = vmatmul.mubr.f32.gmra.mrb[0].mxu0 %v703
    %v705 = vpop.f32.mrb[0].mxu0
    %v706 = vadd.f32 %v598, %v705
    %v707 = vpop.f32.mrb[0].mxu0
    %708 = vdwg.mxu0
    %709 = vmatprep.subr.mxu0 0.0
    %v710 = vand.u32 %v43, 4294901760
    %v711 = vsub.f32 %v43, %v710
    %v712 = vand.u32 %v711, 4294901760
    %713 = vmatpush1.msra.mxu0 %v712
    %714 = vmatprep.subr.mxu0 0.0
    %v715 = vand.u32 %v44, 4294901760
    %v716 = vsub.f32 %v44, %v715
    %v717 = vand.u32 %v716, 4294901760
    %718 = vmatpush1.msra.mxu0 %v717
    %719 = vmatprep.subr.mxu0 0.0
    %v720 = vand.u32 %v45, 4294901760
    %v721 = vsub.f32 %v45, %v720
    %v722 = vand.u32 %v721, 4294901760
    %723 = vmatpush1.msra.mxu0 %v722
    %724 = vmatprep.subr.mxu0 0.0
    %v725 = vand.u32 %v46, 4294901760
    %v726 = vsub.f32 %v46, %v725
    %v727 = vand.u32 %v726, 4294901760
    %728 = vmatpush1.msra.mxu0 %v727
    %729 = vmatprep.subr.mxu0 0.0
    %v730 = vand.u32 %v47, 4294901760
    %v731 = vsub.f32 %v47, %v730
    %v732 = vand.u32 %v731, 4294901760
    %733 = vmatpush1.msra.mxu0 %v732
    %734 = vmatprep.subr.mxu0 0.0
    %v735 = vand.u32 %v48, 4294901760
    %v736 = vsub.f32 %v48, %v735
    %v737 = vand.u32 %v736, 4294901760
    %738 = vmatpush1.msra.mxu0 %v737
    %739 = vmatprep.subr.mxu0 0.0
    %v740 = vand.u32 %v49, 4294901760
    %v741 = vsub.f32 %v49, %v740
    %v742 = vand.u32 %v741, 4294901760
    %743 = vmatpush1.msra.mxu0 %v742
    %744 = vmatprep.subr.mxu0 0.0
    %v745 = vand.u32 %v50, 4294901760
    %v746 = vsub.f32 %v50, %v745
    %v747 = vand.u32 %v746, 4294901760
    %748 = vmatpush1.msra.mxu0 %v747
    %749 = vmatprep.subr.mxu0 0.0
    %v750 = vand.u32 %v51, 4294901760
    %v751 = vsub.f32 %v51, %v750
    %v752 = vand.u32 %v751, 4294901760
    %753 = vmatpush1.msra.mxu0 %v752
    %754 = vmatprep.subr.mxu0 0.0
    %v755 = vand.u32 %v52, 4294901760
    %v756 = vsub.f32 %v52, %v755
    %v757 = vand.u32 %v756, 4294901760
    %758 = vmatpush1.msra.mxu0 %v757
    %759 = vmatprep.subr.mxu0 0.0
    %v760 = vand.u32 %v53, 4294901760
    %v761 = vsub.f32 %v53, %v760
    %v762 = vand.u32 %v761, 4294901760
    %763 = vmatpush1.msra.mxu0 %v762
    %764 = vmatprep.subr.mxu0 0.0
    %v765 = vand.u32 %v54, 4294901760
    %v766 = vsub.f32 %v54, %v765
    %v767 = vand.u32 %v766, 4294901760
    %768 = vmatpush1.msra.mxu0 %v767
    %769 = vmatprep.subr.mxu0 0.0
    %v770 = vand.u32 %v55, 4294901760
    %v771 = vsub.f32 %v55, %v770
    %v772 = vand.u32 %v771, 4294901760
    %773 = vmatpush1.msra.mxu0 %v772
    %774 = vmatprep.subr.mxu0 0.0
    %v775 = vand.u32 %v56, 4294901760
    %v776 = vsub.f32 %v56, %v775
    %v777 = vand.u32 %v776, 4294901760
    %778 = vmatpush1.msra.mxu0 %v777
    %779 = vmatprep.subr.mxu0 0.0
    %v780 = vand.u32 %v57, 4294901760
    %v781 = vsub.f32 %v57, %v780
    %v782 = vand.u32 %v781, 4294901760
    %783 = vmatpush1.msra.mxu0 %v782
    %784 = vmatprep.subr.mxu0 0.0
    %v785 = vand.u32 %v58, 4294901760
    %v786 = vsub.f32 %v58, %v785
    %v787 = vand.u32 %v786, 4294901760
    %788 = vmatpush1.msra.mxu0 %v787
    %789 = vmatprep.subr.mxu0 0.0
    %v790 = vand.u32 %v59, 4294901760
    %v791 = vsub.f32 %v59, %v790
    %v792 = vand.u32 %v791, 4294901760
    %793 = vmatpush1.msra.mxu0 %v792
    %794 = vmatprep.subr.mxu0 0.0
    %v795 = vand.u32 %v60, 4294901760
    %v796 = vsub.f32 %v60, %v795
    %v797 = vand.u32 %v796, 4294901760
    %798 = vmatpush1.msra.mxu0 %v797
    %799 = vmatprep.subr.mxu0 0.0
    %v800 = vand.u32 %v61, 4294901760
    %v801 = vsub.f32 %v61, %v800
    %v802 = vand.u32 %v801, 4294901760
    %803 = vmatpush1.msra.mxu0 %v802
    %804 = vmatprep.subr.mxu0 0.0
    %v805 = vand.u32 %v62, 4294901760
    %v806 = vsub.f32 %v62, %v805
    %v807 = vand.u32 %v806, 4294901760
    %808 = vmatpush1.msra.mxu0 %v807
    %809 = vmatprep.subr.mxu0 0.0
    %v810 = vand.u32 %v63, 4294901760
    %v811 = vsub.f32 %v63, %v810
    %v812 = vand.u32 %v811, 4294901760
    %813 = vmatpush1.msra.mxu0 %v812
    %814 = vmatprep.subr.mxu0 0.0
    %v815 = vand.u32 %v64, 4294901760
    %v816 = vsub.f32 %v64, %v815
    %v817 = vand.u32 %v816, 4294901760
    %818 = vmatpush1.msra.mxu0 %v817
    %819 = vmatprep.subr.mxu0 0.0
    %v820 = vand.u32 %v65, 4294901760
    %v821 = vsub.f32 %v65, %v820
    %v822 = vand.u32 %v821, 4294901760
    %823 = vmatpush1.msra.mxu0 %v822
    %824 = vmatprep.subr.mxu0 0.0
    %v825 = vand.u32 %v66, 4294901760
    %v826 = vsub.f32 %v66, %v825
    %v827 = vand.u32 %v826, 4294901760
    %828 = vmatpush1.msra.mxu0 %v827
    %829 = vmatprep.subr.mxu0 0.0
    %v830 = vand.u32 %v67, 4294901760
    %v831 = vsub.f32 %v67, %v830
    %v832 = vand.u32 %v831, 4294901760
    %833 = vmatpush1.msra.mxu0 %v832
    %834 = vmatprep.subr.mxu0 0.0
    %v835 = vand.u32 %v68, 4294901760
    %v836 = vsub.f32 %v68, %v835
    %v837 = vand.u32 %v836, 4294901760
    %838 = vmatpush1.msra.mxu0 %v837
    %839 = vmatprep.subr.mxu0 0.0
    %v840 = vand.u32 %v69, 4294901760
    %v841 = vsub.f32 %v69, %v840
    %v842 = vand.u32 %v841, 4294901760
    %843 = vmatpush1.msra.mxu0 %v842
    %844 = vmatprep.subr.mxu0 0.0
    %v845 = vand.u32 %v70, 4294901760
    %v846 = vsub.f32 %v70, %v845
    %v847 = vand.u32 %v846, 4294901760
    %848 = vmatpush1.msra.mxu0 %v847
    %849 = vmatprep.subr.mxu0 0.0
    %v850 = vand.u32 %v71, 4294901760
    %v851 = vsub.f32 %v71, %v850
    %v852 = vand.u32 %v851, 4294901760
    %853 = vmatpush1.msra.mxu0 %v852
    %854 = vmatprep.subr.mxu0 0.0
    %v855 = vand.u32 %v72, 4294901760
    %v856 = vsub.f32 %v72, %v855
    %v857 = vand.u32 %v856, 4294901760
    %858 = vmatpush1.msra.mxu0 %v857
    %859 = vmatprep.subr.mxu0 0.0
    %v860 = vand.u32 %v73, 4294901760
    %v861 = vsub.f32 %v73, %v860
    %v862 = vand.u32 %v861, 4294901760
    %863 = vmatpush1.msra.mxu0 %v862
    %864 = vmatprep.subr.mxu0 0.0
    %v865 = vand.u32 %v74, 4294901760
    %v866 = vsub.f32 %v74, %v865
    %v867 = vand.u32 %v866, 4294901760
    %868 = vmatpush1.msra.mxu0 %v867
    %v869 = vand.u32 %v116, 4294901760
    %870 = vmatprep.mubr.f32.mxu0 %v869
    %v871 = vand.u32 %v115, 4294901760
    %872 = vmatmul.mubr.f32.gmra.mrb[0].mxu0 %v871
    %v873 = vpop.f32.mrb[0].mxu0
    %v874 = vadd.f32 %v706, %v873
    %v875 = vpop.f32.mrb[0].mxu0
    %876 = vdwg.mxu0
    %877 = vmatprep.subr.mxu0 0.0
    %v878 = vand.u32 %v43, 4294901760
    %879 = vmatpush1.msra.mxu0 %v878
    %880 = vmatprep.subr.mxu0 0.0
    %v881 = vand.u32 %v44, 4294901760
    %882 = vmatpush1.msra.mxu0 %v881
    %883 = vmatprep.subr.mxu0 0.0
    %v884 = vand.u32 %v45, 4294901760
    %885 = vmatpush1.msra.mxu0 %v884
    %886 = vmatprep.subr.mxu0 0.0
    %v887 = vand.u32 %v46, 4294901760
    %888 = vmatpush1.msra.mxu0 %v887
    %889 = vmatprep.subr.mxu0 0.0
    %v890 = vand.u32 %v47, 4294901760
    %891 = vmatpush1.msra.mxu0 %v890
    %892 = vmatprep.subr.mxu0 0.0
    %v893 = vand.u32 %v48, 4294901760
    %894 = vmatpush1.msra.mxu0 %v893
    %895 = vmatprep.subr.mxu0 0.0
    %v896 = vand.u32 %v49, 4294901760
    %897 = vmatpush1.msra.mxu0 %v896
    %898 = vmatprep.subr.mxu0 0.0
    %v899 = vand.u32 %v50, 4294901760
    %900 = vmatpush1.msra.mxu0 %v899
    %901 = vmatprep.subr.mxu0 0.0
    %v902 = vand.u32 %v51, 4294901760
    %903 = vmatpush1.msra.mxu0 %v902
    %904 = vmatprep.subr.mxu0 0.0
    %v905 = vand.u32 %v52, 4294901760
    %906 = vmatpush1.msra.mxu0 %v905
    %907 = vmatprep.subr.mxu0 0.0
    %v908 = vand.u32 %v53, 4294901760
    %909 = vmatpush1.msra.mxu0 %v908
    %910 = vmatprep.subr.mxu0 0.0
    %v911 = vand.u32 %v54, 4294901760
    %912 = vmatpush1.msra.mxu0 %v911
    %913 = vmatprep.subr.mxu0 0.0
    %v914 = vand.u32 %v55, 4294901760
    %915 = vmatpush1.msra.mxu0 %v914
    %916 = vmatprep.subr.mxu0 0.0
    %v917 = vand.u32 %v56, 4294901760
    %918 = vmatpush1.msra.mxu0 %v917
    %919 = vmatprep.subr.mxu0 0.0
    %v920 = vand.u32 %v57, 4294901760
    %921 = vmatpush1.msra.mxu0 %v920
    %922 = vmatprep.subr.mxu0 0.0
    %v923 = vand.u32 %v58, 4294901760
    %924 = vmatpush1.msra.mxu0 %v923
    %925 = vmatprep.subr.mxu0 0.0
    %v926 = vand.u32 %v59, 4294901760
    %927 = vmatpush1.msra.mxu0 %v926
    %928 = vmatprep.subr.mxu0 0.0
    %v929 = vand.u32 %v60, 4294901760
    %930 = vmatpush1.msra.mxu0 %v929
    %931 = vmatprep.subr.mxu0 0.0
    %v932 = vand.u32 %v61, 4294901760
    %933 = vmatpush1.msra.mxu0 %v932
    %934 = vmatprep.subr.mxu0 0.0
    %v935 = vand.u32 %v62, 4294901760
    %936 = vmatpush1.msra.mxu0 %v935
    %937 = vmatprep.subr.mxu0 0.0
    %v938 = vand.u32 %v63, 4294901760
    %939 = vmatpush1.msra.mxu0 %v938
    %940 = vmatprep.subr.mxu0 0.0
    %v941 = vand.u32 %v64, 4294901760
    %942 = vmatpush1.msra.mxu0 %v941
    %943 = vmatprep.subr.mxu0 0.0
    %v944 = vand.u32 %v65, 4294901760
    %945 = vmatpush1.msra.mxu0 %v944
    %946 = vmatprep.subr.mxu0 0.0
    %v947 = vand.u32 %v66, 4294901760
    %948 = vmatpush1.msra.mxu0 %v947
    %949 = vmatprep.subr.mxu0 0.0
    %v950 = vand.u32 %v67, 4294901760
    %951 = vmatpush1.msra.mxu0 %v950
    %952 = vmatprep.subr.mxu0 0.0
    %v953 = vand.u32 %v68, 4294901760
    %954 = vmatpush1.msra.mxu0 %v953
    %955 = vmatprep.subr.mxu0 0.0
    %v956 = vand.u32 %v69, 4294901760
    %957 = vmatpush1.msra.mxu0 %v956
    %958 = vmatprep.subr.mxu0 0.0
    %v959 = vand.u32 %v70, 4294901760
    %960 = vmatpush1.msra.mxu0 %v959
    %961 = vmatprep.subr.mxu0 0.0
    %v962 = vand.u32 %v71, 4294901760
    %963 = vmatpush1.msra.mxu0 %v962
    %964 = vmatprep.subr.mxu0 0.0
    %v965 = vand.u32 %v72, 4294901760
    %966 = vmatpush1.msra.mxu0 %v965
    %967 = vmatprep.subr.mxu0 0.0
    %v968 = vand.u32 %v73, 4294901760
    %969 = vmatpush1.msra.mxu0 %v968
    %970 = vmatprep.subr.mxu0 0.0
    %v971 = vand.u32 %v74, 4294901760
    %972 = vmatpush1.msra.mxu0 %v971
    %v973 = vand.u32 %v116, 4294901760
    %974 = vmatprep.mubr.f32.mxu0 %v973
    %v975 = vand.u32 %v115, 4294901760
    %976 = vmatmul.mubr.f32.gmra.mrb[0].mxu0 %v975
    %v977 = vpop.f32.mrb[0].mxu0
    %v978 = vadd.f32 %v874, %v977
    %v979 = vpop.f32.mrb[0].mxu0
    %980 = vdwg.mxu0
    %981 = vmatprep.subr.mxu0 0.0
    %v982 = vand.u32 %v75, 4294901760
    %983 = vmatpush1.msra.mxu0 %v982
    %984 = vmatprep.subr.mxu0 0.0
    %v985 = vand.u32 %v76, 4294901760
    %986 = vmatpush1.msra.mxu0 %v985
    %987 = vmatprep.subr.mxu0 0.0
    %v988 = vand.u32 %v77, 4294901760
    %989 = vmatpush1.msra.mxu0 %v988
    %990 = vmatprep.subr.mxu0 0.0
    %v991 = vand.u32 %v78, 4294901760
    %992 = vmatpush1.msra.mxu0 %v991
    %993 = vmatprep.subr.mxu0 0.0
    %v994 = vand.u32 %v79, 4294901760
    %995 = vmatpush1.msra.mxu0 %v994
    %996 = vmatprep.subr.mxu0 0.0
    %v997 = vand.u32 %v80, 4294901760
    %998 = vmatpush1.msra.mxu0 %v997
    %999 = vmatprep.subr.mxu0 0.0
    %v1000 = vand.u32 %v81, 4294901760
    %1001 = vmatpush1.msra.mxu0 %v1000
    %1002 = vmatprep.subr.mxu0 0.0
    %v1003 = vand.u32 %v82, 4294901760
    %1004 = vmatpush1.msra.mxu0 %v1003
    %1005 = vmatprep.subr.mxu0 0.0
    %v1006 = vand.u32 %v83, 4294901760
    %1007 = vmatpush1.msra.mxu0 %v1006
    %1008 = vmatprep.subr.mxu0 0.0
    %v1009 = vand.u32 %v84, 4294901760
    %1010 = vmatpush1.msra.mxu0 %v1009
    %1011 = vmatprep.subr.mxu0 0.0
    %v1012 = vand.u32 %v85, 4294901760
    %1013 = vmatpush1.msra.mxu0 %v1012
    %1014 = vmatprep.subr.mxu0 0.0
    %v1015 = vand.u32 %v86, 4294901760
    %1016 = vmatpush1.msra.mxu0 %v1015
    %1017 = vmatprep.subr.mxu0 0.0
    %v1018 = vand.u32 %v87, 4294901760
    %1019 = vmatpush1.msra.mxu0 %v1018
    %1020 = vmatprep.subr.mxu0 0.0
    %v1021 = vand.u32 %v88, 4294901760
    %1022 = vmatpush1.msra.mxu0 %v1021
    %1023 = vmatprep.subr.mxu0 0.0
    %v1024 = vand.u32 %v89, 4294901760
    %1025 = vmatpush1.msra.mxu0 %v1024
    %1026 = vmatprep.subr.mxu0 0.0
    %v1027 = vand.u32 %v90, 4294901760
    %1028 = vmatpush1.msra.mxu0 %v1027
    %1029 = vmatprep.subr.mxu0 0.0
    %v1030 = vand.u32 %v91, 4294901760
    %1031 = vmatpush1.msra.mxu0 %v1030
    %1032 = vmatprep.subr.mxu0 0.0
    %v1033 = vand.u32 %v92, 4294901760
    %1034 = vmatpush1.msra.mxu0 %v1033
    %1035 = vmatprep.subr.mxu0 0.0
    %v1036 = vand.u32 %v93, 4294901760
    %1037 = vmatpush1.msra.mxu0 %v1036
    %1038 = vmatprep.subr.mxu0 0.0
    %v1039 = vand.u32 %v94, 4294901760
    %1040 = vmatpush1.msra.mxu0 %v1039
    %1041 = vmatprep.subr.mxu0 0.0
    %v1042 = vand.u32 %v95, 4294901760
    %1043 = vmatpush1.msra.mxu0 %v1042
    %1044 = vmatprep.subr.mxu0 0.0
    %v1045 = vand.u32 %v96, 4294901760
    %1046 = vmatpush1.msra.mxu0 %v1045
    %1047 = vmatprep.subr.mxu0 0.0
    %v1048 = vand.u32 %v97, 4294901760
    %1049 = vmatpush1.msra.mxu0 %v1048
    %1050 = vmatprep.subr.mxu0 0.0
    %v1051 = vand.u32 %v98, 4294901760
    %1052 = vmatpush1.msra.mxu0 %v1051
    %1053 = vmatprep.subr.mxu0 0.0
    %v1054 = vand.u32 %v99, 4294901760
    %1055 = vmatpush1.msra.mxu0 %v1054
    %1056 = vmatprep.subr.mxu0 0.0
    %v1057 = vand.u32 %v100, 4294901760
    %1058 = vmatpush1.msra.mxu0 %v1057
    %1059 = vmatprep.subr.mxu0 0.0
    %v1060 = vand.u32 %v101, 4294901760
    %1061 = vmatpush1.msra.mxu0 %v1060
    %1062 = vmatprep.subr.mxu0 0.0
    %v1063 = vand.u32 %v102, 4294901760
    %1064 = vmatpush1.msra.mxu0 %v1063
    %1065 = vmatprep.subr.mxu0 0.0
    %v1066 = vand.u32 %v103, 4294901760
    %1067 = vmatpush1.msra.mxu0 %v1066
    %1068 = vmatprep.subr.mxu0 0.0
    %v1069 = vand.u32 %v104, 4294901760
    %1070 = vmatpush1.msra.mxu0 %v1069
    %1071 = vmatprep.subr.mxu0 0.0
    %v1072 = vand.u32 %v105, 4294901760
    %1073 = vmatpush1.msra.mxu0 %v1072
    %1074 = vmatprep.subr.mxu0 0.0
    %v1075 = vand.u32 %v106, 4294901760
    %1076 = vmatpush1.msra.mxu0 %v1075
    %v1077 = vand.u32 %v118, 4294901760
    %v1078 = vsub.f32 %v118, %v1077
    %v1079 = vand.u32 %v1078, 4294901760
    %v1080 = vsub.f32 %v1078, %v1079
    %v1081 = vand.u32 %v1080, 4294901760
    %1082 = vmatprep.mubr.f32.mxu0 %v1081
    %v1083 = vand.u32 %v117, 4294901760
    %v1084 = vsub.f32 %v117, %v1083
    %v1085 = vand.u32 %v1084, 4294901760
    %v1086 = vsub.f32 %v1084, %v1085
    %v1087 = vand.u32 %v1086, 4294901760
    %1088 = vmatmul.mubr.f32.gmra.mrb[0].mxu0 %v1087
    %v1089 = vpop.f32.mrb[0].mxu0
    %v1090 = vadd.f32 %v978, %v1089
    %v1091 = vpop.f32.mrb[0].mxu0
    %1092 = vdwg.mxu0
    %1093 = vmatprep.subr.mxu0 0.0
    %v1094 = vand.u32 %v75, 4294901760
    %v1095 = vsub.f32 %v75, %v1094
    %v1096 = vand.u32 %v1095, 4294901760
    %v1097 = vsub.f32 %v1095, %v1096
    %v1098 = vand.u32 %v1097, 4294901760
    %1099 = vmatpush1.msra.mxu0 %v1098
    %1100 = vmatprep.subr.mxu0 0.0
    %v1101 = vand.u32 %v76, 4294901760
    %v1102 = vsub.f32 %v76, %v1101
    %v1103 = vand.u32 %v1102, 4294901760
    %v1104 = vsub.f32 %v1102, %v1103
    %v1105 = vand.u32 %v1104, 4294901760
    %1106 = vmatpush1.msra.mxu0 %v1105
    %1107 = vmatprep.subr.mxu0 0.0
    %v1108 = vand.u32 %v77, 4294901760
    %v1109 = vsub.f32 %v77, %v1108
    %v1110 = vand.u32 %v1109, 4294901760
    %v1111 = vsub.f32 %v1109, %v1110
    %v1112 = vand.u32 %v1111, 4294901760
    %1113 = vmatpush1.msra.mxu0 %v1112
    %1114 = vmatprep.subr.mxu0 0.0
    %v1115 = vand.u32 %v78, 4294901760
    %v1116 = vsub.f32 %v78, %v1115
    %v1117 = vand.u32 %v1116, 4294901760
    %v1118 = vsub.f32 %v1116, %v1117
    %v1119 = vand.u32 %v1118, 4294901760
    %1120 = vmatpush1.msra.mxu0 %v1119
    %1121 = vmatprep.subr.mxu0 0.0
    %v1122 = vand.u32 %v79, 4294901760
    %v1123 = vsub.f32 %v79, %v1122
    %v1124 = vand.u32 %v1123, 4294901760
    %v1125 = vsub.f32 %v1123, %v1124
    %v1126 = vand.u32 %v1125, 4294901760
    %1127 = vmatpush1.msra.mxu0 %v1126
    %1128 = vmatprep.subr.mxu0 0.0
    %v1129 = vand.u32 %v80, 4294901760
    %v1130 = vsub.f32 %v80, %v1129
    %v1131 = vand.u32 %v1130, 4294901760
    %v1132 = vsub.f32 %v1130, %v1131
    %v1133 = vand.u32 %v1132, 4294901760
    %1134 = vmatpush1.msra.mxu0 %v1133
    %1135 = vmatprep.subr.mxu0 0.0
    %v1136 = vand.u32 %v81, 4294901760
    %v1137 = vsub.f32 %v81, %v1136
    %v1138 = vand.u32 %v1137, 4294901760
    %v1139 = vsub.f32 %v1137, %v1138
    %v1140 = vand.u32 %v1139, 4294901760
    %1141 = vmatpush1.msra.mxu0 %v1140
    %1142 = vmatprep.subr.mxu0 0.0
    %v1143 = vand.u32 %v82, 4294901760
    %v1144 = vsub.f32 %v82, %v1143
    %v1145 = vand.u32 %v1144, 4294901760
    %v1146 = vsub.f32 %v1144, %v1145
    %v1147 = vand.u32 %v1146, 4294901760
    %1148 = vmatpush1.msra.mxu0 %v1147
    %1149 = vmatprep.subr.mxu0 0.0
    %v1150 = vand.u32 %v83, 4294901760
    %v1151 = vsub.f32 %v83, %v1150
    %v1152 = vand.u32 %v1151, 4294901760
    %v1153 = vsub.f32 %v1151, %v1152
    %v1154 = vand.u32 %v1153, 4294901760
    %1155 = vmatpush1.msra.mxu0 %v1154
    %1156 = vmatprep.subr.mxu0 0.0
    %v1157 = vand.u32 %v84, 4294901760
    %v1158 = vsub.f32 %v84, %v1157
    %v1159 = vand.u32 %v1158, 4294901760
    %v1160 = vsub.f32 %v1158, %v1159
    %v1161 = vand.u32 %v1160, 4294901760
    %1162 = vmatpush1.msra.mxu0 %v1161
    %1163 = vmatprep.subr.mxu0 0.0
    %v1164 = vand.u32 %v85, 4294901760
    %v1165 = vsub.f32 %v85, %v1164
    %v1166 = vand.u32 %v1165, 4294901760
    %v1167 = vsub.f32 %v1165, %v1166
    %v1168 = vand.u32 %v1167, 4294901760
    %1169 = vmatpush1.msra.mxu0 %v1168
    %1170 = vmatprep.subr.mxu0 0.0
    %v1171 = vand.u32 %v86, 4294901760
    %v1172 = vsub.f32 %v86, %v1171
    %v1173 = vand.u32 %v1172, 4294901760
    %v1174 = vsub.f32 %v1172, %v1173
    %v1175 = vand.u32 %v1174, 4294901760
    %1176 = vmatpush1.msra.mxu0 %v1175
    %1177 = vmatprep.subr.mxu0 0.0
    %v1178 = vand.u32 %v87, 4294901760
    %v1179 = vsub.f32 %v87, %v1178
    %v1180 = vand.u32 %v1179, 4294901760
    %v1181 = vsub.f32 %v1179, %v1180
    %v1182 = vand.u32 %v1181, 4294901760
    %1183 = vmatpush1.msra.mxu0 %v1182
    %1184 = vmatprep.subr.mxu0 0.0
    %v1185 = vand.u32 %v88, 4294901760
    %v1186 = vsub.f32 %v88, %v1185
    %v1187 = vand.u32 %v1186, 4294901760
    %v1188 = vsub.f32 %v1186, %v1187
    %v1189 = vand.u32 %v1188, 4294901760
    %1190 = vmatpush1.msra.mxu0 %v1189
    %1191 = vmatprep.subr.mxu0 0.0
    %v1192 = vand.u32 %v89, 4294901760
    %v1193 = vsub.f32 %v89, %v1192
    %v1194 = vand.u32 %v1193, 4294901760
    %v1195 = vsub.f32 %v1193, %v1194
    %v1196 = vand.u32 %v1195, 4294901760
    %1197 = vmatpush1.msra.mxu0 %v1196
    %1198 = vmatprep.subr.mxu0 0.0
    %v1199 = vand.u32 %v90, 4294901760
    %v1200 = vsub.f32 %v90, %v1199
    %v1201 = vand.u32 %v1200, 4294901760
    %v1202 = vsub.f32 %v1200, %v1201
    %v1203 = vand.u32 %v1202, 4294901760
    %1204 = vmatpush1.msra.mxu0 %v1203
    %1205 = vmatprep.subr.mxu0 0.0
    %v1206 = vand.u32 %v91, 4294901760
    %v1207 = vsub.f32 %v91, %v1206
    %v1208 = vand.u32 %v1207, 4294901760
    %v1209 = vsub.f32 %v1207, %v1208
    %v1210 = vand.u32 %v1209, 4294901760
    %1211 = vmatpush1.msra.mxu0 %v1210
    %1212 = vmatprep.subr.mxu0 0.0
    %v1213 = vand.u32 %v92, 4294901760
    %v1214 = vsub.f32 %v92, %v1213
    %v1215 = vand.u32 %v1214, 4294901760
    %v1216 = vsub.f32 %v1214, %v1215
    %v1217 = vand.u32 %v1216, 4294901760
    %1218 = vmatpush1.msra.mxu0 %v1217
    %1219 = vmatprep.subr.mxu0 0.0
    %v1220 = vand.u32 %v93, 4294901760
    %v1221 = vsub.f32 %v93, %v1220
    %v1222 = vand.u32 %v1221, 4294901760
    %v1223 = vsub.f32 %v1221, %v1222
    %v1224 = vand.u32 %v1223, 4294901760
    %1225 = vmatpush1.msra.mxu0 %v1224
    %1226 = vmatprep.subr.mxu0 0.0
    %v1227 = vand.u32 %v94, 4294901760
    %v1228 = vsub.f32 %v94, %v1227
    %v1229 = vand.u32 %v1228, 4294901760
    %v1230 = vsub.f32 %v1228, %v1229
    %v1231 = vand.u32 %v1230, 4294901760
    %1232 = vmatpush1.msra.mxu0 %v1231
    %1233 = vmatprep.subr.mxu0 0.0
    %v1234 = vand.u32 %v95, 4294901760
    %v1235 = vsub.f32 %v95, %v1234
    %v1236 = vand.u32 %v1235, 4294901760
    %v1237 = vsub.f32 %v1235, %v1236
    %v1238 = vand.u32 %v1237, 4294901760
    %1239 = vmatpush1.msra.mxu0 %v1238
    %1240 = vmatprep.subr.mxu0 0.0
    %v1241 = vand.u32 %v96, 4294901760
    %v1242 = vsub.f32 %v96, %v1241
    %v1243 = vand.u32 %v1242, 4294901760
    %v1244 = vsub.f32 %v1242, %v1243
    %v1245 = vand.u32 %v1244, 4294901760
    %1246 = vmatpush1.msra.mxu0 %v1245
    %1247 = vmatprep.subr.mxu0 0.0
    %v1248 = vand.u32 %v97, 4294901760
    %v1249 = vsub.f32 %v97, %v1248
    %v1250 = vand.u32 %v1249, 4294901760
    %v1251 = vsub.f32 %v1249, %v1250
    %v1252 = vand.u32 %v1251, 4294901760
    %1253 = vmatpush1.msra.mxu0 %v1252
    %1254 = vmatprep.subr.mxu0 0.0
    %v1255 = vand.u32 %v98, 4294901760
    %v1256 = vsub.f32 %v98, %v1255
    %v1257 = vand.u32 %v1256, 4294901760
    %v1258 = vsub.f32 %v1256, %v1257
    %v1259 = vand.u32 %v1258, 4294901760
    %1260 = vmatpush1.msra.mxu0 %v1259
    %1261 = vmatprep.subr.mxu0 0.0
    %v1262 = vand.u32 %v99, 4294901760
    %v1263 = vsub.f32 %v99, %v1262
    %v1264 = vand.u32 %v1263, 4294901760
    %v1265 = vsub.f32 %v1263, %v1264
    %v1266 = vand.u32 %v1265, 4294901760
    %1267 = vmatpush1.msra.mxu0 %v1266
    %1268 = vmatprep.subr.mxu0 0.0
    %v1269 = vand.u32 %v100, 4294901760
    %v1270 = vsub.f32 %v100, %v1269
    %v1271 = vand.u32 %v1270, 4294901760
    %v1272 = vsub.f32 %v1270, %v1271
    %v1273 = vand.u32 %v1272, 4294901760
    %1274 = vmatpush1.msra.mxu0 %v1273
    %1275 = vmatprep.subr.mxu0 0.0
    %v1276 = vand.u32 %v101, 4294901760
    %v1277 = vsub.f32 %v101, %v1276
    %v1278 = vand.u32 %v1277, 4294901760
    %v1279 = vsub.f32 %v1277, %v1278
    %v1280 = vand.u32 %v1279, 4294901760
    %1281 = vmatpush1.msra.mxu0 %v1280
    %1282 = vmatprep.subr.mxu0 0.0
    %v1283 = vand.u32 %v102, 4294901760
    %v1284 = vsub.f32 %v102, %v1283
    %v1285 = vand.u32 %v1284, 4294901760
    %v1286 = vsub.f32 %v1284, %v1285
    %v1287 = vand.u32 %v1286, 4294901760
    %1288 = vmatpush1.msra.mxu0 %v1287
    %1289 = vmatprep.subr.mxu0 0.0
    %v1290 = vand.u32 %v103, 4294901760
    %v1291 = vsub.f32 %v103, %v1290
    %v1292 = vand.u32 %v1291, 4294901760
    %v1293 = vsub.f32 %v1291, %v1292
    %v1294 = vand.u32 %v1293, 4294901760
    %1295 = vmatpush1.msra.mxu0 %v1294
    %1296 = vmatprep.subr.mxu0 0.0
    %v1297 = vand.u32 %v104, 4294901760
    %v1298 = vsub.f32 %v104, %v1297
    %v1299 = vand.u32 %v1298, 4294901760
    %v1300 = vsub.f32 %v1298, %v1299
    %v1301 = vand.u32 %v1300, 4294901760
    %1302 = vmatpush1.msra.mxu0 %v1301
    %1303 = vmatprep.subr.mxu0 0.0
    %v1304 = vand.u32 %v105, 4294901760
    %v1305 = vsub.f32 %v105, %v1304
    %v1306 = vand.u32 %v1305, 4294901760
    %v1307 = vsub.f32 %v1305, %v1306
    %v1308 = vand.u32 %v1307, 4294901760
    %1309 = vmatpush1.msra.mxu0 %v1308
    %1310 = vmatprep.subr.mxu0 0.0
    %v1311 = vand.u32 %v106, 4294901760
    %v1312 = vsub.f32 %v106, %v1311
    %v1313 = vand.u32 %v1312, 4294901760
    %v1314 = vsub.f32 %v1312, %v1313
    %v1315 = vand.u32 %v1314, 4294901760
    %1316 = vmatpush1.msra.mxu0 %v1315
    %v1317 = vand.u32 %v118, 4294901760
    %1318 = vmatprep.mubr.f32.mxu0 %v1317
    %v1319 = vand.u32 %v117, 4294901760
    %1320 = vmatmul.mubr.f32.gmra.mrb[0].mxu0 %v1319
    %v1321 = vpop.f32.mrb[0].mxu0
    %v1322 = vadd.f32 %v1090, %v1321
    %v1323 = vpop.f32.mrb[0].mxu0
    %1324 = vdwg.mxu0
    %1325 = vmatprep.subr.mxu0 0.0
    %v1326 = vand.u32 %v75, 4294901760
    %v1327 = vsub.f32 %v75, %v1326
    %1328 = vmatpush1.msra.mxu0 %v1327
    %1329 = vmatprep.subr.mxu0 0.0
    %v1330 = vand.u32 %v76, 4294901760
    %v1331 = vsub.f32 %v76, %v1330
    %1332 = vmatpush1.msra.mxu0 %v1331
    %1333 = vmatprep.subr.mxu0 0.0
    %v1334 = vand.u32 %v77, 4294901760
    %v1335 = vsub.f32 %v77, %v1334
    %1336 = vmatpush1.msra.mxu0 %v1335
    %1337 = vmatprep.subr.mxu0 0.0
    %v1338 = vand.u32 %v78, 4294901760
    %v1339 = vsub.f32 %v78, %v1338
    %1340 = vmatpush1.msra.mxu0 %v1339
    %1341 = vmatprep.subr.mxu0 0.0
    %v1342 = vand.u32 %v79, 4294901760
    %v1343 = vsub.f32 %v79, %v1342
    %1344 = vmatpush1.msra.mxu0 %v1343
    %1345 = vmatprep.subr.mxu0 0.0
    %v1346 = vand.u32 %v80, 4294901760
    %v1347 = vsub.f32 %v80, %v1346
    %1348 = vmatpush1.msra.mxu0 %v1347
    %1349 = vmatprep.subr.mxu0 0.0
    %v1350 = vand.u32 %v81, 4294901760
    %v1351 = vsub.f32 %v81, %v1350
    %1352 = vmatpush1.msra.mxu0 %v1351
    %1353 = vmatprep.subr.mxu0 0.0
    %v1354 = vand.u32 %v82, 4294901760
    %v1355 = vsub.f32 %v82, %v1354
    %1356 = vmatpush1.msra.mxu0 %v1355
    %1357 = vmatprep.subr.mxu0 0.0
    %v1358 = vand.u32 %v83, 4294901760
    %v1359 = vsub.f32 %v83, %v1358
    %1360 = vmatpush1.msra.mxu0 %v1359
    %1361 = vmatprep.subr.mxu0 0.0
    %v1362 = vand.u32 %v84, 4294901760
    %v1363 = vsub.f32 %v84, %v1362
    %1364 = vmatpush1.msra.mxu0 %v1363
    %1365 = vmatprep.subr.mxu0 0.0
    %v1366 = vand.u32 %v85, 4294901760
    %v1367 = vsub.f32 %v85, %v1366
    %1368 = vmatpush1.msra.mxu0 %v1367
    %1369 = vmatprep.subr.mxu0 0.0
    %v1370 = vand.u32 %v86, 4294901760
    %v1371 = vsub.f32 %v86, %v1370
    %1372 = vmatpush1.msra.mxu0 %v1371
    %1373 = vmatprep.subr.mxu0 0.0
    %v1374 = vand.u32 %v87, 4294901760
    %v1375 = vsub.f32 %v87, %v1374
    %1376 = vmatpush1.msra.mxu0 %v1375
    %1377 = vmatprep.subr.mxu0 0.0
    %v1378 = vand.u32 %v88, 4294901760
    %v1379 = vsub.f32 %v88, %v1378
    %1380 = vmatpush1.msra.mxu0 %v1379
    %1381 = vmatprep.subr.mxu0 0.0
    %v1382 = vand.u32 %v89, 4294901760
    %v1383 = vsub.f32 %v89, %v1382
    %1384 = vmatpush1.msra.mxu0 %v1383
    %1385 = vmatprep.subr.mxu0 0.0
    %v1386 = vand.u32 %v90, 4294901760
    %v1387 = vsub.f32 %v90, %v1386
    %1388 = vmatpush1.msra.mxu0 %v1387
    %1389 = vmatprep.subr.mxu0 0.0
    %v1390 = vand.u32 %v91, 4294901760
    %v1391 = vsub.f32 %v91, %v1390
    %1392 = vmatpush1.msra.mxu0 %v1391
    %1393 = vmatprep.subr.mxu0 0.0
    %v1394 = vand.u32 %v92, 4294901760
    %v1395 = vsub.f32 %v92, %v1394
    %1396 = vmatpush1.msra.mxu0 %v1395
    %1397 = vmatprep.subr.mxu0 0.0
    %v1398 = vand.u32 %v93, 4294901760
    %v1399 = vsub.f32 %v93, %v1398
    %1400 = vmatpush1.msra.mxu0 %v1399
    %1401 = vmatprep.subr.mxu0 0.0
    %v1402 = vand.u32 %v94, 4294901760
    %v1403 = vsub.f32 %v94, %v1402
    %1404 = vmatpush1.msra.mxu0 %v1403
    %1405 = vmatprep.subr.mxu0 0.0
    %v1406 = vand.u32 %v95, 4294901760
    %v1407 = vsub.f32 %v95, %v1406
    %1408 = vmatpush1.msra.mxu0 %v1407
    %1409 = vmatprep.subr.mxu0 0.0
    %v1410 = vand.u32 %v96, 4294901760
    %v1411 = vsub.f32 %v96, %v1410
    %1412 = vmatpush1.msra.mxu0 %v1411
    %1413 = vmatprep.subr.mxu0 0.0
    %v1414 = vand.u32 %v97, 4294901760
    %v1415 = vsub.f32 %v97, %v1414
    %1416 = vmatpush1.msra.mxu0 %v1415
    %1417 = vmatprep.subr.mxu0 0.0
    %v1418 = vand.u32 %v98, 4294901760
    %v1419 = vsub.f32 %v98, %v1418
    %1420 = vmatpush1.msra.mxu0 %v1419
    %1421 = vmatprep.subr.mxu0 0.0
    %v1422 = vand.u32 %v99, 4294901760
    %v1423 = vsub.f32 %v99, %v1422
    %1424 = vmatpush1.msra.mxu0 %v1423
    %1425 = vmatprep.subr.mxu0 0.0
    %v1426 = vand.u32 %v100, 4294901760
    %v1427 = vsub.f32 %v100, %v1426
    %1428 = vmatpush1.msra.mxu0 %v1427
    %1429 = vmatprep.subr.mxu0 0.0
    %v1430 = vand.u32 %v101, 4294901760
    %v1431 = vsub.f32 %v101, %v1430
    %1432 = vmatpush1.msra.mxu0 %v1431
    %1433 = vmatprep.subr.mxu0 0.0
    %v1434 = vand.u32 %v102, 4294901760
    %v1435 = vsub.f32 %v102, %v1434
    %1436 = vmatpush1.msra.mxu0 %v1435
    %1437 = vmatprep.subr.mxu0 0.0
    %v1438 = vand.u32 %v103, 4294901760
    %v1439 = vsub.f32 %v103, %v1438
    %1440 = vmatpush1.msra.mxu0 %v1439
    %1441 = vmatprep.subr.mxu0 0.0
    %v1442 = vand.u32 %v104, 4294901760
    %v1443 = vsub.f32 %v104, %v1442
    %1444 = vmatpush1.msra.mxu0 %v1443
    %1445 = vmatprep.subr.mxu0 0.0
    %v1446 = vand.u32 %v105, 4294901760
    %v1447 = vsub.f32 %v105, %v1446
    %1448 = vmatpush1.msra.mxu0 %v1447
    %1449 = vmatprep.subr.mxu0 0.0
    %v1450 = vand.u32 %v106, 4294901760
    %v1451 = vsub.f32 %v106, %v1450
    %1452 = vmatpush1.msra.mxu0 %v1451
    %v1453 = vand.u32 %v118, 4294901760
    %v1454 = vsub.f32 %v118, %v1453
    %1455 = vmatprep.mubr.f32.mxu0 %v1454
    %v1456 = vand.u32 %v117, 4294901760
    %v1457 = vsub.f32 %v117, %v1456
    %1458 = vmatmul.mubr.f32.gmra.mrb[0].mxu0 %v1457
    %v1459 = vpop.f32.mrb[0].mxu0
    %v1460 = vadd.f32 %v1322, %v1459
    %v1461 = vpop.f32.mrb[0].mxu0
    %1462 = vdwg.mxu0
    %1463 = vmatprep.subr.mxu0 0.0
    %v1464 = vand.u32 %v75, 4294901760
    %1465 = vmatpush1.msra.mxu0 %v1464
    %1466 = vmatprep.subr.mxu0 0.0
    %v1467 = vand.u32 %v76, 4294901760
    %1468 = vmatpush1.msra.mxu0 %v1467
    %1469 = vmatprep.subr.mxu0 0.0
    %v1470 = vand.u32 %v77, 4294901760
    %1471 = vmatpush1.msra.mxu0 %v1470
    %1472 = vmatprep.subr.mxu0 0.0
    %v1473 = vand.u32 %v78, 4294901760
    %1474 = vmatpush1.msra.mxu0 %v1473
    %1475 = vmatprep.subr.mxu0 0.0
    %v1476 = vand.u32 %v79, 4294901760
    %1477 = vmatpush1.msra.mxu0 %v1476
    %1478 = vmatprep.subr.mxu0 0.0
    %v1479 = vand.u32 %v80, 4294901760
    %1480 = vmatpush1.msra.mxu0 %v1479
    %1481 = vmatprep.subr.mxu0 0.0
    %v1482 = vand.u32 %v81, 4294901760
    %1483 = vmatpush1.msra.mxu0 %v1482
    %1484 = vmatprep.subr.mxu0 0.0
    %v1485 = vand.u32 %v82, 4294901760
    %1486 = vmatpush1.msra.mxu0 %v1485
    %1487 = vmatprep.subr.mxu0 0.0
    %v1488 = vand.u32 %v83, 4294901760
    %1489 = vmatpush1.msra.mxu0 %v1488
    %1490 = vmatprep.subr.mxu0 0.0
    %v1491 = vand.u32 %v84, 4294901760
    %1492 = vmatpush1.msra.mxu0 %v1491
    %1493 = vmatprep.subr.mxu0 0.0
    %v1494 = vand.u32 %v85, 4294901760
    %1495 = vmatpush1.msra.mxu0 %v1494
    %1496 = vmatprep.subr.mxu0 0.0
    %v1497 = vand.u32 %v86, 4294901760
    %1498 = vmatpush1.msra.mxu0 %v1497
    %1499 = vmatprep.subr.mxu0 0.0
    %v1500 = vand.u32 %v87, 4294901760
    %1501 = vmatpush1.msra.mxu0 %v1500
    %1502 = vmatprep.subr.mxu0 0.0
    %v1503 = vand.u32 %v88, 4294901760
    %1504 = vmatpush1.msra.mxu0 %v1503
    %1505 = vmatprep.subr.mxu0 0.0
    %v1506 = vand.u32 %v89, 4294901760
    %1507 = vmatpush1.msra.mxu0 %v1506
    %1508 = vmatprep.subr.mxu0 0.0
    %v1509 = vand.u32 %v90, 4294901760
    %1510 = vmatpush1.msra.mxu0 %v1509
    %1511 = vmatprep.subr.mxu0 0.0
    %v1512 = vand.u32 %v91, 4294901760
    %1513 = vmatpush1.msra.mxu0 %v1512
    %1514 = vmatprep.subr.mxu0 0.0
    %v1515 = vand.u32 %v92, 4294901760
    %1516 = vmatpush1.msra.mxu0 %v1515
    %1517 = vmatprep.subr.mxu0 0.0
    %v1518 = vand.u32 %v93, 4294901760
    %1519 = vmatpush1.msra.mxu0 %v1518
    %1520 = vmatprep.subr.mxu0 0.0
    %v1521 = vand.u32 %v94, 4294901760
    %1522 = vmatpush1.msra.mxu0 %v1521
    %1523 = vmatprep.subr.mxu0 0.0
    %v1524 = vand.u32 %v95, 4294901760
    %1525 = vmatpush1.msra.mxu0 %v1524
    %1526 = vmatprep.subr.mxu0 0.0
    %v1527 = vand.u32 %v96, 4294901760
    %1528 = vmatpush1.msra.mxu0 %v1527
    %1529 = vmatprep.subr.mxu0 0.0
    %v1530 = vand.u32 %v97, 4294901760
    %1531 = vmatpush1.msra.mxu0 %v1530
    %1532 = vmatprep.subr.mxu0 0.0
    %v1533 = vand.u32 %v98, 4294901760
    %1534 = vmatpush1.msra.mxu0 %v1533
    %1535 = vmatprep.subr.mxu0 0.0
    %v1536 = vand.u32 %v99, 4294901760
    %1537 = vmatpush1.msra.mxu0 %v1536
    %1538 = vmatprep.subr.mxu0 0.0
    %v1539 = vand.u32 %v100, 4294901760
    %1540 = vmatpush1.msra.mxu0 %v1539
    %1541 = vmatprep.subr.mxu0 0.0
    %v1542 = vand.u32 %v101, 4294901760
    %1543 = vmatpush1.msra.mxu0 %v1542
    %1544 = vmatprep.subr.mxu0 0.0
    %v1545 = vand.u32 %v102, 4294901760
    %1546 = vmatpush1.msra.mxu0 %v1545
    %1547 = vmatprep.subr.mxu0 0.0
    %v1548 = vand.u32 %v103, 4294901760
    %1549 = vmatpush1.msra.mxu0 %v1548
    %1550 = vmatprep.subr.mxu0 0.0
    %v1551 = vand.u32 %v104, 4294901760
    %1552 = vmatpush1.msra.mxu0 %v1551
    %1553 = vmatprep.subr.mxu0 0.0
    %v1554 = vand.u32 %v105, 4294901760
    %1555 = vmatpush1.msra.mxu0 %v1554
    %1556 = vmatprep.subr.mxu0 0.0
    %v1557 = vand.u32 %v106, 4294901760
    %1558 = vmatpush1.msra.mxu0 %v1557
    %v1559 = vand.u32 %v118, 4294901760
    %v1560 = vsub.f32 %v118, %v1559
    %v1561 = vand.u32 %v1560, 4294901760
    %1562 = vmatprep.mubr.f32.mxu0 %v1561
    %v1563 = vand.u32 %v117, 4294901760
    %v1564 = vsub.f32 %v117, %v1563
    %v1565 = vand.u32 %v1564, 4294901760
    %1566 = vmatmul.mubr.f32.gmra.mrb[0].mxu0 %v1565
    %v1567 = vpop.f32.mrb[0].mxu0
    %v1568 = vadd.f32 %v1460, %v1567
    %v1569 = vpop.f32.mrb[0].mxu0
    %1570 = vdwg.mxu0
    %1571 = vmatprep.subr.mxu0 0.0
    %v1572 = vand.u32 %v75, 4294901760
    %v1573 = vsub.f32 %v75, %v1572
    %v1574 = vand.u32 %v1573, 4294901760
    %1575 = vmatpush1.msra.mxu0 %v1574
    %1576 = vmatprep.subr.mxu0 0.0
    %v1577 = vand.u32 %v76, 4294901760
    %v1578 = vsub.f32 %v76, %v1577
    %v1579 = vand.u32 %v1578, 4294901760
    %1580 = vmatpush1.msra.mxu0 %v1579
    %1581 = vmatprep.subr.mxu0 0.0
    %v1582 = vand.u32 %v77, 4294901760
    %v1583 = vsub.f32 %v77, %v1582
    %v1584 = vand.u32 %v1583, 4294901760
    %1585 = vmatpush1.msra.mxu0 %v1584
    %1586 = vmatprep.subr.mxu0 0.0
    %v1587 = vand.u32 %v78, 4294901760
    %v1588 = vsub.f32 %v78, %v1587
    %v1589 = vand.u32 %v1588, 4294901760
    %1590 = vmatpush1.msra.mxu0 %v1589
    %1591 = vmatprep.subr.mxu0 0.0
    %v1592 = vand.u32 %v79, 4294901760
    %v1593 = vsub.f32 %v79, %v1592
    %v1594 = vand.u32 %v1593, 4294901760
    %1595 = vmatpush1.msra.mxu0 %v1594
    %1596 = vmatprep.subr.mxu0 0.0
    %v1597 = vand.u32 %v80, 4294901760
    %v1598 = vsub.f32 %v80, %v1597
    %v1599 = vand.u32 %v1598, 4294901760
    %1600 = vmatpush1.msra.mxu0 %v1599
    %1601 = vmatprep.subr.mxu0 0.0
    %v1602 = vand.u32 %v81, 4294901760
    %v1603 = vsub.f32 %v81, %v1602
    %v1604 = vand.u32 %v1603, 4294901760
    %1605 = vmatpush1.msra.mxu0 %v1604
    %1606 = vmatprep.subr.mxu0 0.0
    %v1607 = vand.u32 %v82, 4294901760
    %v1608 = vsub.f32 %v82, %v1607
    %v1609 = vand.u32 %v1608, 4294901760
    %1610 = vmatpush1.msra.mxu0 %v1609
    %1611 = vmatprep.subr.mxu0 0.0
    %v1612 = vand.u32 %v83, 4294901760
    %v1613 = vsub.f32 %v83, %v1612
    %v1614 = vand.u32 %v1613, 4294901760
    %1615 = vmatpush1.msra.mxu0 %v1614
    %1616 = vmatprep.subr.mxu0 0.0
    %v1617 = vand.u32 %v84, 4294901760
    %v1618 = vsub.f32 %v84, %v1617
    %v1619 = vand.u32 %v1618, 4294901760
    %1620 = vmatpush1.msra.mxu0 %v1619
    %1621 = vmatprep.subr.mxu0 0.0
    %v1622 = vand.u32 %v85, 4294901760
    %v1623 = vsub.f32 %v85, %v1622
    %v1624 = vand.u32 %v1623, 4294901760
    %1625 = vmatpush1.msra.mxu0 %v1624
    %1626 = vmatprep.subr.mxu0 0.0
    %v1627 = vand.u32 %v86, 4294901760
    %v1628 = vsub.f32 %v86, %v1627
    %v1629 = vand.u32 %v1628, 4294901760
    %1630 = vmatpush1.msra.mxu0 %v1629
    %1631 = vmatprep.subr.mxu0 0.0
    %v1632 = vand.u32 %v87, 4294901760
    %v1633 = vsub.f32 %v87, %v1632
    %v1634 = vand.u32 %v1633, 4294901760
    %1635 = vmatpush1.msra.mxu0 %v1634
    %1636 = vmatprep.subr.mxu0 0.0
    %v1637 = vand.u32 %v88, 4294901760
    %v1638 = vsub.f32 %v88, %v1637
    %v1639 = vand.u32 %v1638, 4294901760
    %1640 = vmatpush1.msra.mxu0 %v1639
    %1641 = vmatprep.subr.mxu0 0.0
    %v1642 = vand.u32 %v89, 4294901760
    %v1643 = vsub.f32 %v89, %v1642
    %v1644 = vand.u32 %v1643, 4294901760
    %1645 = vmatpush1.msra.mxu0 %v1644
    %1646 = vmatprep.subr.mxu0 0.0
    %v1647 = vand.u32 %v90, 4294901760
    %v1648 = vsub.f32 %v90, %v1647
    %v1649 = vand.u32 %v1648, 4294901760
    %1650 = vmatpush1.msra.mxu0 %v1649
    %1651 = vmatprep.subr.mxu0 0.0
    %v1652 = vand.u32 %v91, 4294901760
    %v1653 = vsub.f32 %v91, %v1652
    %v1654 = vand.u32 %v1653, 4294901760
    %1655 = vmatpush1.msra.mxu0 %v1654
    %1656 = vmatprep.subr.mxu0 0.0
    %v1657 = vand.u32 %v92, 4294901760
    %v1658 = vsub.f32 %v92, %v1657
    %v1659 = vand.u32 %v1658, 4294901760
    %1660 = vmatpush1.msra.mxu0 %v1659
    %1661 = vmatprep.subr.mxu0 0.0
    %v1662 = vand.u32 %v93, 4294901760
    %v1663 = vsub.f32 %v93, %v1662
    %v1664 = vand.u32 %v1663, 4294901760
    %1665 = vmatpush1.msra.mxu0 %v1664
    %1666 = vmatprep.subr.mxu0 0.0
    %v1667 = vand.u32 %v94, 4294901760
    %v1668 = vsub.f32 %v94, %v1667
    %v1669 = vand.u32 %v1668, 4294901760
    %1670 = vmatpush1.msra.mxu0 %v1669
    %1671 = vmatprep.subr.mxu0 0.0
    %v1672 = vand.u32 %v95, 4294901760
    %v1673 = vsub.f32 %v95, %v1672
    %v1674 = vand.u32 %v1673, 4294901760
    %1675 = vmatpush1.msra.mxu0 %v1674
    %1676 = vmatprep.subr.mxu0 0.0
    %v1677 = vand.u32 %v96, 4294901760
    %v1678 = vsub.f32 %v96, %v1677
    %v1679 = vand.u32 %v1678, 4294901760
    %1680 = vmatpush1.msra.mxu0 %v1679
    %1681 = vmatprep.subr.mxu0 0.0
    %v1682 = vand.u32 %v97, 4294901760
    %v1683 = vsub.f32 %v97, %v1682
    %v1684 = vand.u32 %v1683, 4294901760
    %1685 = vmatpush1.msra.mxu0 %v1684
    %1686 = vmatprep.subr.mxu0 0.0
    %v1687 = vand.u32 %v98, 4294901760
    %v1688 = vsub.f32 %v98, %v1687
    %v1689 = vand.u32 %v1688, 4294901760
    %1690 = vmatpush1.msra.mxu0 %v1689
    %1691 = vmatprep.subr.mxu0 0.0
    %v1692 = vand.u32 %v99, 4294901760
    %v1693 = vsub.f32 %v99, %v1692
    %v1694 = vand.u32 %v1693, 4294901760
    %1695 = vmatpush1.msra.mxu0 %v1694
    %1696 = vmatprep.subr.mxu0 0.0
    %v1697 = vand.u32 %v100, 4294901760
    %v1698 = vsub.f32 %v100, %v1697
    %v1699 = vand.u32 %v1698, 4294901760
    %1700 = vmatpush1.msra.mxu0 %v1699
    %1701 = vmatprep.subr.mxu0 0.0
    %v1702 = vand.u32 %v101, 4294901760
    %v1703 = vsub.f32 %v101, %v1702
    %v1704 = vand.u32 %v1703, 4294901760
    %1705 = vmatpush1.msra.mxu0 %v1704
    %1706 = vmatprep.subr.mxu0 0.0
    %v1707 = vand.u32 %v102, 4294901760
    %v1708 = vsub.f32 %v102, %v1707
    %v1709 = vand.u32 %v1708, 4294901760
    %1710 = vmatpush1.msra.mxu0 %v1709
    %1711 = vmatprep.subr.mxu0 0.0
    %v1712 = vand.u32 %v103, 4294901760
    %v1713 = vsub.f32 %v103, %v1712
    %v1714 = vand.u32 %v1713, 4294901760
    %1715 = vmatpush1.msra.mxu0 %v1714
    %1716 = vmatprep.subr.mxu0 0.0
    %v1717 = vand.u32 %v104, 4294901760
    %v1718 = vsub.f32 %v104, %v1717
    %v1719 = vand.u32 %v1718, 4294901760
    %1720 = vmatpush1.msra.mxu0 %v1719
    %1721 = vmatprep.subr.mxu0 0.0
    %v1722 = vand.u32 %v105, 4294901760
    %v1723 = vsub.f32 %v105, %v1722
    %v1724 = vand.u32 %v1723, 4294901760
    %1725 = vmatpush1.msra.mxu0 %v1724
    %1726 = vmatprep.subr.mxu0 0.0
    %v1727 = vand.u32 %v106, 4294901760
    %v1728 = vsub.f32 %v106, %v1727
    %v1729 = vand.u32 %v1728, 4294901760
    %1730 = vmatpush1.msra.mxu0 %v1729
    %v1731 = vand.u32 %v118, 4294901760
    %1732 = vmatprep.mubr.f32.mxu0 %v1731
    %v1733 = vand.u32 %v117, 4294901760
    %1734 = vmatmul.mubr.f32.gmra.mrb[0].mxu0 %v1733
    %v1735 = vpop.f32.mrb[0].mxu0
    %v1736 = vadd.f32 %v1568, %v1735
    %v1737 = vpop.f32.mrb[0].mxu0
    %1738 = vdwg.mxu0
    %1739 = vmatprep.subr.mxu0 0.0
    %v1740 = vand.u32 %v75, 4294901760
    %1741 = vmatpush1.msra.mxu0 %v1740
    %1742 = vmatprep.subr.mxu0 0.0
    %v1743 = vand.u32 %v76, 4294901760
    %1744 = vmatpush1.msra.mxu0 %v1743
    %1745 = vmatprep.subr.mxu0 0.0
    %v1746 = vand.u32 %v77, 4294901760
    %1747 = vmatpush1.msra.mxu0 %v1746
    %1748 = vmatprep.subr.mxu0 0.0
    %v1749 = vand.u32 %v78, 4294901760
    %1750 = vmatpush1.msra.mxu0 %v1749
    %1751 = vmatprep.subr.mxu0 0.0
    %v1752 = vand.u32 %v79, 4294901760
    %1753 = vmatpush1.msra.mxu0 %v1752
    %1754 = vmatprep.subr.mxu0 0.0
    %v1755 = vand.u32 %v80, 4294901760
    %1756 = vmatpush1.msra.mxu0 %v1755
    %1757 = vmatprep.subr.mxu0 0.0
    %v1758 = vand.u32 %v81, 4294901760
    %1759 = vmatpush1.msra.mxu0 %v1758
    %1760 = vmatprep.subr.mxu0 0.0
    %v1761 = vand.u32 %v82, 4294901760
    %1762 = vmatpush1.msra.mxu0 %v1761
    %1763 = vmatprep.subr.mxu0 0.0
    %v1764 = vand.u32 %v83, 4294901760
    %1765 = vmatpush1.msra.mxu0 %v1764
    %1766 = vmatprep.subr.mxu0 0.0
    %v1767 = vand.u32 %v84, 4294901760
    %1768 = vmatpush1.msra.mxu0 %v1767
    %1769 = vmatprep.subr.mxu0 0.0
    %v1770 = vand.u32 %v85, 4294901760
    %1771 = vmatpush1.msra.mxu0 %v1770
    %1772 = vmatprep.subr.mxu0 0.0
    %v1773 = vand.u32 %v86, 4294901760
    %1774 = vmatpush1.msra.mxu0 %v1773
    %1775 = vmatprep.subr.mxu0 0.0
    %v1776 = vand.u32 %v87, 4294901760
    %1777 = vmatpush1.msra.mxu0 %v1776
    %1778 = vmatprep.subr.mxu0 0.0
    %v1779 = vand.u32 %v88, 4294901760
    %1780 = vmatpush1.msra.mxu0 %v1779
    %1781 = vmatprep.subr.mxu0 0.0
    %v1782 = vand.u32 %v89, 4294901760
    %1783 = vmatpush1.msra.mxu0 %v1782
    %1784 = vmatprep.subr.mxu0 0.0
    %v1785 = vand.u32 %v90, 4294901760
    %1786 = vmatpush1.msra.mxu0 %v1785
    %1787 = vmatprep.subr.mxu0 0.0
    %v1788 = vand.u32 %v91, 4294901760
    %1789 = vmatpush1.msra.mxu0 %v1788
    %1790 = vmatprep.subr.mxu0 0.0
    %v1791 = vand.u32 %v92, 4294901760
    %1792 = vmatpush1.msra.mxu0 %v1791
    %1793 = vmatprep.subr.mxu0 0.0
    %v1794 = vand.u32 %v93, 4294901760
    %1795 = vmatpush1.msra.mxu0 %v1794
    %1796 = vmatprep.subr.mxu0 0.0
    %v1797 = vand.u32 %v94, 4294901760
    %1798 = vmatpush1.msra.mxu0 %v1797
    %1799 = vmatprep.subr.mxu0 0.0
    %v1800 = vand.u32 %v95, 4294901760
    %1801 = vmatpush1.msra.mxu0 %v1800
    %1802 = vmatprep.subr.mxu0 0.0
    %v1803 = vand.u32 %v96, 4294901760
    %1804 = vmatpush1.msra.mxu0 %v1803
    %1805 = vmatprep.subr.mxu0 0.0
    %v1806 = vand.u32 %v97, 4294901760
    %1807 = vmatpush1.msra.mxu0 %v1806
    %1808 = vmatprep.subr.mxu0 0.0
    %v1809 = vand.u32 %v98, 4294901760
    %1810 = vmatpush1.msra.mxu0 %v1809
    %1811 = vmatprep.subr.mxu0 0.0
    %v1812 = vand.u32 %v99, 4294901760
    %1813 = vmatpush1.msra.mxu0 %v1812
    %1814 = vmatprep.subr.mxu0 0.0
    %v1815 = vand.u32 %v100, 4294901760
    %1816 = vmatpush1.msra.mxu0 %v1815
    %1817 = vmatprep.subr.mxu0 0.0
    %v1818 = vand.u32 %v101, 4294901760
    %1819 = vmatpush1.msra.mxu0 %v1818
    %1820 = vmatprep.subr.mxu0 0.0
    %v1821 = vand.u32 %v102, 4294901760
    %1822 = vmatpush1.msra.mxu0 %v1821
    %1823 = vmatprep.subr.mxu0 0.0
    %v1824 = vand.u32 %v103, 4294901760
    %1825 = vmatpush1.msra.mxu0 %v1824
    %1826 = vmatprep.subr.mxu0 0.0
    %v1827 = vand.u32 %v104, 4294901760
    %1828 = vmatpush1.msra.mxu0 %v1827
    %1829 = vmatprep.subr.mxu0 0.0
    %v1830 = vand.u32 %v105, 4294901760
    %1831 = vmatpush1.msra.mxu0 %v1830
    %1832 = vmatprep.subr.mxu0 0.0
    %v1833 = vand.u32 %v106, 4294901760
    %1834 = vmatpush1.msra.mxu0 %v1833
    %v1835 = vand.u32 %v118, 4294901760
    %1836 = vmatprep.mubr.f32.mxu0 %v1835
    %v1837 = vand.u32 %v117, 4294901760
    %1838 = vmatmul.mubr.f32.gmra.mrb[0].mxu0 %v1837
    %v1839 = vpop.f32.mrb[0].mxu0
    %v1840 = vadd.f32 %v1736, %v1839
    %v1841 = vpop.f32.mrb[0].mxu0
    %1842 = vdwg.mxu0
    %v1843 = vmul.f32 %v107, %v107
    %v1844 = vmul.f32 %v108, %v108
    %v1845 = vmul.f32 %v109, %v109
    %v1846 = vmul.f32 %v110, %v110
    %1847 = vmatprep.subr.mxu0 0.0
    %v1848 = vand.u32 %v43, 4294901760
    %1849 = vmatpush1.msra.mxu0 %v1848
    %1850 = vmatprep.subr.mxu0 0.0
    %v1851 = vand.u32 %v44, 4294901760
    %1852 = vmatpush1.msra.mxu0 %v1851
    %1853 = vmatprep.subr.mxu0 0.0
    %v1854 = vand.u32 %v45, 4294901760
    %1855 = vmatpush1.msra.mxu0 %v1854
    %1856 = vmatprep.subr.mxu0 0.0
    %v1857 = vand.u32 %v46, 4294901760
    %1858 = vmatpush1.msra.mxu0 %v1857
    %1859 = vmatprep.subr.mxu0 0.0
    %v1860 = vand.u32 %v47, 4294901760
    %1861 = vmatpush1.msra.mxu0 %v1860
    %1862 = vmatprep.subr.mxu0 0.0
    %v1863 = vand.u32 %v48, 4294901760
    %1864 = vmatpush1.msra.mxu0 %v1863
    %1865 = vmatprep.subr.mxu0 0.0
    %v1866 = vand.u32 %v49, 4294901760
    %1867 = vmatpush1.msra.mxu0 %v1866
    %1868 = vmatprep.subr.mxu0 0.0
    %v1869 = vand.u32 %v50, 4294901760
    %1870 = vmatpush1.msra.mxu0 %v1869
    %1871 = vmatprep.subr.mxu0 0.0
    %v1872 = vand.u32 %v51, 4294901760
    %1873 = vmatpush1.msra.mxu0 %v1872
    %1874 = vmatprep.subr.mxu0 0.0
    %v1875 = vand.u32 %v52, 4294901760
    %1876 = vmatpush1.msra.mxu0 %v1875
    %1877 = vmatprep.subr.mxu0 0.0
    %v1878 = vand.u32 %v53, 4294901760
    %1879 = vmatpush1.msra.mxu0 %v1878
    %1880 = vmatprep.subr.mxu0 0.0
    %v1881 = vand.u32 %v54, 4294901760
    %1882 = vmatpush1.msra.mxu0 %v1881
    %1883 = vmatprep.subr.mxu0 0.0
    %v1884 = vand.u32 %v55, 4294901760
    %1885 = vmatpush1.msra.mxu0 %v1884
    %1886 = vmatprep.subr.mxu0 0.0
    %v1887 = vand.u32 %v56, 4294901760
    %1888 = vmatpush1.msra.mxu0 %v1887
    %1889 = vmatprep.subr.mxu0 0.0
    %v1890 = vand.u32 %v57, 4294901760
    %1891 = vmatpush1.msra.mxu0 %v1890
    %1892 = vmatprep.subr.mxu0 0.0
    %v1893 = vand.u32 %v58, 4294901760
    %1894 = vmatpush1.msra.mxu0 %v1893
    %1895 = vmatprep.subr.mxu0 0.0
    %v1896 = vand.u32 %v59, 4294901760
    %1897 = vmatpush1.msra.mxu0 %v1896
    %1898 = vmatprep.subr.mxu0 0.0
    %v1899 = vand.u32 %v60, 4294901760
    %1900 = vmatpush1.msra.mxu0 %v1899
    %1901 = vmatprep.subr.mxu0 0.0
    %v1902 = vand.u32 %v61, 4294901760
    %1903 = vmatpush1.msra.mxu0 %v1902
    %1904 = vmatprep.subr.mxu0 0.0
    %v1905 = vand.u32 %v62, 4294901760
    %1906 = vmatpush1.msra.mxu0 %v1905
    %1907 = vmatprep.subr.mxu0 0.0
    %v1908 = vand.u32 %v63, 4294901760
    %1909 = vmatpush1.msra.mxu0 %v1908
    %1910 = vmatprep.subr.mxu0 0.0
    %v1911 = vand.u32 %v64, 4294901760
    %1912 = vmatpush1.msra.mxu0 %v1911
    %1913 = vmatprep.subr.mxu0 0.0
    %v1914 = vand.u32 %v65, 4294901760
    %1915 = vmatpush1.msra.mxu0 %v1914
    %1916 = vmatprep.subr.mxu0 0.0
    %v1917 = vand.u32 %v66, 4294901760
    %1918 = vmatpush1.msra.mxu0 %v1917
    %1919 = vmatprep.subr.mxu0 0.0
    %v1920 = vand.u32 %v67, 4294901760
    %1921 = vmatpush1.msra.mxu0 %v1920
    %1922 = vmatprep.subr.mxu0 0.0
    %v1923 = vand.u32 %v68, 4294901760
    %1924 = vmatpush1.msra.mxu0 %v1923
    %1925 = vmatprep.subr.mxu0 0.0
    %v1926 = vand.u32 %v69, 4294901760
    %1927 = vmatpush1.msra.mxu0 %v1926
    %1928 = vmatprep.subr.mxu0 0.0
    %v1929 = vand.u32 %v70, 4294901760
    %1930 = vmatpush1.msra.mxu0 %v1929
    %1931 = vmatprep.subr.mxu0 0.0
    %v1932 = vand.u32 %v71, 4294901760
    %1933 = vmatpush1.msra.mxu0 %v1932
    %1934 = vmatprep.subr.mxu0 0.0
    %v1935 = vand.u32 %v72, 4294901760
    %1936 = vmatpush1.msra.mxu0 %v1935
    %1937 = vmatprep.subr.mxu0 0.0
    %v1938 = vand.u32 %v73, 4294901760
    %1939 = vmatpush1.msra.mxu0 %v1938
    %1940 = vmatprep.subr.mxu0 0.0
    %v1941 = vand.u32 %v74, 4294901760
    %1942 = vmatpush1.msra.mxu0 %v1941
    %v1943 = vand.u32 %v1844, 4294901760
    %v1944 = vsub.f32 %v1844, %v1943
    %v1945 = vand.u32 %v1944, 4294901760
    %v1946 = vsub.f32 %v1944, %v1945
    %v1947 = vand.u32 %v1946, 4294901760
    %1948 = vmatprep.mubr.f32.mxu0 %v1947
    %v1949 = vand.u32 %v1843, 4294901760
    %v1950 = vsub.f32 %v1843, %v1949
    %v1951 = vand.u32 %v1950, 4294901760
    %v1952 = vsub.f32 %v1950, %v1951
    %v1953 = vand.u32 %v1952, 4294901760
    %1954 = vmatmul.mubr.f32.gmra.mrb[0].mxu0 %v1953
    %v1955 = vpop.f32.mrb[0].mxu0
    %v1956 = vadd.f32 0.0, %v1955
    %v1957 = vpop.f32.mrb[0].mxu0
    %1958 = vdwg.mxu0
    %1959 = vmatprep.subr.mxu0 0.0
    %v1960 = vand.u32 %v43, 4294901760
    %v1961 = vsub.f32 %v43, %v1960
    %v1962 = vand.u32 %v1961, 4294901760
    %v1963 = vsub.f32 %v1961, %v1962
    %v1964 = vand.u32 %v1963, 4294901760
    %1965 = vmatpush1.msra.mxu0 %v1964
    %1966 = vmatprep.subr.mxu0 0.0
    %v1967 = vand.u32 %v44, 4294901760
    %v1968 = vsub.f32 %v44, %v1967
    %v1969 = vand.u32 %v1968, 4294901760
    %v1970 = vsub.f32 %v1968, %v1969
    %v1971 = vand.u32 %v1970, 4294901760
    %1972 = vmatpush1.msra.mxu0 %v1971
    %1973 = vmatprep.subr.mxu0 0.0
    %v1974 = vand.u32 %v45, 4294901760
    %v1975 = vsub.f32 %v45, %v1974
    %v1976 = vand.u32 %v1975, 4294901760
    %v1977 = vsub.f32 %v1975, %v1976
    %v1978 = vand.u32 %v1977, 4294901760
    %1979 = vmatpush1.msra.mxu0 %v1978
    %1980 = vmatprep.subr.mxu0 0.0
    %v1981 = vand.u32 %v46, 4294901760
    %v1982 = vsub.f32 %v46, %v1981
    %v1983 = vand.u32 %v1982, 4294901760
    %v1984 = vsub.f32 %v1982, %v1983
    %v1985 = vand.u32 %v1984, 4294901760
    %1986 = vmatpush1.msra.mxu0 %v1985
    %1987 = vmatprep.subr.mxu0 0.0
    %v1988 = vand.u32 %v47, 4294901760
    %v1989 = vsub.f32 %v47, %v1988
    %v1990 = vand.u32 %v1989, 4294901760
    %v1991 = vsub.f32 %v1989, %v1990
    %v1992 = vand.u32 %v1991, 4294901760
    %1993 = vmatpush1.msra.mxu0 %v1992
    %1994 = vmatprep.subr.mxu0 0.0
    %v1995 = vand.u32 %v48, 4294901760
    %v1996 = vsub.f32 %v48, %v1995
    %v1997 = vand.u32 %v1996, 4294901760
    %v1998 = vsub.f32 %v1996, %v1997
    %v1999 = vand.u32 %v1998, 4294901760
    %2000 = vmatpush1.msra.mxu0 %v1999
    %2001 = vmatprep.subr.mxu0 0.0
    %v2002 = vand.u32 %v49, 4294901760
    %v2003 = vsub.f32 %v49, %v2002
    %v2004 = vand.u32 %v2003, 4294901760
    %v2005 = vsub.f32 %v2003, %v2004
    %v2006 = vand.u32 %v2005, 4294901760
    %2007 = vmatpush1.msra.mxu0 %v2006
    %2008 = vmatprep.subr.mxu0 0.0
    %v2009 = vand.u32 %v50, 4294901760
    %v2010 = vsub.f32 %v50, %v2009
    %v2011 = vand.u32 %v2010, 4294901760
    %v2012 = vsub.f32 %v2010, %v2011
    %v2013 = vand.u32 %v2012, 4294901760
    %2014 = vmatpush1.msra.mxu0 %v2013
    %2015 = vmatprep.subr.mxu0 0.0
    %v2016 = vand.u32 %v51, 4294901760
    %v2017 = vsub.f32 %v51, %v2016
    %v2018 = vand.u32 %v2017, 4294901760
    %v2019 = vsub.f32 %v2017, %v2018
    %v2020 = vand.u32 %v2019, 4294901760
    %2021 = vmatpush1.msra.mxu0 %v2020
    %2022 = vmatprep.subr.mxu0 0.0
    %v2023 = vand.u32 %v52, 4294901760
    %v2024 = vsub.f32 %v52, %v2023
    %v2025 = vand.u32 %v2024, 4294901760
    %v2026 = vsub.f32 %v2024, %v2025
    %v2027 = vand.u32 %v2026, 4294901760
    %2028 = vmatpush1.msra.mxu0 %v2027
    %2029 = vmatprep.subr.mxu0 0.0
    %v2030 = vand.u32 %v53, 4294901760
    %v2031 = vsub.f32 %v53, %v2030
    %v2032 = vand.u32 %v2031, 4294901760
    %v2033 = vsub.f32 %v2031, %v2032
    %v2034 = vand.u32 %v2033, 4294901760
    %2035 = vmatpush1.msra.mxu0 %v2034
    %2036 = vmatprep.subr.mxu0 0.0
    %v2037 = vand.u32 %v54, 4294901760
    %v2038 = vsub.f32 %v54, %v2037
    %v2039 = vand.u32 %v2038, 4294901760
    %v2040 = vsub.f32 %v2038, %v2039
    %v2041 = vand.u32 %v2040, 4294901760
    %2042 = vmatpush1.msra.mxu0 %v2041
    %2043 = vmatprep.subr.mxu0 0.0
    %v2044 = vand.u32 %v55, 4294901760
    %v2045 = vsub.f32 %v55, %v2044
    %v2046 = vand.u32 %v2045, 4294901760
    %v2047 = vsub.f32 %v2045, %v2046
    %v2048 = vand.u32 %v2047, 4294901760
    %2049 = vmatpush1.msra.mxu0 %v2048
    %2050 = vmatprep.subr.mxu0 0.0
    %v2051 = vand.u32 %v56, 4294901760
    %v2052 = vsub.f32 %v56, %v2051
    %v2053 = vand.u32 %v2052, 4294901760
    %v2054 = vsub.f32 %v2052, %v2053
    %v2055 = vand.u32 %v2054, 4294901760
    %2056 = vmatpush1.msra.mxu0 %v2055
    %2057 = vmatprep.subr.mxu0 0.0
    %v2058 = vand.u32 %v57, 4294901760
    %v2059 = vsub.f32 %v57, %v2058
    %v2060 = vand.u32 %v2059, 4294901760
    %v2061 = vsub.f32 %v2059, %v2060
    %v2062 = vand.u32 %v2061, 4294901760
    %2063 = vmatpush1.msra.mxu0 %v2062
    %2064 = vmatprep.subr.mxu0 0.0
    %v2065 = vand.u32 %v58, 4294901760
    %v2066 = vsub.f32 %v58, %v2065
    %v2067 = vand.u32 %v2066, 4294901760
    %v2068 = vsub.f32 %v2066, %v2067
    %v2069 = vand.u32 %v2068, 4294901760
    %2070 = vmatpush1.msra.mxu0 %v2069
    %2071 = vmatprep.subr.mxu0 0.0
    %v2072 = vand.u32 %v59, 4294901760
    %v2073 = vsub.f32 %v59, %v2072
    %v2074 = vand.u32 %v2073, 4294901760
    %v2075 = vsub.f32 %v2073, %v2074
    %v2076 = vand.u32 %v2075, 4294901760
    %2077 = vmatpush1.msra.mxu0 %v2076
    %2078 = vmatprep.subr.mxu0 0.0
    %v2079 = vand.u32 %v60, 4294901760
    %v2080 = vsub.f32 %v60, %v2079
    %v2081 = vand.u32 %v2080, 4294901760
    %v2082 = vsub.f32 %v2080, %v2081
    %v2083 = vand.u32 %v2082, 4294901760
    %2084 = vmatpush1.msra.mxu0 %v2083
    %2085 = vmatprep.subr.mxu0 0.0
    %v2086 = vand.u32 %v61, 4294901760
    %v2087 = vsub.f32 %v61, %v2086
    %v2088 = vand.u32 %v2087, 4294901760
    %v2089 = vsub.f32 %v2087, %v2088
    %v2090 = vand.u32 %v2089, 4294901760
    %2091 = vmatpush1.msra.mxu0 %v2090
    %2092 = vmatprep.subr.mxu0 0.0
    %v2093 = vand.u32 %v62, 4294901760
    %v2094 = vsub.f32 %v62, %v2093
    %v2095 = vand.u32 %v2094, 4294901760
    %v2096 = vsub.f32 %v2094, %v2095
    %v2097 = vand.u32 %v2096, 4294901760
    %2098 = vmatpush1.msra.mxu0 %v2097
    %2099 = vmatprep.subr.mxu0 0.0
    %v2100 = vand.u32 %v63, 4294901760
    %v2101 = vsub.f32 %v63, %v2100
    %v2102 = vand.u32 %v2101, 4294901760
    %v2103 = vsub.f32 %v2101, %v2102
    %v2104 = vand.u32 %v2103, 4294901760
    %2105 = vmatpush1.msra.mxu0 %v2104
    %2106 = vmatprep.subr.mxu0 0.0
    %v2107 = vand.u32 %v64, 4294901760
    %v2108 = vsub.f32 %v64, %v2107
    %v2109 = vand.u32 %v2108, 4294901760
    %v2110 = vsub.f32 %v2108, %v2109
    %v2111 = vand.u32 %v2110, 4294901760
    %2112 = vmatpush1.msra.mxu0 %v2111
    %2113 = vmatprep.subr.mxu0 0.0
    %v2114 = vand.u32 %v65, 4294901760
    %v2115 = vsub.f32 %v65, %v2114
    %v2116 = vand.u32 %v2115, 4294901760
    %v2117 = vsub.f32 %v2115, %v2116
    %v2118 = vand.u32 %v2117, 4294901760
    %2119 = vmatpush1.msra.mxu0 %v2118
    %2120 = vmatprep.subr.mxu0 0.0
    %v2121 = vand.u32 %v66, 4294901760
    %v2122 = vsub.f32 %v66, %v2121
    %v2123 = vand.u32 %v2122, 4294901760
    %v2124 = vsub.f32 %v2122, %v2123
    %v2125 = vand.u32 %v2124, 4294901760
    %2126 = vmatpush1.msra.mxu0 %v2125
    %2127 = vmatprep.subr.mxu0 0.0
    %v2128 = vand.u32 %v67, 4294901760
    %v2129 = vsub.f32 %v67, %v2128
    %v2130 = vand.u32 %v2129, 4294901760
    %v2131 = vsub.f32 %v2129, %v2130
    %v2132 = vand.u32 %v2131, 4294901760
    %2133 = vmatpush1.msra.mxu0 %v2132
    %2134 = vmatprep.subr.mxu0 0.0
    %v2135 = vand.u32 %v68, 4294901760
    %v2136 = vsub.f32 %v68, %v2135
    %v2137 = vand.u32 %v2136, 4294901760
    %v2138 = vsub.f32 %v2136, %v2137
    %v2139 = vand.u32 %v2138, 4294901760
    %2140 = vmatpush1.msra.mxu0 %v2139
    %2141 = vmatprep.subr.mxu0 0.0
    %v2142 = vand.u32 %v69, 4294901760
    %v2143 = vsub.f32 %v69, %v2142
    %v2144 = vand.u32 %v2143, 4294901760
    %v2145 = vsub.f32 %v2143, %v2144
    %v2146 = vand.u32 %v2145, 4294901760
    %2147 = vmatpush1.msra.mxu0 %v2146
    %2148 = vmatprep.subr.mxu0 0.0
    %v2149 = vand.u32 %v70, 4294901760
    %v2150 = vsub.f32 %v70, %v2149
    %v2151 = vand.u32 %v2150, 4294901760
    %v2152 = vsub.f32 %v2150, %v2151
    %v2153 = vand.u32 %v2152, 4294901760
    %2154 = vmatpush1.msra.mxu0 %v2153
    %2155 = vmatprep.subr.mxu0 0.0
    %v2156 = vand.u32 %v71, 4294901760
    %v2157 = vsub.f32 %v71, %v2156
    %v2158 = vand.u32 %v2157, 4294901760
    %v2159 = vsub.f32 %v2157, %v2158
    %v2160 = vand.u32 %v2159, 4294901760
    %2161 = vmatpush1.msra.mxu0 %v2160
    %2162 = vmatprep.subr.mxu0 0.0
    %v2163 = vand.u32 %v72, 4294901760
    %v2164 = vsub.f32 %v72, %v2163
    %v2165 = vand.u32 %v2164, 4294901760
    %v2166 = vsub.f32 %v2164, %v2165
    %v2167 = vand.u32 %v2166, 4294901760
    %2168 = vmatpush1.msra.mxu0 %v2167
    %2169 = vmatprep.subr.mxu0 0.0
    %v2170 = vand.u32 %v73, 4294901760
    %v2171 = vsub.f32 %v73, %v2170
    %v2172 = vand.u32 %v2171, 4294901760
    %v2173 = vsub.f32 %v2171, %v2172
    %v2174 = vand.u32 %v2173, 4294901760
    %2175 = vmatpush1.msra.mxu0 %v2174
    %2176 = vmatprep.subr.mxu0 0.0
    %v2177 = vand.u32 %v74, 4294901760
    %v2178 = vsub.f32 %v74, %v2177
    %v2179 = vand.u32 %v2178, 4294901760
    %v2180 = vsub.f32 %v2178, %v2179
    %v2181 = vand.u32 %v2180, 4294901760
    %2182 = vmatpush1.msra.mxu0 %v2181
    %v2183 = vand.u32 %v1844, 4294901760
    %2184 = vmatprep.mubr.f32.mxu0 %v2183
    %v2185 = vand.u32 %v1843, 4294901760
    %2186 = vmatmul.mubr.f32.gmra.mrb[0].mxu0 %v2185
    %v2187 = vpop.f32.mrb[0].mxu0
    %v2188 = vadd.f32 %v1956, %v2187
    %v2189 = vpop.f32.mrb[0].mxu0
    %2190 = vdwg.mxu0
    %2191 = vmatprep.subr.mxu0 0.0
    %v2192 = vand.u32 %v43, 4294901760
    %v2193 = vsub.f32 %v43, %v2192
    %2194 = vmatpush1.msra.mxu0 %v2193
    %2195 = vmatprep.subr.mxu0 0.0
    %v2196 = vand.u32 %v44, 4294901760
    %v2197 = vsub.f32 %v44, %v2196
    %2198 = vmatpush1.msra.mxu0 %v2197
    %2199 = vmatprep.subr.mxu0 0.0
    %v2200 = vand.u32 %v45, 4294901760
    %v2201 = vsub.f32 %v45, %v2200
    %2202 = vmatpush1.msra.mxu0 %v2201
    %2203 = vmatprep.subr.mxu0 0.0
    %v2204 = vand.u32 %v46, 4294901760
    %v2205 = vsub.f32 %v46, %v2204
    %2206 = vmatpush1.msra.mxu0 %v2205
    %2207 = vmatprep.subr.mxu0 0.0
    %v2208 = vand.u32 %v47, 4294901760
    %v2209 = vsub.f32 %v47, %v2208
    %2210 = vmatpush1.msra.mxu0 %v2209
    %2211 = vmatprep.subr.mxu0 0.0
    %v2212 = vand.u32 %v48, 4294901760
    %v2213 = vsub.f32 %v48, %v2212
    %2214 = vmatpush1.msra.mxu0 %v2213
    %2215 = vmatprep.subr.mxu0 0.0
    %v2216 = vand.u32 %v49, 4294901760
    %v2217 = vsub.f32 %v49, %v2216
    %2218 = vmatpush1.msra.mxu0 %v2217
    %2219 = vmatprep.subr.mxu0 0.0
    %v2220 = vand.u32 %v50, 4294901760
    %v2221 = vsub.f32 %v50, %v2220
    %2222 = vmatpush1.msra.mxu0 %v2221
    %2223 = vmatprep.subr.mxu0 0.0
    %v2224 = vand.u32 %v51, 4294901760
    %v2225 = vsub.f32 %v51, %v2224
    %2226 = vmatpush1.msra.mxu0 %v2225
    %2227 = vmatprep.subr.mxu0 0.0
    %v2228 = vand.u32 %v52, 4294901760
    %v2229 = vsub.f32 %v52, %v2228
    %2230 = vmatpush1.msra.mxu0 %v2229
    %2231 = vmatprep.subr.mxu0 0.0
    %v2232 = vand.u32 %v53, 4294901760
    %v2233 = vsub.f32 %v53, %v2232
    %2234 = vmatpush1.msra.mxu0 %v2233
    %2235 = vmatprep.subr.mxu0 0.0
    %v2236 = vand.u32 %v54, 4294901760
    %v2237 = vsub.f32 %v54, %v2236
    %2238 = vmatpush1.msra.mxu0 %v2237
    %2239 = vmatprep.subr.mxu0 0.0
    %v2240 = vand.u32 %v55, 4294901760
    %v2241 = vsub.f32 %v55, %v2240
    %2242 = vmatpush1.msra.mxu0 %v2241
    %2243 = vmatprep.subr.mxu0 0.0
    %v2244 = vand.u32 %v56, 4294901760
    %v2245 = vsub.f32 %v56, %v2244
    %2246 = vmatpush1.msra.mxu0 %v2245
    %2247 = vmatprep.subr.mxu0 0.0
    %v2248 = vand.u32 %v57, 4294901760
    %v2249 = vsub.f32 %v57, %v2248
    %2250 = vmatpush1.msra.mxu0 %v2249
    %2251 = vmatprep.subr.mxu0 0.0
    %v2252 = vand.u32 %v58, 4294901760
    %v2253 = vsub.f32 %v58, %v2252
    %2254 = vmatpush1.msra.mxu0 %v2253
    %2255 = vmatprep.subr.mxu0 0.0
    %v2256 = vand.u32 %v59, 4294901760
    %v2257 = vsub.f32 %v59, %v2256
    %2258 = vmatpush1.msra.mxu0 %v2257
    %2259 = vmatprep.subr.mxu0 0.0
    %v2260 = vand.u32 %v60, 4294901760
    %v2261 = vsub.f32 %v60, %v2260
    %2262 = vmatpush1.msra.mxu0 %v2261
    %2263 = vmatprep.subr.mxu0 0.0
    %v2264 = vand.u32 %v61, 4294901760
    %v2265 = vsub.f32 %v61, %v2264
    %2266 = vmatpush1.msra.mxu0 %v2265
    %2267 = vmatprep.subr.mxu0 0.0
    %v2268 = vand.u32 %v62, 4294901760
    %v2269 = vsub.f32 %v62, %v2268
    %2270 = vmatpush1.msra.mxu0 %v2269
    %2271 = vmatprep.subr.mxu0 0.0
    %v2272 = vand.u32 %v63, 4294901760
    %v2273 = vsub.f32 %v63, %v2272
    %2274 = vmatpush1.msra.mxu0 %v2273
    %2275 = vmatprep.subr.mxu0 0.0
    %v2276 = vand.u32 %v64, 4294901760
    %v2277 = vsub.f32 %v64, %v2276
    %2278 = vmatpush1.msra.mxu0 %v2277
    %2279 = vmatprep.subr.mxu0 0.0
    %v2280 = vand.u32 %v65, 4294901760
    %v2281 = vsub.f32 %v65, %v2280
    %2282 = vmatpush1.msra.mxu0 %v2281
    %2283 = vmatprep.subr.mxu0 0.0
    %v2284 = vand.u32 %v66, 4294901760
    %v2285 = vsub.f32 %v66, %v2284
    %2286 = vmatpush1.msra.mxu0 %v2285
    %2287 = vmatprep.subr.mxu0 0.0
    %v2288 = vand.u32 %v67, 4294901760
    %v2289 = vsub.f32 %v67, %v2288
    %2290 = vmatpush1.msra.mxu0 %v2289
    %2291 = vmatprep.subr.mxu0 0.0
    %v2292 = vand.u32 %v68, 4294901760
    %v2293 = vsub.f32 %v68, %v2292
    %2294 = vmatpush1.msra.mxu0 %v2293
    %2295 = vmatprep.subr.mxu0 0.0
    %v2296 = vand.u32 %v69, 4294901760
    %v2297 = vsub.f32 %v69, %v2296
    %2298 = vmatpush1.msra.mxu0 %v2297
    %2299 = vmatprep.subr.mxu0 0.0
    %v2300 = vand.u32 %v70, 4294901760
    %v2301 = vsub.f32 %v70, %v2300
    %2302 = vmatpush1.msra.mxu0 %v2301
    %2303 = vmatprep.subr.mxu0 0.0
    %v2304 = vand.u32 %v71, 4294901760
    %v2305 = vsub.f32 %v71, %v2304
    %2306 = vmatpush1.msra.mxu0 %v2305
    %2307 = vmatprep.subr.mxu0 0.0
    %v2308 = vand.u32 %v72, 4294901760
    %v2309 = vsub.f32 %v72, %v2308
    %2310 = vmatpush1.msra.mxu0 %v2309
    %2311 = vmatprep.subr.mxu0 0.0
    %v2312 = vand.u32 %v73, 4294901760
    %v2313 = vsub.f32 %v73, %v2312
    %2314 = vmatpush1.msra.mxu0 %v2313
    %2315 = vmatprep.subr.mxu0 0.0
    %v2316 = vand.u32 %v74, 4294901760
    %v2317 = vsub.f32 %v74, %v2316
    %2318 = vmatpush1.msra.mxu0 %v2317
    %v2319 = vand.u32 %v1844, 4294901760
    %v2320 = vsub.f32 %v1844, %v2319
    %2321 = vmatprep.mubr.f32.mxu0 %v2320
    %v2322 = vand.u32 %v1843, 4294901760
    %v2323 = vsub.f32 %v1843, %v2322
    %2324 = vmatmul.mubr.f32.gmra.mrb[0].mxu0 %v2323
    %v2325 = vpop.f32.mrb[0].mxu0
    %v2326 = vadd.f32 %v2188, %v2325
    %v2327 = vpop.f32.mrb[0].mxu0
    %2328 = vdwg.mxu0
    %2329 = vmatprep.subr.mxu0 0.0
    %v2330 = vand.u32 %v43, 4294901760
    %2331 = vmatpush1.msra.mxu0 %v2330
    %2332 = vmatprep.subr.mxu0 0.0
    %v2333 = vand.u32 %v44, 4294901760
    %2334 = vmatpush1.msra.mxu0 %v2333
    %2335 = vmatprep.subr.mxu0 0.0
    %v2336 = vand.u32 %v45, 4294901760
    %2337 = vmatpush1.msra.mxu0 %v2336
    %2338 = vmatprep.subr.mxu0 0.0
    %v2339 = vand.u32 %v46, 4294901760
    %2340 = vmatpush1.msra.mxu0 %v2339
    %2341 = vmatprep.subr.mxu0 0.0
    %v2342 = vand.u32 %v47, 4294901760
    %2343 = vmatpush1.msra.mxu0 %v2342
    %2344 = vmatprep.subr.mxu0 0.0
    %v2345 = vand.u32 %v48, 4294901760
    %2346 = vmatpush1.msra.mxu0 %v2345
    %2347 = vmatprep.subr.mxu0 0.0
    %v2348 = vand.u32 %v49, 4294901760
    %2349 = vmatpush1.msra.mxu0 %v2348
    %2350 = vmatprep.subr.mxu0 0.0
    %v2351 = vand.u32 %v50, 4294901760
    %2352 = vmatpush1.msra.mxu0 %v2351
    %2353 = vmatprep.subr.mxu0 0.0
    %v2354 = vand.u32 %v51, 4294901760
    %2355 = vmatpush1.msra.mxu0 %v2354
    %2356 = vmatprep.subr.mxu0 0.0
    %v2357 = vand.u32 %v52, 4294901760
    %2358 = vmatpush1.msra.mxu0 %v2357
    %2359 = vmatprep.subr.mxu0 0.0
    %v2360 = vand.u32 %v53, 4294901760
    %2361 = vmatpush1.msra.mxu0 %v2360
    %2362 = vmatprep.subr.mxu0 0.0
    %v2363 = vand.u32 %v54, 4294901760
    %2364 = vmatpush1.msra.mxu0 %v2363
    %2365 = vmatprep.subr.mxu0 0.0
    %v2366 = vand.u32 %v55, 4294901760
    %2367 = vmatpush1.msra.mxu0 %v2366
    %2368 = vmatprep.subr.mxu0 0.0
    %v2369 = vand.u32 %v56, 4294901760
    %2370 = vmatpush1.msra.mxu0 %v2369
    %2371 = vmatprep.subr.mxu0 0.0
    %v2372 = vand.u32 %v57, 4294901760
    %2373 = vmatpush1.msra.mxu0 %v2372
    %2374 = vmatprep.subr.mxu0 0.0
    %v2375 = vand.u32 %v58, 4294901760
    %2376 = vmatpush1.msra.mxu0 %v2375
    %2377 = vmatprep.subr.mxu0 0.0
    %v2378 = vand.u32 %v59, 4294901760
    %2379 = vmatpush1.msra.mxu0 %v2378
    %2380 = vmatprep.subr.mxu0 0.0
    %v2381 = vand.u32 %v60, 4294901760
    %2382 = vmatpush1.msra.mxu0 %v2381
    %2383 = vmatprep.subr.mxu0 0.0
    %v2384 = vand.u32 %v61, 4294901760
    %2385 = vmatpush1.msra.mxu0 %v2384
    %2386 = vmatprep.subr.mxu0 0.0
    %v2387 = vand.u32 %v62, 4294901760
    %2388 = vmatpush1.msra.mxu0 %v2387
    %2389 = vmatprep.subr.mxu0 0.0
    %v2390 = vand.u32 %v63, 4294901760
    %2391 = vmatpush1.msra.mxu0 %v2390
    %2392 = vmatprep.subr.mxu0 0.0
    %v2393 = vand.u32 %v64, 4294901760
    %2394 = vmatpush1.msra.mxu0 %v2393
    %2395 = vmatprep.subr.mxu0 0.0
    %v2396 = vand.u32 %v65, 4294901760
    %2397 = vmatpush1.msra.mxu0 %v2396
    %2398 = vmatprep.subr.mxu0 0.0
    %v2399 = vand.u32 %v66, 4294901760
    %2400 = vmatpush1.msra.mxu0 %v2399
    %2401 = vmatprep.subr.mxu0 0.0
    %v2402 = vand.u32 %v67, 4294901760
    %2403 = vmatpush1.msra.mxu0 %v2402
    %2404 = vmatprep.subr.mxu0 0.0
    %v2405 = vand.u32 %v68, 4294901760
    %2406 = vmatpush1.msra.mxu0 %v2405
    %2407 = vmatprep.subr.mxu0 0.0
    %v2408 = vand.u32 %v69, 4294901760
    %2409 = vmatpush1.msra.mxu0 %v2408
    %2410 = vmatprep.subr.mxu0 0.0
    %v2411 = vand.u32 %v70, 4294901760
    %2412 = vmatpush1.msra.mxu0 %v2411
    %2413 = vmatprep.subr.mxu0 0.0
    %v2414 = vand.u32 %v71, 4294901760
    %2415 = vmatpush1.msra.mxu0 %v2414
    %2416 = vmatprep.subr.mxu0 0.0
    %v2417 = vand.u32 %v72, 4294901760
    %2418 = vmatpush1.msra.mxu0 %v2417
    %2419 = vmatprep.subr.mxu0 0.0
    %v2420 = vand.u32 %v73, 4294901760
    %2421 = vmatpush1.msra.mxu0 %v2420
    %2422 = vmatprep.subr.mxu0 0.0
    %v2423 = vand.u32 %v74, 4294901760
    %2424 = vmatpush1.msra.mxu0 %v2423
    %v2425 = vand.u32 %v1844, 4294901760
    %v2426 = vsub.f32 %v1844, %v2425
    %v2427 = vand.u32 %v2426, 4294901760
    %2428 = vmatprep.mubr.f32.mxu0 %v2427
    %v2429 = vand.u32 %v1843, 4294901760
    %v2430 = vsub.f32 %v1843, %v2429
    %v2431 = vand.u32 %v2430, 4294901760
    %2432 = vmatmul.mubr.f32.gmra.mrb[0].mxu0 %v2431
    %v2433 = vpop.f32.mrb[0].mxu0
    %v2434 = vadd.f32 %v2326, %v2433
    %v2435 = vpop.f32.mrb[0].mxu0
    %2436 = vdwg.mxu0
    %2437 = vmatprep.subr.mxu0 0.0
    %v2438 = vand.u32 %v43, 4294901760
    %v2439 = vsub.f32 %v43, %v2438
    %v2440 = vand.u32 %v2439, 4294901760
    %2441 = vmatpush1.msra.mxu0 %v2440
    %2442 = vmatprep.subr.mxu0 0.0
    %v2443 = vand.u32 %v44, 4294901760
    %v2444 = vsub.f32 %v44, %v2443
    %v2445 = vand.u32 %v2444, 4294901760
    %2446 = vmatpush1.msra.mxu0 %v2445
    %2447 = vmatprep.subr.mxu0 0.0
    %v2448 = vand.u32 %v45, 4294901760
    %v2449 = vsub.f32 %v45, %v2448
    %v2450 = vand.u32 %v2449, 4294901760
    %2451 = vmatpush1.msra.mxu0 %v2450
    %2452 = vmatprep.subr.mxu0 0.0
    %v2453 = vand.u32 %v46, 4294901760
    %v2454 = vsub.f32 %v46, %v2453
    %v2455 = vand.u32 %v2454, 4294901760
    %2456 = vmatpush1.msra.mxu0 %v2455
    %2457 = vmatprep.subr.mxu0 0.0
    %v2458 = vand.u32 %v47, 4294901760
    %v2459 = vsub.f32 %v47, %v2458
    %v2460 = vand.u32 %v2459, 4294901760
    %2461 = vmatpush1.msra.mxu0 %v2460
    %2462 = vmatprep.subr.mxu0 0.0
    %v2463 = vand.u32 %v48, 4294901760
    %v2464 = vsub.f32 %v48, %v2463
    %v2465 = vand.u32 %v2464, 4294901760
    %2466 = vmatpush1.msra.mxu0 %v2465
    %2467 = vmatprep.subr.mxu0 0.0
    %v2468 = vand.u32 %v49, 4294901760
    %v2469 = vsub.f32 %v49, %v2468
    %v2470 = vand.u32 %v2469, 4294901760
    %2471 = vmatpush1.msra.mxu0 %v2470
    %2472 = vmatprep.subr.mxu0 0.0
    %v2473 = vand.u32 %v50, 4294901760
    %v2474 = vsub.f32 %v50, %v2473
    %v2475 = vand.u32 %v2474, 4294901760
    %2476 = vmatpush1.msra.mxu0 %v2475
    %2477 = vmatprep.subr.mxu0 0.0
    %v2478 = vand.u32 %v51, 4294901760
    %v2479 = vsub.f32 %v51, %v2478
    %v2480 = vand.u32 %v2479, 4294901760
    %2481 = vmatpush1.msra.mxu0 %v2480
    %2482 = vmatprep.subr.mxu0 0.0
    %v2483 = vand.u32 %v52, 4294901760
    %v2484 = vsub.f32 %v52, %v2483
    %v2485 = vand.u32 %v2484, 4294901760
    %2486 = vmatpush1.msra.mxu0 %v2485
    %2487 = vmatprep.subr.mxu0 0.0
    %v2488 = vand.u32 %v53, 4294901760
    %v2489 = vsub.f32 %v53, %v2488
    %v2490 = vand.u32 %v2489, 4294901760
    %2491 = vmatpush1.msra.mxu0 %v2490
    %2492 = vmatprep.subr.mxu0 0.0
    %v2493 = vand.u32 %v54, 4294901760
    %v2494 = vsub.f32 %v54, %v2493
    %v2495 = vand.u32 %v2494, 4294901760
    %2496 = vmatpush1.msra.mxu0 %v2495
    %2497 = vmatprep.subr.mxu0 0.0
    %v2498 = vand.u32 %v55, 4294901760
    %v2499 = vsub.f32 %v55, %v2498
    %v2500 = vand.u32 %v2499, 4294901760
    %2501 = vmatpush1.msra.mxu0 %v2500
    %2502 = vmatprep.subr.mxu0 0.0
    %v2503 = vand.u32 %v56, 4294901760
    %v2504 = vsub.f32 %v56, %v2503
    %v2505 = vand.u32 %v2504, 4294901760
    %2506 = vmatpush1.msra.mxu0 %v2505
    %2507 = vmatprep.subr.mxu0 0.0
    %v2508 = vand.u32 %v57, 4294901760
    %v2509 = vsub.f32 %v57, %v2508
    %v2510 = vand.u32 %v2509, 4294901760
    %2511 = vmatpush1.msra.mxu0 %v2510
    %2512 = vmatprep.subr.mxu0 0.0
    %v2513 = vand.u32 %v58, 4294901760
    %v2514 = vsub.f32 %v58, %v2513
    %v2515 = vand.u32 %v2514, 4294901760
    %2516 = vmatpush1.msra.mxu0 %v2515
    %2517 = vmatprep.subr.mxu0 0.0
    %v2518 = vand.u32 %v59, 4294901760
    %v2519 = vsub.f32 %v59, %v2518
    %v2520 = vand.u32 %v2519, 4294901760
    %2521 = vmatpush1.msra.mxu0 %v2520
    %2522 = vmatprep.subr.mxu0 0.0
    %v2523 = vand.u32 %v60, 4294901760
    %v2524 = vsub.f32 %v60, %v2523
    %v2525 = vand.u32 %v2524, 4294901760
    %2526 = vmatpush1.msra.mxu0 %v2525
    %2527 = vmatprep.subr.mxu0 0.0
    %v2528 = vand.u32 %v61, 4294901760
    %v2529 = vsub.f32 %v61, %v2528
    %v2530 = vand.u32 %v2529, 4294901760
    %2531 = vmatpush1.msra.mxu0 %v2530
    %2532 = vmatprep.subr.mxu0 0.0
    %v2533 = vand.u32 %v62, 4294901760
    %v2534 = vsub.f32 %v62, %v2533
    %v2535 = vand.u32 %v2534, 4294901760
    %2536 = vmatpush1.msra.mxu0 %v2535
    %2537 = vmatprep.subr.mxu0 0.0
    %v2538 = vand.u32 %v63, 4294901760
    %v2539 = vsub.f32 %v63, %v2538
    %v2540 = vand.u32 %v2539, 4294901760
    %2541 = vmatpush1.msra.mxu0 %v2540
    %2542 = vmatprep.subr.mxu0 0.0
    %v2543 = vand.u32 %v64, 4294901760
    %v2544 = vsub.f32 %v64, %v2543
    %v2545 = vand.u32 %v2544, 4294901760
    %2546 = vmatpush1.msra.mxu0 %v2545
    %2547 = vmatprep.subr.mxu0 0.0
    %v2548 = vand.u32 %v65, 4294901760
    %v2549 = vsub.f32 %v65, %v2548
    %v2550 = vand.u32 %v2549, 4294901760
    %2551 = vmatpush1.msra.mxu0 %v2550
    %2552 = vmatprep.subr.mxu0 0.0
    %v2553 = vand.u32 %v66, 4294901760
    %v2554 = vsub.f32 %v66, %v2553
    %v2555 = vand.u32 %v2554, 4294901760
    %2556 = vmatpush1.msra.mxu0 %v2555
    %2557 = vmatprep.subr.mxu0 0.0
    %v2558 = vand.u32 %v67, 4294901760
    %v2559 = vsub.f32 %v67, %v2558
    %v2560 = vand.u32 %v2559, 4294901760
    %2561 = vmatpush1.msra.mxu0 %v2560
    %2562 = vmatprep.subr.mxu0 0.0
    %v2563 = vand.u32 %v68, 4294901760
    %v2564 = vsub.f32 %v68, %v2563
    %v2565 = vand.u32 %v2564, 4294901760
    %2566 = vmatpush1.msra.mxu0 %v2565
    %2567 = vmatprep.subr.mxu0 0.0
    %v2568 = vand.u32 %v69, 4294901760
    %v2569 = vsub.f32 %v69, %v2568
    %v2570 = vand.u32 %v2569, 4294901760
    %2571 = vmatpush1.msra.mxu0 %v2570
    %2572 = vmatprep.subr.mxu0 0.0
    %v2573 = vand.u32 %v70, 4294901760
    %v2574 = vsub.f32 %v70, %v2573
    %v2575 = vand.u32 %v2574, 4294901760
    %2576 = vmatpush1.msra.mxu0 %v2575
    %2577 = vmatprep.subr.mxu0 0.0
    %v2578 = vand.u32 %v71, 4294901760
    %v2579 = vsub.f32 %v71, %v2578
    %v2580 = vand.u32 %v2579, 4294901760
    %2581 = vmatpush1.msra.mxu0 %v2580
    %2582 = vmatprep.subr.mxu0 0.0
    %v2583 = vand.u32 %v72, 4294901760
    %v2584 = vsub.f32 %v72, %v2583
    %v2585 = vand.u32 %v2584, 4294901760
    %2586 = vmatpush1.msra.mxu0 %v2585
    %2587 = vmatprep.subr.mxu0 0.0
    %v2588 = vand.u32 %v73, 4294901760
    %v2589 = vsub.f32 %v73, %v2588
    %v2590 = vand.u32 %v2589, 4294901760
    %2591 = vmatpush1.msra.mxu0 %v2590
    %2592 = vmatprep.subr.mxu0 0.0
    %v2593 = vand.u32 %v74, 4294901760
    %v2594 = vsub.f32 %v74, %v2593
    %v2595 = vand.u32 %v2594, 4294901760
    %2596 = vmatpush1.msra.mxu0 %v2595
    %v2597 = vand.u32 %v1844, 4294901760
    %2598 = vmatprep.mubr.f32.mxu0 %v2597
    %v2599 = vand.u32 %v1843, 4294901760
    %2600 = vmatmul.mubr.f32.gmra.mrb[0].mxu0 %v2599
    %v2601 = vpop.f32.mrb[0].mxu0
    %v2602 = vadd.f32 %v2434, %v2601
    %v2603 = vpop.f32.mrb[0].mxu0
    %2604 = vdwg.mxu0
    %2605 = vmatprep.subr.mxu0 0.0
    %v2606 = vand.u32 %v43, 4294901760
    %2607 = vmatpush1.msra.mxu0 %v2606
    %2608 = vmatprep.subr.mxu0 0.0
    %v2609 = vand.u32 %v44, 4294901760
    %2610 = vmatpush1.msra.mxu0 %v2609
    %2611 = vmatprep.subr.mxu0 0.0
    %v2612 = vand.u32 %v45, 4294901760
    %2613 = vmatpush1.msra.mxu0 %v2612
    %2614 = vmatprep.subr.mxu0 0.0
    %v2615 = vand.u32 %v46, 4294901760
    %2616 = vmatpush1.msra.mxu0 %v2615
    %2617 = vmatprep.subr.mxu0 0.0
    %v2618 = vand.u32 %v47, 4294901760
    %2619 = vmatpush1.msra.mxu0 %v2618
    %2620 = vmatprep.subr.mxu0 0.0
    %v2621 = vand.u32 %v48, 4294901760
    %2622 = vmatpush1.msra.mxu0 %v2621
    %2623 = vmatprep.subr.mxu0 0.0
    %v2624 = vand.u32 %v49, 4294901760
    %2625 = vmatpush1.msra.mxu0 %v2624
    %2626 = vmatprep.subr.mxu0 0.0
    %v2627 = vand.u32 %v50, 4294901760
    %2628 = vmatpush1.msra.mxu0 %v2627
    %2629 = vmatprep.subr.mxu0 0.0
    %v2630 = vand.u32 %v51, 4294901760
    %2631 = vmatpush1.msra.mxu0 %v2630
    %2632 = vmatprep.subr.mxu0 0.0
    %v2633 = vand.u32 %v52, 4294901760
    %2634 = vmatpush1.msra.mxu0 %v2633
    %2635 = vmatprep.subr.mxu0 0.0
    %v2636 = vand.u32 %v53, 4294901760
    %2637 = vmatpush1.msra.mxu0 %v2636
    %2638 = vmatprep.subr.mxu0 0.0
    %v2639 = vand.u32 %v54, 4294901760
    %2640 = vmatpush1.msra.mxu0 %v2639
    %2641 = vmatprep.subr.mxu0 0.0
    %v2642 = vand.u32 %v55, 4294901760
    %2643 = vmatpush1.msra.mxu0 %v2642
    %2644 = vmatprep.subr.mxu0 0.0
    %v2645 = vand.u32 %v56, 4294901760
    %2646 = vmatpush1.msra.mxu0 %v2645
    %2647 = vmatprep.subr.mxu0 0.0
    %v2648 = vand.u32 %v57, 4294901760
    %2649 = vmatpush1.msra.mxu0 %v2648
    %2650 = vmatprep.subr.mxu0 0.0
    %v2651 = vand.u32 %v58, 4294901760
    %2652 = vmatpush1.msra.mxu0 %v2651
    %2653 = vmatprep.subr.mxu0 0.0
    %v2654 = vand.u32 %v59, 4294901760
    %2655 = vmatpush1.msra.mxu0 %v2654
    %2656 = vmatprep.subr.mxu0 0.0
    %v2657 = vand.u32 %v60, 4294901760
    %2658 = vmatpush1.msra.mxu0 %v2657
    %2659 = vmatprep.subr.mxu0 0.0
    %v2660 = vand.u32 %v61, 4294901760
    %2661 = vmatpush1.msra.mxu0 %v2660
    %2662 = vmatprep.subr.mxu0 0.0
    %v2663 = vand.u32 %v62, 4294901760
    %2664 = vmatpush1.msra.mxu0 %v2663
    %2665 = vmatprep.subr.mxu0 0.0
    %v2666 = vand.u32 %v63, 4294901760
    %2667 = vmatpush1.msra.mxu0 %v2666
    %2668 = vmatprep.subr.mxu0 0.0
    %v2669 = vand.u32 %v64, 4294901760
    %2670 = vmatpush1.msra.mxu0 %v2669
    %2671 = vmatprep.subr.mxu0 0.0
    %v2672 = vand.u32 %v65, 4294901760
    %2673 = vmatpush1.msra.mxu0 %v2672
    %2674 = vmatprep.subr.mxu0 0.0
    %v2675 = vand.u32 %v66, 4294901760
    %2676 = vmatpush1.msra.mxu0 %v2675
    %2677 = vmatprep.subr.mxu0 0.0
    %v2678 = vand.u32 %v67, 4294901760
    %2679 = vmatpush1.msra.mxu0 %v2678
    %2680 = vmatprep.subr.mxu0 0.0
    %v2681 = vand.u32 %v68, 4294901760
    %2682 = vmatpush1.msra.mxu0 %v2681
    %2683 = vmatprep.subr.mxu0 0.0
    %v2684 = vand.u32 %v69, 4294901760
    %2685 = vmatpush1.msra.mxu0 %v2684
    %2686 = vmatprep.subr.mxu0 0.0
    %v2687 = vand.u32 %v70, 4294901760
    %2688 = vmatpush1.msra.mxu0 %v2687
    %2689 = vmatprep.subr.mxu0 0.0
    %v2690 = vand.u32 %v71, 4294901760
    %2691 = vmatpush1.msra.mxu0 %v2690
    %2692 = vmatprep.subr.mxu0 0.0
    %v2693 = vand.u32 %v72, 4294901760
    %2694 = vmatpush1.msra.mxu0 %v2693
    %2695 = vmatprep.subr.mxu0 0.0
    %v2696 = vand.u32 %v73, 4294901760
    %2697 = vmatpush1.msra.mxu0 %v2696
    %2698 = vmatprep.subr.mxu0 0.0
    %v2699 = vand.u32 %v74, 4294901760
    %2700 = vmatpush1.msra.mxu0 %v2699
    %v2701 = vand.u32 %v1844, 4294901760
    %2702 = vmatprep.mubr.f32.mxu0 %v2701
    %v2703 = vand.u32 %v1843, 4294901760
    %2704 = vmatmul.mubr.f32.gmra.mrb[0].mxu0 %v2703
    %v2705 = vpop.f32.mrb[0].mxu0
    %v2706 = vadd.f32 %v2602, %v2705
    %v2707 = vpop.f32.mrb[0].mxu0
    %2708 = vdwg.mxu0
    %2709 = vmatprep.subr.mxu0 0.0
    %v2710 = vand.u32 %v75, 4294901760
    %2711 = vmatpush1.msra.mxu0 %v2710
    %2712 = vmatprep.subr.mxu0 0.0
    %v2713 = vand.u32 %v76, 4294901760
    %2714 = vmatpush1.msra.mxu0 %v2713
    %2715 = vmatprep.subr.mxu0 0.0
    %v2716 = vand.u32 %v77, 4294901760
    %2717 = vmatpush1.msra.mxu0 %v2716
    %2718 = vmatprep.subr.mxu0 0.0
    %v2719 = vand.u32 %v78, 4294901760
    %2720 = vmatpush1.msra.mxu0 %v2719
    %2721 = vmatprep.subr.mxu0 0.0
    %v2722 = vand.u32 %v79, 4294901760
    %2723 = vmatpush1.msra.mxu0 %v2722
    %2724 = vmatprep.subr.mxu0 0.0
    %v2725 = vand.u32 %v80, 4294901760
    %2726 = vmatpush1.msra.mxu0 %v2725
    %2727 = vmatprep.subr.mxu0 0.0
    %v2728 = vand.u32 %v81, 4294901760
    %2729 = vmatpush1.msra.mxu0 %v2728
    %2730 = vmatprep.subr.mxu0 0.0
    %v2731 = vand.u32 %v82, 4294901760
    %2732 = vmatpush1.msra.mxu0 %v2731
    %2733 = vmatprep.subr.mxu0 0.0
    %v2734 = vand.u32 %v83, 4294901760
    %2735 = vmatpush1.msra.mxu0 %v2734
    %2736 = vmatprep.subr.mxu0 0.0
    %v2737 = vand.u32 %v84, 4294901760
    %2738 = vmatpush1.msra.mxu0 %v2737
    %2739 = vmatprep.subr.mxu0 0.0
    %v2740 = vand.u32 %v85, 4294901760
    %2741 = vmatpush1.msra.mxu0 %v2740
    %2742 = vmatprep.subr.mxu0 0.0
    %v2743 = vand.u32 %v86, 4294901760
    %2744 = vmatpush1.msra.mxu0 %v2743
    %2745 = vmatprep.subr.mxu0 0.0
    %v2746 = vand.u32 %v87, 4294901760
    %2747 = vmatpush1.msra.mxu0 %v2746
    %2748 = vmatprep.subr.mxu0 0.0
    %v2749 = vand.u32 %v88, 4294901760
    %2750 = vmatpush1.msra.mxu0 %v2749
    %2751 = vmatprep.subr.mxu0 0.0
    %v2752 = vand.u32 %v89, 4294901760
    %2753 = vmatpush1.msra.mxu0 %v2752
    %2754 = vmatprep.subr.mxu0 0.0
    %v2755 = vand.u32 %v90, 4294901760
    %2756 = vmatpush1.msra.mxu0 %v2755
    %2757 = vmatprep.subr.mxu0 0.0
    %v2758 = vand.u32 %v91, 4294901760
    %2759 = vmatpush1.msra.mxu0 %v2758
    %2760 = vmatprep.subr.mxu0 0.0
    %v2761 = vand.u32 %v92, 4294901760
    %2762 = vmatpush1.msra.mxu0 %v2761
    %2763 = vmatprep.subr.mxu0 0.0
    %v2764 = vand.u32 %v93, 4294901760
    %2765 = vmatpush1.msra.mxu0 %v2764
    %2766 = vmatprep.subr.mxu0 0.0
    %v2767 = vand.u32 %v94, 4294901760
    %2768 = vmatpush1.msra.mxu0 %v2767
    %2769 = vmatprep.subr.mxu0 0.0
    %v2770 = vand.u32 %v95, 4294901760
    %2771 = vmatpush1.msra.mxu0 %v2770
    %2772 = vmatprep.subr.mxu0 0.0
    %v2773 = vand.u32 %v96, 4294901760
    %2774 = vmatpush1.msra.mxu0 %v2773
    %2775 = vmatprep.subr.mxu0 0.0
    %v2776 = vand.u32 %v97, 4294901760
    %2777 = vmatpush1.msra.mxu0 %v2776
    %2778 = vmatprep.subr.mxu0 0.0
    %v2779 = vand.u32 %v98, 4294901760
    %2780 = vmatpush1.msra.mxu0 %v2779
    %2781 = vmatprep.subr.mxu0 0.0
    %v2782 = vand.u32 %v99, 4294901760
    %2783 = vmatpush1.msra.mxu0 %v2782
    %2784 = vmatprep.subr.mxu0 0.0
    %v2785 = vand.u32 %v100, 4294901760
    %2786 = vmatpush1.msra.mxu0 %v2785
    %2787 = vmatprep.subr.mxu0 0.0
    %v2788 = vand.u32 %v101, 4294901760
    %2789 = vmatpush1.msra.mxu0 %v2788
    %2790 = vmatprep.subr.mxu0 0.0
    %v2791 = vand.u32 %v102, 4294901760
    %2792 = vmatpush1.msra.mxu0 %v2791
    %2793 = vmatprep.subr.mxu0 0.0
    %v2794 = vand.u32 %v103, 4294901760
    %2795 = vmatpush1.msra.mxu0 %v2794
    %2796 = vmatprep.subr.mxu0 0.0
    %v2797 = vand.u32 %v104, 4294901760
    %2798 = vmatpush1.msra.mxu0 %v2797
    %2799 = vmatprep.subr.mxu0 0.0
    %v2800 = vand.u32 %v105, 4294901760
    %2801 = vmatpush1.msra.mxu0 %v2800
    %2802 = vmatprep.subr.mxu0 0.0
    %v2803 = vand.u32 %v106, 4294901760
    %2804 = vmatpush1.msra.mxu0 %v2803
    %v2805 = vand.u32 %v1846, 4294901760
    %v2806 = vsub.f32 %v1846, %v2805
    %v2807 = vand.u32 %v2806, 4294901760
    %v2808 = vsub.f32 %v2806, %v2807
    %v2809 = vand.u32 %v2808, 4294901760
    %2810 = vmatprep.mubr.f32.mxu0 %v2809
    %v2811 = vand.u32 %v1845, 4294901760
    %v2812 = vsub.f32 %v1845, %v2811
    %v2813 = vand.u32 %v2812, 4294901760
    %v2814 = vsub.f32 %v2812, %v2813
    %v2815 = vand.u32 %v2814, 4294901760
    %2816 = vmatmul.mubr.f32.gmra.mrb[0].mxu0 %v2815
    %v2817 = vpop.f32.mrb[0].mxu0
    %v2818 = vadd.f32 %v2706, %v2817
    %v2819 = vpop.f32.mrb[0].mxu0
    %2820 = vdwg.mxu0
    %2821 = vmatprep.subr.mxu0 0.0
    %v2822 = vand.u32 %v75, 4294901760
    %v2823 = vsub.f32 %v75, %v2822
    %v2824 = vand.u32 %v2823, 4294901760
    %v2825 = vsub.f32 %v2823, %v2824
    %v2826 = vand.u32 %v2825, 4294901760
    %2827 = vmatpush1.msra.mxu0 %v2826
    %2828 = vmatprep.subr.mxu0 0.0
    %v2829 = vand.u32 %v76, 4294901760
    %v2830 = vsub.f32 %v76, %v2829
    %v2831 = vand.u32 %v2830, 4294901760
    %v2832 = vsub.f32 %v2830, %v2831
    %v2833 = vand.u32 %v2832, 4294901760
    %2834 = vmatpush1.msra.mxu0 %v2833
    %2835 = vmatprep.subr.mxu0 0.0
    %v2836 = vand.u32 %v77, 4294901760
    %v2837 = vsub.f32 %v77, %v2836
    %v2838 = vand.u32 %v2837, 4294901760
    %v2839 = vsub.f32 %v2837, %v2838
    %v2840 = vand.u32 %v2839, 4294901760
    %2841 = vmatpush1.msra.mxu0 %v2840
    %2842 = vmatprep.subr.mxu0 0.0
    %v2843 = vand.u32 %v78, 4294901760
    %v2844 = vsub.f32 %v78, %v2843
    %v2845 = vand.u32 %v2844, 4294901760
    %v2846 = vsub.f32 %v2844, %v2845
    %v2847 = vand.u32 %v2846, 4294901760
    %2848 = vmatpush1.msra.mxu0 %v2847
    %2849 = vmatprep.subr.mxu0 0.0
    %v2850 = vand.u32 %v79, 4294901760
    %v2851 = vsub.f32 %v79, %v2850
    %v2852 = vand.u32 %v2851, 4294901760
    %v2853 = vsub.f32 %v2851, %v2852
    %v2854 = vand.u32 %v2853, 4294901760
    %2855 = vmatpush1.msra.mxu0 %v2854
    %2856 = vmatprep.subr.mxu0 0.0
    %v2857 = vand.u32 %v80, 4294901760
    %v2858 = vsub.f32 %v80, %v2857
    %v2859 = vand.u32 %v2858, 4294901760
    %v2860 = vsub.f32 %v2858, %v2859
    %v2861 = vand.u32 %v2860, 4294901760
    %2862 = vmatpush1.msra.mxu0 %v2861
    %2863 = vmatprep.subr.mxu0 0.0
    %v2864 = vand.u32 %v81, 4294901760
    %v2865 = vsub.f32 %v81, %v2864
    %v2866 = vand.u32 %v2865, 4294901760
    %v2867 = vsub.f32 %v2865, %v2866
    %v2868 = vand.u32 %v2867, 4294901760
    %2869 = vmatpush1.msra.mxu0 %v2868
    %2870 = vmatprep.subr.mxu0 0.0
    %v2871 = vand.u32 %v82, 4294901760
    %v2872 = vsub.f32 %v82, %v2871
    %v2873 = vand.u32 %v2872, 4294901760
    %v2874 = vsub.f32 %v2872, %v2873
    %v2875 = vand.u32 %v2874, 4294901760
    %2876 = vmatpush1.msra.mxu0 %v2875
    %2877 = vmatprep.subr.mxu0 0.0
    %v2878 = vand.u32 %v83, 4294901760
    %v2879 = vsub.f32 %v83, %v2878
    %v2880 = vand.u32 %v2879, 4294901760
    %v2881 = vsub.f32 %v2879, %v2880
    %v2882 = vand.u32 %v2881, 4294901760
    %2883 = vmatpush1.msra.mxu0 %v2882
    %2884 = vmatprep.subr.mxu0 0.0
    %v2885 = vand.u32 %v84, 4294901760
    %v2886 = vsub.f32 %v84, %v2885
    %v2887 = vand.u32 %v2886, 4294901760
    %v2888 = vsub.f32 %v2886, %v2887
    %v2889 = vand.u32 %v2888, 4294901760
    %2890 = vmatpush1.msra.mxu0 %v2889
    %2891 = vmatprep.subr.mxu0 0.0
    %v2892 = vand.u32 %v85, 4294901760
    %v2893 = vsub.f32 %v85, %v2892
    %v2894 = vand.u32 %v2893, 4294901760
    %v2895 = vsub.f32 %v2893, %v2894
    %v2896 = vand.u32 %v2895, 4294901760
    %2897 = vmatpush1.msra.mxu0 %v2896
    %2898 = vmatprep.subr.mxu0 0.0
    %v2899 = vand.u32 %v86, 4294901760
    %v2900 = vsub.f32 %v86, %v2899
    %v2901 = vand.u32 %v2900, 4294901760
    %v2902 = vsub.f32 %v2900, %v2901
    %v2903 = vand.u32 %v2902, 4294901760
    %2904 = vmatpush1.msra.mxu0 %v2903
    %2905 = vmatprep.subr.mxu0 0.0
    %v2906 = vand.u32 %v87, 4294901760
    %v2907 = vsub.f32 %v87, %v2906
    %v2908 = vand.u32 %v2907, 4294901760
    %v2909 = vsub.f32 %v2907, %v2908
    %v2910 = vand.u32 %v2909, 4294901760
    %2911 = vmatpush1.msra.mxu0 %v2910
    %2912 = vmatprep.subr.mxu0 0.0
    %v2913 = vand.u32 %v88, 4294901760
    %v2914 = vsub.f32 %v88, %v2913
    %v2915 = vand.u32 %v2914, 4294901760
    %v2916 = vsub.f32 %v2914, %v2915
    %v2917 = vand.u32 %v2916, 4294901760
    %2918 = vmatpush1.msra.mxu0 %v2917
    %2919 = vmatprep.subr.mxu0 0.0
    %v2920 = vand.u32 %v89, 4294901760
    %v2921 = vsub.f32 %v89, %v2920
    %v2922 = vand.u32 %v2921, 4294901760
    %v2923 = vsub.f32 %v2921, %v2922
    %v2924 = vand.u32 %v2923, 4294901760
    %2925 = vmatpush1.msra.mxu0 %v2924
    %2926 = vmatprep.subr.mxu0 0.0
    %v2927 = vand.u32 %v90, 4294901760
    %v2928 = vsub.f32 %v90, %v2927
    %v2929 = vand.u32 %v2928, 4294901760
    %v2930 = vsub.f32 %v2928, %v2929
    %v2931 = vand.u32 %v2930, 4294901760
    %2932 = vmatpush1.msra.mxu0 %v2931
    %2933 = vmatprep.subr.mxu0 0.0
    %v2934 = vand.u32 %v91, 4294901760
    %v2935 = vsub.f32 %v91, %v2934
    %v2936 = vand.u32 %v2935, 4294901760
    %v2937 = vsub.f32 %v2935, %v2936
    %v2938 = vand.u32 %v2937, 4294901760
    %2939 = vmatpush1.msra.mxu0 %v2938
    %2940 = vmatprep.subr.mxu0 0.0
    %v2941 = vand.u32 %v92, 4294901760
    %v2942 = vsub.f32 %v92, %v2941
    %v2943 = vand.u32 %v2942, 4294901760
    %v2944 = vsub.f32 %v2942, %v2943
    %v2945 = vand.u32 %v2944, 4294901760
    %2946 = vmatpush1.msra.mxu0 %v2945
    %2947 = vmatprep.subr.mxu0 0.0
    %v2948 = vand.u32 %v93, 4294901760
    %v2949 = vsub.f32 %v93, %v2948
    %v2950 = vand.u32 %v2949, 4294901760
    %v2951 = vsub.f32 %v2949, %v2950
    %v2952 = vand.u32 %v2951, 4294901760
    %2953 = vmatpush1.msra.mxu0 %v2952
    %2954 = vmatprep.subr.mxu0 0.0
    %v2955 = vand.u32 %v94, 4294901760
    %v2956 = vsub.f32 %v94, %v2955
    %v2957 = vand.u32 %v2956, 4294901760
    %v2958 = vsub.f32 %v2956, %v2957
    %v2959 = vand.u32 %v2958, 4294901760
    %2960 = vmatpush1.msra.mxu0 %v2959
    %2961 = vmatprep.subr.mxu0 0.0
    %v2962 = vand.u32 %v95, 4294901760
    %v2963 = vsub.f32 %v95, %v2962
    %v2964 = vand.u32 %v2963, 4294901760
    %v2965 = vsub.f32 %v2963, %v2964
    %v2966 = vand.u32 %v2965, 4294901760
    %2967 = vmatpush1.msra.mxu0 %v2966
    %2968 = vmatprep.subr.mxu0 0.0
    %v2969 = vand.u32 %v96, 4294901760
    %v2970 = vsub.f32 %v96, %v2969
    %v2971 = vand.u32 %v2970, 4294901760
    %v2972 = vsub.f32 %v2970, %v2971
    %v2973 = vand.u32 %v2972, 4294901760
    %2974 = vmatpush1.msra.mxu0 %v2973
    %2975 = vmatprep.subr.mxu0 0.0
    %v2976 = vand.u32 %v97, 4294901760
    %v2977 = vsub.f32 %v97, %v2976
    %v2978 = vand.u32 %v2977, 4294901760
    %v2979 = vsub.f32 %v2977, %v2978
    %v2980 = vand.u32 %v2979, 4294901760
    %2981 = vmatpush1.msra.mxu0 %v2980
    %2982 = vmatprep.subr.mxu0 0.0
    %v2983 = vand.u32 %v98, 4294901760
    %v2984 = vsub.f32 %v98, %v2983
    %v2985 = vand.u32 %v2984, 4294901760
    %v2986 = vsub.f32 %v2984, %v2985
    %v2987 = vand.u32 %v2986, 4294901760
    %2988 = vmatpush1.msra.mxu0 %v2987
    %2989 = vmatprep.subr.mxu0 0.0
    %v2990 = vand.u32 %v99, 4294901760
    %v2991 = vsub.f32 %v99, %v2990
    %v2992 = vand.u32 %v2991, 4294901760
    %v2993 = vsub.f32 %v2991, %v2992
    %v2994 = vand.u32 %v2993, 4294901760
    %2995 = vmatpush1.msra.mxu0 %v2994
    %2996 = vmatprep.subr.mxu0 0.0
    %v2997 = vand.u32 %v100, 4294901760
    %v2998 = vsub.f32 %v100, %v2997
    %v2999 = vand.u32 %v2998, 4294901760
    %v3000 = vsub.f32 %v2998, %v2999
    %v3001 = vand.u32 %v3000, 4294901760
    %3002 = vmatpush1.msra.mxu0 %v3001
    %3003 = vmatprep.subr.mxu0 0.0
    %v3004 = vand.u32 %v101, 4294901760
    %v3005 = vsub.f32 %v101, %v3004
    %v3006 = vand.u32 %v3005, 4294901760
    %v3007 = vsub.f32 %v3005, %v3006
    %v3008 = vand.u32 %v3007, 4294901760
    %3009 = vmatpush1.msra.mxu0 %v3008
    %3010 = vmatprep.subr.mxu0 0.0
    %v3011 = vand.u32 %v102, 4294901760
    %v3012 = vsub.f32 %v102, %v3011
    %v3013 = vand.u32 %v3012, 4294901760
    %v3014 = vsub.f32 %v3012, %v3013
    %v3015 = vand.u32 %v3014, 4294901760
    %3016 = vmatpush1.msra.mxu0 %v3015
    %3017 = vmatprep.subr.mxu0 0.0
    %v3018 = vand.u32 %v103, 4294901760
    %v3019 = vsub.f32 %v103, %v3018
    %v3020 = vand.u32 %v3019, 4294901760
    %v3021 = vsub.f32 %v3019, %v3020
    %v3022 = vand.u32 %v3021, 4294901760
    %3023 = vmatpush1.msra.mxu0 %v3022
    %3024 = vmatprep.subr.mxu0 0.0
    %v3025 = vand.u32 %v104, 4294901760
    %v3026 = vsub.f32 %v104, %v3025
    %v3027 = vand.u32 %v3026, 4294901760
    %v3028 = vsub.f32 %v3026, %v3027
    %v3029 = vand.u32 %v3028, 4294901760
    %3030 = vmatpush1.msra.mxu0 %v3029
    %3031 = vmatprep.subr.mxu0 0.0
    %v3032 = vand.u32 %v105, 4294901760
    %v3033 = vsub.f32 %v105, %v3032
    %v3034 = vand.u32 %v3033, 4294901760
    %v3035 = vsub.f32 %v3033, %v3034
    %v3036 = vand.u32 %v3035, 4294901760
    %3037 = vmatpush1.msra.mxu0 %v3036
    %3038 = vmatprep.subr.mxu0 0.0
    %v3039 = vand.u32 %v106, 4294901760
    %v3040 = vsub.f32 %v106, %v3039
    %v3041 = vand.u32 %v3040, 4294901760
    %v3042 = vsub.f32 %v3040, %v3041
    %v3043 = vand.u32 %v3042, 4294901760
    %3044 = vmatpush1.msra.mxu0 %v3043
    %v3045 = vand.u32 %v1846, 4294901760
    %3046 = vmatprep.mubr.f32.mxu0 %v3045
    %v3047 = vand.u32 %v1845, 4294901760
    %3048 = vmatmul.mubr.f32.gmra.mrb[0].mxu0 %v3047
    %v3049 = vpop.f32.mrb[0].mxu0
    %v3050 = vadd.f32 %v2818, %v3049
    %v3051 = vpop.f32.mrb[0].mxu0
    %3052 = vdwg.mxu0
    %3053 = vmatprep.subr.mxu0 0.0
    %v3054 = vand.u32 %v75, 4294901760
    %v3055 = vsub.f32 %v75, %v3054
    %3056 = vmatpush1.msra.mxu0 %v3055
    %3057 = vmatprep.subr.mxu0 0.0
    %v3058 = vand.u32 %v76, 4294901760
    %v3059 = vsub.f32 %v76, %v3058
    %3060 = vmatpush1.msra.mxu0 %v3059
    %3061 = vmatprep.subr.mxu0 0.0
    %v3062 = vand.u32 %v77, 4294901760
    %v3063 = vsub.f32 %v77, %v3062
    %3064 = vmatpush1.msra.mxu0 %v3063
    %3065 = vmatprep.subr.mxu0 0.0
    %v3066 = vand.u32 %v78, 4294901760
    %v3067 = vsub.f32 %v78, %v3066
    %3068 = vmatpush1.msra.mxu0 %v3067
    %3069 = vmatprep.subr.mxu0 0.0
    %v3070 = vand.u32 %v79, 4294901760
    %v3071 = vsub.f32 %v79, %v3070
    %3072 = vmatpush1.msra.mxu0 %v3071
    %3073 = vmatprep.subr.mxu0 0.0
    %v3074 = vand.u32 %v80, 4294901760
    %v3075 = vsub.f32 %v80, %v3074
    %3076 = vmatpush1.msra.mxu0 %v3075
    %3077 = vmatprep.subr.mxu0 0.0
    %v3078 = vand.u32 %v81, 4294901760
    %v3079 = vsub.f32 %v81, %v3078
    %3080 = vmatpush1.msra.mxu0 %v3079
    %3081 = vmatprep.subr.mxu0 0.0
    %v3082 = vand.u32 %v82, 4294901760
    %v3083 = vsub.f32 %v82, %v3082
    %3084 = vmatpush1.msra.mxu0 %v3083
    %3085 = vmatprep.subr.mxu0 0.0
    %v3086 = vand.u32 %v83, 4294901760
    %v3087 = vsub.f32 %v83, %v3086
    %3088 = vmatpush1.msra.mxu0 %v3087
    %3089 = vmatprep.subr.mxu0 0.0
    %v3090 = vand.u32 %v84, 4294901760
    %v3091 = vsub.f32 %v84, %v3090
    %3092 = vmatpush1.msra.mxu0 %v3091
    %3093 = vmatprep.subr.mxu0 0.0
    %v3094 = vand.u32 %v85, 4294901760
    %v3095 = vsub.f32 %v85, %v3094
    %3096 = vmatpush1.msra.mxu0 %v3095
    %3097 = vmatprep.subr.mxu0 0.0
    %v3098 = vand.u32 %v86, 4294901760
    %v3099 = vsub.f32 %v86, %v3098
    %3100 = vmatpush1.msra.mxu0 %v3099
    %3101 = vmatprep.subr.mxu0 0.0
    %v3102 = vand.u32 %v87, 4294901760
    %v3103 = vsub.f32 %v87, %v3102
    %3104 = vmatpush1.msra.mxu0 %v3103
    %3105 = vmatprep.subr.mxu0 0.0
    %v3106 = vand.u32 %v88, 4294901760
    %v3107 = vsub.f32 %v88, %v3106
    %3108 = vmatpush1.msra.mxu0 %v3107
    %3109 = vmatprep.subr.mxu0 0.0
    %v3110 = vand.u32 %v89, 4294901760
    %v3111 = vsub.f32 %v89, %v3110
    %3112 = vmatpush1.msra.mxu0 %v3111
    %3113 = vmatprep.subr.mxu0 0.0
    %v3114 = vand.u32 %v90, 4294901760
    %v3115 = vsub.f32 %v90, %v3114
    %3116 = vmatpush1.msra.mxu0 %v3115
    %3117 = vmatprep.subr.mxu0 0.0
    %v3118 = vand.u32 %v91, 4294901760
    %v3119 = vsub.f32 %v91, %v3118
    %3120 = vmatpush1.msra.mxu0 %v3119
    %3121 = vmatprep.subr.mxu0 0.0
    %v3122 = vand.u32 %v92, 4294901760
    %v3123 = vsub.f32 %v92, %v3122
    %3124 = vmatpush1.msra.mxu0 %v3123
    %3125 = vmatprep.subr.mxu0 0.0
    %v3126 = vand.u32 %v93, 4294901760
    %v3127 = vsub.f32 %v93, %v3126
    %3128 = vmatpush1.msra.mxu0 %v3127
    %3129 = vmatprep.subr.mxu0 0.0
    %v3130 = vand.u32 %v94, 4294901760
    %v3131 = vsub.f32 %v94, %v3130
    %3132 = vmatpush1.msra.mxu0 %v3131
    %3133 = vmatprep.subr.mxu0 0.0
    %v3134 = vand.u32 %v95, 4294901760
    %v3135 = vsub.f32 %v95, %v3134
    %3136 = vmatpush1.msra.mxu0 %v3135
    %3137 = vmatprep.subr.mxu0 0.0
    %v3138 = vand.u32 %v96, 4294901760
    %v3139 = vsub.f32 %v96, %v3138
    %3140 = vmatpush1.msra.mxu0 %v3139
    %3141 = vmatprep.subr.mxu0 0.0
    %v3142 = vand.u32 %v97, 4294901760
    %v3143 = vsub.f32 %v97, %v3142
    %3144 = vmatpush1.msra.mxu0 %v3143
    %3145 = vmatprep.subr.mxu0 0.0
    %v3146 = vand.u32 %v98, 4294901760
    %v3147 = vsub.f32 %v98, %v3146
    %3148 = vmatpush1.msra.mxu0 %v3147
    %3149 = vmatprep.subr.mxu0 0.0
    %v3150 = vand.u32 %v99, 4294901760
    %v3151 = vsub.f32 %v99, %v3150
    %3152 = vmatpush1.msra.mxu0 %v3151
    %3153 = vmatprep.subr.mxu0 0.0
    %v3154 = vand.u32 %v100, 4294901760
    %v3155 = vsub.f32 %v100, %v3154
    %3156 = vmatpush1.msra.mxu0 %v3155
    %3157 = vmatprep.subr.mxu0 0.0
    %v3158 = vand.u32 %v101, 4294901760
    %v3159 = vsub.f32 %v101, %v3158
    %3160 = vmatpush1.msra.mxu0 %v3159
    %3161 = vmatprep.subr.mxu0 0.0
    %v3162 = vand.u32 %v102, 4294901760
    %v3163 = vsub.f32 %v102, %v3162
    %3164 = vmatpush1.msra.mxu0 %v3163
    %3165 = vmatprep.subr.mxu0 0.0
    %v3166 = vand.u32 %v103, 4294901760
    %v3167 = vsub.f32 %v103, %v3166
    %3168 = vmatpush1.msra.mxu0 %v3167
    %3169 = vmatprep.subr.mxu0 0.0
    %v3170 = vand.u32 %v104, 4294901760
    %v3171 = vsub.f32 %v104, %v3170
    %3172 = vmatpush1.msra.mxu0 %v3171
    %3173 = vmatprep.subr.mxu0 0.0
    %v3174 = vand.u32 %v105, 4294901760
    %v3175 = vsub.f32 %v105, %v3174
    %3176 = vmatpush1.msra.mxu0 %v3175
    %3177 = vmatprep.subr.mxu0 0.0
    %v3178 = vand.u32 %v106, 4294901760
    %v3179 = vsub.f32 %v106, %v3178
    %3180 = vmatpush1.msra.mxu0 %v3179
    %v3181 = vand.u32 %v1846, 4294901760
    %v3182 = vsub.f32 %v1846, %v3181
    %3183 = vmatprep.mubr.f32.mxu0 %v3182
    %v3184 = vand.u32 %v1845, 4294901760
    %v3185 = vsub.f32 %v1845, %v3184
    %3186 = vmatmul.mubr.f32.gmra.mrb[0].mxu0 %v3185
    %v3187 = vpop.f32.mrb[0].mxu0
    %v3188 = vadd.f32 %v3050, %v3187
    %v3189 = vpop.f32.mrb[0].mxu0
    %3190 = vdwg.mxu0
    %3191 = vmatprep.subr.mxu0 0.0
    %v3192 = vand.u32 %v75, 4294901760
    %3193 = vmatpush1.msra.mxu0 %v3192
    %3194 = vmatprep.subr.mxu0 0.0
    %v3195 = vand.u32 %v76, 4294901760
    %3196 = vmatpush1.msra.mxu0 %v3195
    %3197 = vmatprep.subr.mxu0 0.0
    %v3198 = vand.u32 %v77, 4294901760
    %3199 = vmatpush1.msra.mxu0 %v3198
    %3200 = vmatprep.subr.mxu0 0.0
    %v3201 = vand.u32 %v78, 4294901760
    %3202 = vmatpush1.msra.mxu0 %v3201
    %3203 = vmatprep.subr.mxu0 0.0
    %v3204 = vand.u32 %v79, 4294901760
    %3205 = vmatpush1.msra.mxu0 %v3204
    %3206 = vmatprep.subr.mxu0 0.0
    %v3207 = vand.u32 %v80, 4294901760
    %3208 = vmatpush1.msra.mxu0 %v3207
    %3209 = vmatprep.subr.mxu0 0.0
    %v3210 = vand.u32 %v81, 4294901760
    %3211 = vmatpush1.msra.mxu0 %v3210
    %3212 = vmatprep.subr.mxu0 0.0
    %v3213 = vand.u32 %v82, 4294901760
    %3214 = vmatpush1.msra.mxu0 %v3213
    %3215 = vmatprep.subr.mxu0 0.0
    %v3216 = vand.u32 %v83, 4294901760
    %3217 = vmatpush1.msra.mxu0 %v3216
    %3218 = vmatprep.subr.mxu0 0.0
    %v3219 = vand.u32 %v84, 4294901760
    %3220 = vmatpush1.msra.mxu0 %v3219
    %3221 = vmatprep.subr.mxu0 0.0
    %v3222 = vand.u32 %v85, 4294901760
    %3223 = vmatpush1.msra.mxu0 %v3222
    %3224 = vmatprep.subr.mxu0 0.0
    %v3225 = vand.u32 %v86, 4294901760
    %3226 = vmatpush1.msra.mxu0 %v3225
    %3227 = vmatprep.subr.mxu0 0.0
    %v3228 = vand.u32 %v87, 4294901760
    %3229 = vmatpush1.msra.mxu0 %v3228
    %3230 = vmatprep.subr.mxu0 0.0
    %v3231 = vand.u32 %v88, 4294901760
    %3232 = vmatpush1.msra.mxu0 %v3231
    %3233 = vmatprep.subr.mxu0 0.0
    %v3234 = vand.u32 %v89, 4294901760
    %3235 = vmatpush1.msra.mxu0 %v3234
    %3236 = vmatprep.subr.mxu0 0.0
    %v3237 = vand.u32 %v90, 4294901760
    %3238 = vmatpush1.msra.mxu0 %v3237
    %3239 = vmatprep.subr.mxu0 0.0
    %v3240 = vand.u32 %v91, 4294901760
    %3241 = vmatpush1.msra.mxu0 %v3240
    %3242 = vmatprep.subr.mxu0 0.0
    %v3243 = vand.u32 %v92, 4294901760
    %3244 = vmatpush1.msra.mxu0 %v3243
    %3245 = vmatprep.subr.mxu0 0.0
    %v3246 = vand.u32 %v93, 4294901760
    %3247 = vmatpush1.msra.mxu0 %v3246
    %3248 = vmatprep.subr.mxu0 0.0
    %v3249 = vand.u32 %v94, 4294901760
    %3250 = vmatpush1.msra.mxu0 %v3249
    %3251 = vmatprep.subr.mxu0 0.0
    %v3252 = vand.u32 %v95, 4294901760
    %3253 = vmatpush1.msra.mxu0 %v3252
    %3254 = vmatprep.subr.mxu0 0.0
    %v3255 = vand.u32 %v96, 4294901760
    %3256 = vmatpush1.msra.mxu0 %v3255
    %3257 = vmatprep.subr.mxu0 0.0
    %v3258 = vand.u32 %v97, 4294901760
    %3259 = vmatpush1.msra.mxu0 %v3258
    %3260 = vmatprep.subr.mxu0 0.0
    %v3261 = vand.u32 %v98, 4294901760
    %3262 = vmatpush1.msra.mxu0 %v3261
    %3263 = vmatprep.subr.mxu0 0.0
    %v3264 = vand.u32 %v99, 4294901760
    %3265 = vmatpush1.msra.mxu0 %v3264
    %3266 = vmatprep.subr.mxu0 0.0
    %v3267 = vand.u32 %v100, 4294901760
    %3268 = vmatpush1.msra.mxu0 %v3267
    %3269 = vmatprep.subr.mxu0 0.0
    %v3270 = vand.u32 %v101, 4294901760
    %3271 = vmatpush1.msra.mxu0 %v3270
    %3272 = vmatprep.subr.mxu0 0.0
    %v3273 = vand.u32 %v102, 4294901760
    %3274 = vmatpush1.msra.mxu0 %v3273
    %3275 = vmatprep.subr.mxu0 0.0
    %v3276 = vand.u32 %v103, 4294901760
    %3277 = vmatpush1.msra.mxu0 %v3276
    %3278 = vmatprep.subr.mxu0 0.0
    %v3279 = vand.u32 %v104, 4294901760
    %3280 = vmatpush1.msra.mxu0 %v3279
    %3281 = vmatprep.subr.mxu0 0.0
    %v3282 = vand.u32 %v105, 4294901760
    %3283 = vmatpush1.msra.mxu0 %v3282
    %3284 = vmatprep.subr.mxu0 0.0
    %v3285 = vand.u32 %v106, 4294901760
    %3286 = vmatpush1.msra.mxu0 %v3285
    %v3287 = vand.u32 %v1846, 4294901760
    %v3288 = vsub.f32 %v1846, %v3287
    %v3289 = vand.u32 %v3288, 4294901760
    %3290 = vmatprep.mubr.f32.mxu0 %v3289
    %v3291 = vand.u32 %v1845, 4294901760
    %v3292 = vsub.f32 %v1845, %v3291
    %v3293 = vand.u32 %v3292, 4294901760
    %3294 = vmatmul.mubr.f32.gmra.mrb[0].mxu0 %v3293
    %v3295 = vpop.f32.mrb[0].mxu0
    %v3296 = vadd.f32 %v3188, %v3295
    %v3297 = vpop.f32.mrb[0].mxu0
    %3298 = vdwg.mxu0
    %3299 = vmatprep.subr.mxu0 0.0
    %v3300 = vand.u32 %v75, 4294901760
    %v3301 = vsub.f32 %v75, %v3300
    %v3302 = vand.u32 %v3301, 4294901760
    %3303 = vmatpush1.msra.mxu0 %v3302
    %3304 = vmatprep.subr.mxu0 0.0
    %v3305 = vand.u32 %v76, 4294901760
    %v3306 = vsub.f32 %v76, %v3305
    %v3307 = vand.u32 %v3306, 4294901760
    %3308 = vmatpush1.msra.mxu0 %v3307
    %3309 = vmatprep.subr.mxu0 0.0
    %v3310 = vand.u32 %v77, 4294901760
    %v3311 = vsub.f32 %v77, %v3310
    %v3312 = vand.u32 %v3311, 4294901760
    %3313 = vmatpush1.msra.mxu0 %v3312
    %3314 = vmatprep.subr.mxu0 0.0
    %v3315 = vand.u32 %v78, 4294901760
    %v3316 = vsub.f32 %v78, %v3315
    %v3317 = vand.u32 %v3316, 4294901760
    %3318 = vmatpush1.msra.mxu0 %v3317
    %3319 = vmatprep.subr.mxu0 0.0
    %v3320 = vand.u32 %v79, 4294901760
    %v3321 = vsub.f32 %v79, %v3320
    %v3322 = vand.u32 %v3321, 4294901760
    %3323 = vmatpush1.msra.mxu0 %v3322
    %3324 = vmatprep.subr.mxu0 0.0
    %v3325 = vand.u32 %v80, 4294901760
    %v3326 = vsub.f32 %v80, %v3325
    %v3327 = vand.u32 %v3326, 4294901760
    %3328 = vmatpush1.msra.mxu0 %v3327
    %3329 = vmatprep.subr.mxu0 0.0
    %v3330 = vand.u32 %v81, 4294901760
    %v3331 = vsub.f32 %v81, %v3330
    %v3332 = vand.u32 %v3331, 4294901760
    %3333 = vmatpush1.msra.mxu0 %v3332
    %3334 = vmatprep.subr.mxu0 0.0
    %v3335 = vand.u32 %v82, 4294901760
    %v3336 = vsub.f32 %v82, %v3335
    %v3337 = vand.u32 %v3336, 4294901760
    %3338 = vmatpush1.msra.mxu0 %v3337
    %3339 = vmatprep.subr.mxu0 0.0
    %v3340 = vand.u32 %v83, 4294901760
    %v3341 = vsub.f32 %v83, %v3340
    %v3342 = vand.u32 %v3341, 4294901760
    %3343 = vmatpush1.msra.mxu0 %v3342
    %3344 = vmatprep.subr.mxu0 0.0
    %v3345 = vand.u32 %v84, 4294901760
    %v3346 = vsub.f32 %v84, %v3345
    %v3347 = vand.u32 %v3346, 4294901760
    %3348 = vmatpush1.msra.mxu0 %v3347
    %3349 = vmatprep.subr.mxu0 0.0
    %v3350 = vand.u32 %v85, 4294901760
    %v3351 = vsub.f32 %v85, %v3350
    %v3352 = vand.u32 %v3351, 4294901760
    %3353 = vmatpush1.msra.mxu0 %v3352
    %3354 = vmatprep.subr.mxu0 0.0
    %v3355 = vand.u32 %v86, 4294901760
    %v3356 = vsub.f32 %v86, %v3355
    %v3357 = vand.u32 %v3356, 4294901760
    %3358 = vmatpush1.msra.mxu0 %v3357
    %3359 = vmatprep.subr.mxu0 0.0
    %v3360 = vand.u32 %v87, 4294901760
    %v3361 = vsub.f32 %v87, %v3360
    %v3362 = vand.u32 %v3361, 4294901760
    %3363 = vmatpush1.msra.mxu0 %v3362
    %3364 = vmatprep.subr.mxu0 0.0
    %v3365 = vand.u32 %v88, 4294901760
    %v3366 = vsub.f32 %v88, %v3365
    %v3367 = vand.u32 %v3366, 4294901760
    %3368 = vmatpush1.msra.mxu0 %v3367
    %3369 = vmatprep.subr.mxu0 0.0
    %v3370 = vand.u32 %v89, 4294901760
    %v3371 = vsub.f32 %v89, %v3370
    %v3372 = vand.u32 %v3371, 4294901760
    %3373 = vmatpush1.msra.mxu0 %v3372
    %3374 = vmatprep.subr.mxu0 0.0
    %v3375 = vand.u32 %v90, 4294901760
    %v3376 = vsub.f32 %v90, %v3375
    %v3377 = vand.u32 %v3376, 4294901760
    %3378 = vmatpush1.msra.mxu0 %v3377
    %3379 = vmatprep.subr.mxu0 0.0
    %v3380 = vand.u32 %v91, 4294901760
    %v3381 = vsub.f32 %v91, %v3380
    %v3382 = vand.u32 %v3381, 4294901760
    %3383 = vmatpush1.msra.mxu0 %v3382
    %3384 = vmatprep.subr.mxu0 0.0
    %v3385 = vand.u32 %v92, 4294901760
    %v3386 = vsub.f32 %v92, %v3385
    %v3387 = vand.u32 %v3386, 4294901760
    %3388 = vmatpush1.msra.mxu0 %v3387
    %3389 = vmatprep.subr.mxu0 0.0
    %v3390 = vand.u32 %v93, 4294901760
    %v3391 = vsub.f32 %v93, %v3390
    %v3392 = vand.u32 %v3391, 4294901760
    %3393 = vmatpush1.msra.mxu0 %v3392
    %3394 = vmatprep.subr.mxu0 0.0
    %v3395 = vand.u32 %v94, 4294901760
    %v3396 = vsub.f32 %v94, %v3395
    %v3397 = vand.u32 %v3396, 4294901760
    %3398 = vmatpush1.msra.mxu0 %v3397
    %3399 = vmatprep.subr.mxu0 0.0
    %v3400 = vand.u32 %v95, 4294901760
    %v3401 = vsub.f32 %v95, %v3400
    %v3402 = vand.u32 %v3401, 4294901760
    %3403 = vmatpush1.msra.mxu0 %v3402
    %3404 = vmatprep.subr.mxu0 0.0
    %v3405 = vand.u32 %v96, 4294901760
    %v3406 = vsub.f32 %v96, %v3405
    %v3407 = vand.u32 %v3406, 4294901760
    %3408 = vmatpush1.msra.mxu0 %v3407
    %3409 = vmatprep.subr.mxu0 0.0
    %v3410 = vand.u32 %v97, 4294901760
    %v3411 = vsub.f32 %v97, %v3410
    %v3412 = vand.u32 %v3411, 4294901760
    %3413 = vmatpush1.msra.mxu0 %v3412
    %3414 = vmatprep.subr.mxu0 0.0
    %v3415 = vand.u32 %v98, 4294901760
    %v3416 = vsub.f32 %v98, %v3415
    %v3417 = vand.u32 %v3416, 4294901760
    %3418 = vmatpush1.msra.mxu0 %v3417
    %3419 = vmatprep.subr.mxu0 0.0
    %v3420 = vand.u32 %v99, 4294901760
    %v3421 = vsub.f32 %v99, %v3420
    %v3422 = vand.u32 %v3421, 4294901760
    %3423 = vmatpush1.msra.mxu0 %v3422
    %3424 = vmatprep.subr.mxu0 0.0
    %v3425 = vand.u32 %v100, 4294901760
    %v3426 = vsub.f32 %v100, %v3425
    %v3427 = vand.u32 %v3426, 4294901760
    %3428 = vmatpush1.msra.mxu0 %v3427
    %3429 = vmatprep.subr.mxu0 0.0
    %v3430 = vand.u32 %v101, 4294901760
    %v3431 = vsub.f32 %v101, %v3430
    %v3432 = vand.u32 %v3431, 4294901760
    %3433 = vmatpush1.msra.mxu0 %v3432
    %3434 = vmatprep.subr.mxu0 0.0
    %v3435 = vand.u32 %v102, 4294901760
    %v3436 = vsub.f32 %v102, %v3435
    %v3437 = vand.u32 %v3436, 4294901760
    %3438 = vmatpush1.msra.mxu0 %v3437
    %3439 = vmatprep.subr.mxu0 0.0
    %v3440 = vand.u32 %v103, 4294901760
    %v3441 = vsub.f32 %v103, %v3440
    %v3442 = vand.u32 %v3441, 4294901760
    %3443 = vmatpush1.msra.mxu0 %v3442
    %3444 = vmatprep.subr.mxu0 0.0
    %v3445 = vand.u32 %v104, 4294901760
    %v3446 = vsub.f32 %v104, %v3445
    %v3447 = vand.u32 %v3446, 4294901760
    %3448 = vmatpush1.msra.mxu0 %v3447
    %3449 = vmatprep.subr.mxu0 0.0
    %v3450 = vand.u32 %v105, 4294901760
    %v3451 = vsub.f32 %v105, %v3450
    %v3452 = vand.u32 %v3451, 4294901760
    %3453 = vmatpush1.msra.mxu0 %v3452
    %3454 = vmatprep.subr.mxu0 0.0
    %v3455 = vand.u32 %v106, 4294901760
    %v3456 = vsub.f32 %v106, %v3455
    %v3457 = vand.u32 %v3456, 4294901760
    %3458 = vmatpush1.msra.mxu0 %v3457
    %v3459 = vand.u32 %v1846, 4294901760
    %3460 = vmatprep.mubr.f32.mxu0 %v3459
    %v3461 = vand.u32 %v1845, 4294901760
    %3462 = vmatmul.mubr.f32.gmra.mrb[0].mxu0 %v3461
    %v3463 = vpop.f32.mrb[0].mxu0
    %v3464 = vadd.f32 %v3296, %v3463
    %v3465 = vpop.f32.mrb[0].mxu0
    %3466 = vdwg.mxu0
    %3467 = vmatprep.subr.mxu0 0.0
    %v3468 = vand.u32 %v75, 4294901760
    %3469 = vmatpush1.msra.mxu0 %v3468
    %3470 = vmatprep.subr.mxu0 0.0
    %v3471 = vand.u32 %v76, 4294901760
    %3472 = vmatpush1.msra.mxu0 %v3471
    %3473 = vmatprep.subr.mxu0 0.0
    %v3474 = vand.u32 %v77, 4294901760
    %3475 = vmatpush1.msra.mxu0 %v3474
    %3476 = vmatprep.subr.mxu0 0.0
    %v3477 = vand.u32 %v78, 4294901760
    %3478 = vmatpush1.msra.mxu0 %v3477
    %3479 = vmatprep.subr.mxu0 0.0
    %v3480 = vand.u32 %v79, 4294901760
    %3481 = vmatpush1.msra.mxu0 %v3480
    %3482 = vmatprep.subr.mxu0 0.0
    %v3483 = vand.u32 %v80, 4294901760
    %3484 = vmatpush1.msra.mxu0 %v3483
    %3485 = vmatprep.subr.mxu0 0.0
    %v3486 = vand.u32 %v81, 4294901760
    %3487 = vmatpush1.msra.mxu0 %v3486
    %3488 = vmatprep.subr.mxu0 0.0
    %v3489 = vand.u32 %v82, 4294901760
    %3490 = vmatpush1.msra.mxu0 %v3489
    %3491 = vmatprep.subr.mxu0 0.0
    %v3492 = vand.u32 %v83, 4294901760
    %3493 = vmatpush1.msra.mxu0 %v3492
    %3494 = vmatprep.subr.mxu0 0.0
    %v3495 = vand.u32 %v84, 4294901760
    %3496 = vmatpush1.msra.mxu0 %v3495
    %3497 = vmatprep.subr.mxu0 0.0
    %v3498 = vand.u32 %v85, 4294901760
    %3499 = vmatpush1.msra.mxu0 %v3498
    %3500 = vmatprep.subr.mxu0 0.0
    %v3501 = vand.u32 %v86, 4294901760
    %3502 = vmatpush1.msra.mxu0 %v3501
    %3503 = vmatprep.subr.mxu0 0.0
    %v3504 = vand.u32 %v87, 4294901760
    %3505 = vmatpush1.msra.mxu0 %v3504
    %3506 = vmatprep.subr.mxu0 0.0
    %v3507 = vand.u32 %v88, 4294901760
    %3508 = vmatpush1.msra.mxu0 %v3507
    %3509 = vmatprep.subr.mxu0 0.0
    %v3510 = vand.u32 %v89, 4294901760
    %3511 = vmatpush1.msra.mxu0 %v3510
    %3512 = vmatprep.subr.mxu0 0.0
    %v3513 = vand.u32 %v90, 4294901760
    %3514 = vmatpush1.msra.mxu0 %v3513
    %3515 = vmatprep.subr.mxu0 0.0
    %v3516 = vand.u32 %v91, 4294901760
    %3517 = vmatpush1.msra.mxu0 %v3516
    %3518 = vmatprep.subr.mxu0 0.0
    %v3519 = vand.u32 %v92, 4294901760
    %3520 = vmatpush1.msra.mxu0 %v3519
    %3521 = vmatprep.subr.mxu0 0.0
    %v3522 = vand.u32 %v93, 4294901760
    %3523 = vmatpush1.msra.mxu0 %v3522
    %3524 = vmatprep.subr.mxu0 0.0
    %v3525 = vand.u32 %v94, 4294901760
    %3526 = vmatpush1.msra.mxu0 %v3525
    %3527 = vmatprep.subr.mxu0 0.0
    %v3528 = vand.u32 %v95, 4294901760
    %3529 = vmatpush1.msra.mxu0 %v3528
    %3530 = vmatprep.subr.mxu0 0.0
    %v3531 = vand.u32 %v96, 4294901760
    %3532 = vmatpush1.msra.mxu0 %v3531
    %3533 = vmatprep.subr.mxu0 0.0
    %v3534 = vand.u32 %v97, 4294901760
    %3535 = vmatpush1.msra.mxu0 %v3534
    %3536 = vmatprep.subr.mxu0 0.0
    %v3537 = vand.u32 %v98, 4294901760
    %3538 = vmatpush1.msra.mxu0 %v3537
    %3539 = vmatprep.subr.mxu0 0.0
    %v3540 = vand.u32 %v99, 4294901760
    %3541 = vmatpush1.msra.mxu0 %v3540
    %3542 = vmatprep.subr.mxu0 0.0
    %v3543 = vand.u32 %v100, 4294901760
    %3544 = vmatpush1.msra.mxu0 %v3543
    %3545 = vmatprep.subr.mxu0 0.0
    %v3546 = vand.u32 %v101, 4294901760
    %3547 = vmatpush1.msra.mxu0 %v3546
    %3548 = vmatprep.subr.mxu0 0.0
    %v3549 = vand.u32 %v102, 4294901760
    %3550 = vmatpush1.msra.mxu0 %v3549
    %3551 = vmatprep.subr.mxu0 0.0
    %v3552 = vand.u32 %v103, 4294901760
    %3553 = vmatpush1.msra.mxu0 %v3552
    %3554 = vmatprep.subr.mxu0 0.0
    %v3555 = vand.u32 %v104, 4294901760
    %3556 = vmatpush1.msra.mxu0 %v3555
    %3557 = vmatprep.subr.mxu0 0.0
    %v3558 = vand.u32 %v105, 4294901760
    %3559 = vmatpush1.msra.mxu0 %v3558
    %3560 = vmatprep.subr.mxu0 0.0
    %v3561 = vand.u32 %v106, 4294901760
    %3562 = vmatpush1.msra.mxu0 %v3561
    %v3563 = vand.u32 %v1846, 4294901760
    %3564 = vmatprep.mubr.f32.mxu0 %v3563
    %v3565 = vand.u32 %v1845, 4294901760
    %3566 = vmatmul.mubr.f32.gmra.mrb[0].mxu0 %v3565
    %v3567 = vpop.f32.mrb[0].mxu0
    %v3568 = vadd.f32 %v3464, %v3567
    %v3569 = vpop.f32.mrb[0].mxu0
    %3570 = vdwg.mxu0
    %v3571 = vmul.f32 %v111, %v111
    %v3572 = vmul.f32 %v112, %v112
    %v3573 = vmul.f32 %v113, %v113
    %v3574 = vmul.f32 %v114, %v114
    %3575 = vmatprep.subr.mxu0 0.0
    %v3576 = vand.u32 %v43, 4294901760
    %3577 = vmatpush1.msra.mxu0 %v3576
    %3578 = vmatprep.subr.mxu0 0.0
    %v3579 = vand.u32 %v44, 4294901760
    %3580 = vmatpush1.msra.mxu0 %v3579
    %3581 = vmatprep.subr.mxu0 0.0
    %v3582 = vand.u32 %v45, 4294901760
    %3583 = vmatpush1.msra.mxu0 %v3582
    %3584 = vmatprep.subr.mxu0 0.0
    %v3585 = vand.u32 %v46, 4294901760
    %3586 = vmatpush1.msra.mxu0 %v3585
    %3587 = vmatprep.subr.mxu0 0.0
    %v3588 = vand.u32 %v47, 4294901760
    %3589 = vmatpush1.msra.mxu0 %v3588
    %3590 = vmatprep.subr.mxu0 0.0
    %v3591 = vand.u32 %v48, 4294901760
    %3592 = vmatpush1.msra.mxu0 %v3591
    %3593 = vmatprep.subr.mxu0 0.0
    %v3594 = vand.u32 %v49, 4294901760
    %3595 = vmatpush1.msra.mxu0 %v3594
    %3596 = vmatprep.subr.mxu0 0.0
    %v3597 = vand.u32 %v50, 4294901760
    %3598 = vmatpush1.msra.mxu0 %v3597
    %3599 = vmatprep.subr.mxu0 0.0
    %v3600 = vand.u32 %v51, 4294901760
    %3601 = vmatpush1.msra.mxu0 %v3600
    %3602 = vmatprep.subr.mxu0 0.0
    %v3603 = vand.u32 %v52, 4294901760
    %3604 = vmatpush1.msra.mxu0 %v3603
    %3605 = vmatprep.subr.mxu0 0.0
    %v3606 = vand.u32 %v53, 4294901760
    %3607 = vmatpush1.msra.mxu0 %v3606
    %3608 = vmatprep.subr.mxu0 0.0
    %v3609 = vand.u32 %v54, 4294901760
    %3610 = vmatpush1.msra.mxu0 %v3609
    %3611 = vmatprep.subr.mxu0 0.0
    %v3612 = vand.u32 %v55, 4294901760
    %3613 = vmatpush1.msra.mxu0 %v3612
    %3614 = vmatprep.subr.mxu0 0.0
    %v3615 = vand.u32 %v56, 4294901760
    %3616 = vmatpush1.msra.mxu0 %v3615
    %3617 = vmatprep.subr.mxu0 0.0
    %v3618 = vand.u32 %v57, 4294901760
    %3619 = vmatpush1.msra.mxu0 %v3618
    %3620 = vmatprep.subr.mxu0 0.0
    %v3621 = vand.u32 %v58, 4294901760
    %3622 = vmatpush1.msra.mxu0 %v3621
    %3623 = vmatprep.subr.mxu0 0.0
    %v3624 = vand.u32 %v59, 4294901760
    %3625 = vmatpush1.msra.mxu0 %v3624
    %3626 = vmatprep.subr.mxu0 0.0
    %v3627 = vand.u32 %v60, 4294901760
    %3628 = vmatpush1.msra.mxu0 %v3627
    %3629 = vmatprep.subr.mxu0 0.0
    %v3630 = vand.u32 %v61, 4294901760
    %3631 = vmatpush1.msra.mxu0 %v3630
    %3632 = vmatprep.subr.mxu0 0.0
    %v3633 = vand.u32 %v62, 4294901760
    %3634 = vmatpush1.msra.mxu0 %v3633
    %3635 = vmatprep.subr.mxu0 0.0
    %v3636 = vand.u32 %v63, 4294901760
    %3637 = vmatpush1.msra.mxu0 %v3636
    %3638 = vmatprep.subr.mxu0 0.0
    %v3639 = vand.u32 %v64, 4294901760
    %3640 = vmatpush1.msra.mxu0 %v3639
    %3641 = vmatprep.subr.mxu0 0.0
    %v3642 = vand.u32 %v65, 4294901760
    %3643 = vmatpush1.msra.mxu0 %v3642
    %3644 = vmatprep.subr.mxu0 0.0
    %v3645 = vand.u32 %v66, 4294901760
    %3646 = vmatpush1.msra.mxu0 %v3645
    %3647 = vmatprep.subr.mxu0 0.0
    %v3648 = vand.u32 %v67, 4294901760
    %3649 = vmatpush1.msra.mxu0 %v3648
    %3650 = vmatprep.subr.mxu0 0.0
    %v3651 = vand.u32 %v68, 4294901760
    %3652 = vmatpush1.msra.mxu0 %v3651
    %3653 = vmatprep.subr.mxu0 0.0
    %v3654 = vand.u32 %v69, 4294901760
    %3655 = vmatpush1.msra.mxu0 %v3654
    %3656 = vmatprep.subr.mxu0 0.0
    %v3657 = vand.u32 %v70, 4294901760
    %3658 = vmatpush1.msra.mxu0 %v3657
    %3659 = vmatprep.subr.mxu0 0.0
    %v3660 = vand.u32 %v71, 4294901760
    %3661 = vmatpush1.msra.mxu0 %v3660
    %3662 = vmatprep.subr.mxu0 0.0
    %v3663 = vand.u32 %v72, 4294901760
    %3664 = vmatpush1.msra.mxu0 %v3663
    %3665 = vmatprep.subr.mxu0 0.0
    %v3666 = vand.u32 %v73, 4294901760
    %3667 = vmatpush1.msra.mxu0 %v3666
    %3668 = vmatprep.subr.mxu0 0.0
    %v3669 = vand.u32 %v74, 4294901760
    %3670 = vmatpush1.msra.mxu0 %v3669
    %v3671 = vand.u32 %v3572, 4294901760
    %v3672 = vsub.f32 %v3572, %v3671
    %v3673 = vand.u32 %v3672, 4294901760
    %v3674 = vsub.f32 %v3672, %v3673
    %v3675 = vand.u32 %v3674, 4294901760
    %3676 = vmatprep.mubr.f32.mxu0 %v3675
    %v3677 = vand.u32 %v3571, 4294901760
    %v3678 = vsub.f32 %v3571, %v3677
    %v3679 = vand.u32 %v3678, 4294901760
    %v3680 = vsub.f32 %v3678, %v3679
    %v3681 = vand.u32 %v3680, 4294901760
    %3682 = vmatmul.mubr.f32.gmra.mrb[0].mxu0 %v3681
    %v3683 = vpop.f32.mrb[0].mxu0
    %v3684 = vadd.f32 0.0, %v3683
    %v3685 = vpop.f32.mrb[0].mxu0
    %3686 = vdwg.mxu0
    %3687 = vmatprep.subr.mxu0 0.0
    %v3688 = vand.u32 %v43, 4294901760
    %v3689 = vsub.f32 %v43, %v3688
    %v3690 = vand.u32 %v3689, 4294901760
    %v3691 = vsub.f32 %v3689, %v3690
    %v3692 = vand.u32 %v3691, 4294901760
    %3693 = vmatpush1.msra.mxu0 %v3692
    %3694 = vmatprep.subr.mxu0 0.0
    %v3695 = vand.u32 %v44, 4294901760
    %v3696 = vsub.f32 %v44, %v3695
    %v3697 = vand.u32 %v3696, 4294901760
    %v3698 = vsub.f32 %v3696, %v3697
    %v3699 = vand.u32 %v3698, 4294901760
    %3700 = vmatpush1.msra.mxu0 %v3699
    %3701 = vmatprep.subr.mxu0 0.0
    %v3702 = vand.u32 %v45, 4294901760
    %v3703 = vsub.f32 %v45, %v3702
    %v3704 = vand.u32 %v3703, 4294901760
    %v3705 = vsub.f32 %v3703, %v3704
    %v3706 = vand.u32 %v3705, 4294901760
    %3707 = vmatpush1.msra.mxu0 %v3706
    %3708 = vmatprep.subr.mxu0 0.0
    %v3709 = vand.u32 %v46, 4294901760
    %v3710 = vsub.f32 %v46, %v3709
    %v3711 = vand.u32 %v3710, 4294901760
    %v3712 = vsub.f32 %v3710, %v3711
    %v3713 = vand.u32 %v3712, 4294901760
    %3714 = vmatpush1.msra.mxu0 %v3713
    %3715 = vmatprep.subr.mxu0 0.0
    %v3716 = vand.u32 %v47, 4294901760
    %v3717 = vsub.f32 %v47, %v3716
    %v3718 = vand.u32 %v3717, 4294901760
    %v3719 = vsub.f32 %v3717, %v3718
    %v3720 = vand.u32 %v3719, 4294901760
    %3721 = vmatpush1.msra.mxu0 %v3720
    %3722 = vmatprep.subr.mxu0 0.0
    %v3723 = vand.u32 %v48, 4294901760
    %v3724 = vsub.f32 %v48, %v3723
    %v3725 = vand.u32 %v3724, 4294901760
    %v3726 = vsub.f32 %v3724, %v3725
    %v3727 = vand.u32 %v3726, 4294901760
    %3728 = vmatpush1.msra.mxu0 %v3727
    %3729 = vmatprep.subr.mxu0 0.0
    %v3730 = vand.u32 %v49, 4294901760
    %v3731 = vsub.f32 %v49, %v3730
    %v3732 = vand.u32 %v3731, 4294901760
    %v3733 = vsub.f32 %v3731, %v3732
    %v3734 = vand.u32 %v3733, 4294901760
    %3735 = vmatpush1.msra.mxu0 %v3734
    %3736 = vmatprep.subr.mxu0 0.0
    %v3737 = vand.u32 %v50, 4294901760
    %v3738 = vsub.f32 %v50, %v3737
    %v3739 = vand.u32 %v3738, 4294901760
    %v3740 = vsub.f32 %v3738, %v3739
    %v3741 = vand.u32 %v3740, 4294901760
    %3742 = vmatpush1.msra.mxu0 %v3741
    %3743 = vmatprep.subr.mxu0 0.0
    %v3744 = vand.u32 %v51, 4294901760
    %v3745 = vsub.f32 %v51, %v3744
    %v3746 = vand.u32 %v3745, 4294901760
    %v3747 = vsub.f32 %v3745, %v3746
    %v3748 = vand.u32 %v3747, 4294901760
    %3749 = vmatpush1.msra.mxu0 %v3748
    %3750 = vmatprep.subr.mxu0 0.0
    %v3751 = vand.u32 %v52, 4294901760
    %v3752 = vsub.f32 %v52, %v3751
    %v3753 = vand.u32 %v3752, 4294901760
    %v3754 = vsub.f32 %v3752, %v3753
    %v3755 = vand.u32 %v3754, 4294901760
    %3756 = vmatpush1.msra.mxu0 %v3755
    %3757 = vmatprep.subr.mxu0 0.0
    %v3758 = vand.u32 %v53, 4294901760
    %v3759 = vsub.f32 %v53, %v3758
    %v3760 = vand.u32 %v3759, 4294901760
    %v3761 = vsub.f32 %v3759, %v3760
    %v3762 = vand.u32 %v3761, 4294901760
    %3763 = vmatpush1.msra.mxu0 %v3762
    %3764 = vmatprep.subr.mxu0 0.0
    %v3765 = vand.u32 %v54, 4294901760
    %v3766 = vsub.f32 %v54, %v3765
    %v3767 = vand.u32 %v3766, 4294901760
    %v3768 = vsub.f32 %v3766, %v3767
    %v3769 = vand.u32 %v3768, 4294901760
    %3770 = vmatpush1.msra.mxu0 %v3769
    %3771 = vmatprep.subr.mxu0 0.0
    %v3772 = vand.u32 %v55, 4294901760
    %v3773 = vsub.f32 %v55, %v3772
    %v3774 = vand.u32 %v3773, 4294901760
    %v3775 = vsub.f32 %v3773, %v3774
    %v3776 = vand.u32 %v3775, 4294901760
    %3777 = vmatpush1.msra.mxu0 %v3776
    %3778 = vmatprep.subr.mxu0 0.0
    %v3779 = vand.u32 %v56, 4294901760
    %v3780 = vsub.f32 %v56, %v3779
    %v3781 = vand.u32 %v3780, 4294901760
    %v3782 = vsub.f32 %v3780, %v3781
    %v3783 = vand.u32 %v3782, 4294901760
    %3784 = vmatpush1.msra.mxu0 %v3783
    %3785 = vmatprep.subr.mxu0 0.0
    %v3786 = vand.u32 %v57, 4294901760
    %v3787 = vsub.f32 %v57, %v3786
    %v3788 = vand.u32 %v3787, 4294901760
    %v3789 = vsub.f32 %v3787, %v3788
    %v3790 = vand.u32 %v3789, 4294901760
    %3791 = vmatpush1.msra.mxu0 %v3790
    %3792 = vmatprep.subr.mxu0 0.0
    %v3793 = vand.u32 %v58, 4294901760
    %v3794 = vsub.f32 %v58, %v3793
    %v3795 = vand.u32 %v3794, 4294901760
    %v3796 = vsub.f32 %v3794, %v3795
    %v3797 = vand.u32 %v3796, 4294901760
    %3798 = vmatpush1.msra.mxu0 %v3797
    %3799 = vmatprep.subr.mxu0 0.0
    %v3800 = vand.u32 %v59, 4294901760
    %v3801 = vsub.f32 %v59, %v3800
    %v3802 = vand.u32 %v3801, 4294901760
    %v3803 = vsub.f32 %v3801, %v3802
    %v3804 = vand.u32 %v3803, 4294901760
    %3805 = vmatpush1.msra.mxu0 %v3804
    %3806 = vmatprep.subr.mxu0 0.0
    %v3807 = vand.u32 %v60, 4294901760
    %v3808 = vsub.f32 %v60, %v3807
    %v3809 = vand.u32 %v3808, 4294901760
    %v3810 = vsub.f32 %v3808, %v3809
    %v3811 = vand.u32 %v3810, 4294901760
    %3812 = vmatpush1.msra.mxu0 %v3811
    %3813 = vmatprep.subr.mxu0 0.0
    %v3814 = vand.u32 %v61, 4294901760
    %v3815 = vsub.f32 %v61, %v3814
    %v3816 = vand.u32 %v3815, 4294901760
    %v3817 = vsub.f32 %v3815, %v3816
    %v3818 = vand.u32 %v3817, 4294901760
    %3819 = vmatpush1.msra.mxu0 %v3818
    %3820 = vmatprep.subr.mxu0 0.0
    %v3821 = vand.u32 %v62, 4294901760
    %v3822 = vsub.f32 %v62, %v3821
    %v3823 = vand.u32 %v3822, 4294901760
    %v3824 = vsub.f32 %v3822, %v3823
    %v3825 = vand.u32 %v3824, 4294901760
    %3826 = vmatpush1.msra.mxu0 %v3825
    %3827 = vmatprep.subr.mxu0 0.0
    %v3828 = vand.u32 %v63, 4294901760
    %v3829 = vsub.f32 %v63, %v3828
    %v3830 = vand.u32 %v3829, 4294901760
    %v3831 = vsub.f32 %v3829, %v3830
    %v3832 = vand.u32 %v3831, 4294901760
    %3833 = vmatpush1.msra.mxu0 %v3832
    %3834 = vmatprep.subr.mxu0 0.0
    %v3835 = vand.u32 %v64, 4294901760
    %v3836 = vsub.f32 %v64, %v3835
    %v3837 = vand.u32 %v3836, 4294901760
    %v3838 = vsub.f32 %v3836, %v3837
    %v3839 = vand.u32 %v3838, 4294901760
    %3840 = vmatpush1.msra.mxu0 %v3839
    %3841 = vmatprep.subr.mxu0 0.0
    %v3842 = vand.u32 %v65, 4294901760
    %v3843 = vsub.f32 %v65, %v3842
    %v3844 = vand.u32 %v3843, 4294901760
    %v3845 = vsub.f32 %v3843, %v3844
    %v3846 = vand.u32 %v3845, 4294901760
    %3847 = vmatpush1.msra.mxu0 %v3846
    %3848 = vmatprep.subr.mxu0 0.0
    %v3849 = vand.u32 %v66, 4294901760
    %v3850 = vsub.f32 %v66, %v3849
    %v3851 = vand.u32 %v3850, 4294901760
    %v3852 = vsub.f32 %v3850, %v3851
    %v3853 = vand.u32 %v3852, 4294901760
    %3854 = vmatpush1.msra.mxu0 %v3853
    %3855 = vmatprep.subr.mxu0 0.0
    %v3856 = vand.u32 %v67, 4294901760
    %v3857 = vsub.f32 %v67, %v3856
    %v3858 = vand.u32 %v3857, 4294901760
    %v3859 = vsub.f32 %v3857, %v3858
    %v3860 = vand.u32 %v3859, 4294901760
    %3861 = vmatpush1.msra.mxu0 %v3860
    %3862 = vmatprep.subr.mxu0 0.0
    %v3863 = vand.u32 %v68, 4294901760
    %v3864 = vsub.f32 %v68, %v3863
    %v3865 = vand.u32 %v3864, 4294901760
    %v3866 = vsub.f32 %v3864, %v3865
    %v3867 = vand.u32 %v3866, 4294901760
    %3868 = vmatpush1.msra.mxu0 %v3867
    %3869 = vmatprep.subr.mxu0 0.0
    %v3870 = vand.u32 %v69, 4294901760
    %v3871 = vsub.f32 %v69, %v3870
    %v3872 = vand.u32 %v3871, 4294901760
    %v3873 = vsub.f32 %v3871, %v3872
    %v3874 = vand.u32 %v3873, 4294901760
    %3875 = vmatpush1.msra.mxu0 %v3874
    %3876 = vmatprep.subr.mxu0 0.0
    %v3877 = vand.u32 %v70, 4294901760
    %v3878 = vsub.f32 %v70, %v3877
    %v3879 = vand.u32 %v3878, 4294901760
    %v3880 = vsub.f32 %v3878, %v3879
    %v3881 = vand.u32 %v3880, 4294901760
    %3882 = vmatpush1.msra.mxu0 %v3881
    %3883 = vmatprep.subr.mxu0 0.0
    %v3884 = vand.u32 %v71, 4294901760
    %v3885 = vsub.f32 %v71, %v3884
    %v3886 = vand.u32 %v3885, 4294901760
    %v3887 = vsub.f32 %v3885, %v3886
    %v3888 = vand.u32 %v3887, 4294901760
    %3889 = vmatpush1.msra.mxu0 %v3888
    %3890 = vmatprep.subr.mxu0 0.0
    %v3891 = vand.u32 %v72, 4294901760
    %v3892 = vsub.f32 %v72, %v3891
    %v3893 = vand.u32 %v3892, 4294901760
    %v3894 = vsub.f32 %v3892, %v3893
    %v3895 = vand.u32 %v3894, 4294901760
    %3896 = vmatpush1.msra.mxu0 %v3895
    %3897 = vmatprep.subr.mxu0 0.0
    %v3898 = vand.u32 %v73, 4294901760
    %v3899 = vsub.f32 %v73, %v3898
    %v3900 = vand.u32 %v3899, 4294901760
    %v3901 = vsub.f32 %v3899, %v3900
    %v3902 = vand.u32 %v3901, 4294901760
    %3903 = vmatpush1.msra.mxu0 %v3902
    %3904 = vmatprep.subr.mxu0 0.0
    %v3905 = vand.u32 %v74, 4294901760
    %v3906 = vsub.f32 %v74, %v3905
    %v3907 = vand.u32 %v3906, 4294901760
    %v3908 = vsub.f32 %v3906, %v3907
    %v3909 = vand.u32 %v3908, 4294901760
    %3910 = vmatpush1.msra.mxu0 %v3909
    %v3911 = vand.u32 %v3572, 4294901760
    %3912 = vmatprep.mubr.f32.mxu0 %v3911
    %v3913 = vand.u32 %v3571, 4294901760
    %3914 = vmatmul.mubr.f32.gmra.mrb[0].mxu0 %v3913
    %v3915 = vpop.f32.mrb[0].mxu0
    %v3916 = vadd.f32 %v3684, %v3915
    %v3917 = vpop.f32.mrb[0].mxu0
    %3918 = vdwg.mxu0
    %3919 = vmatprep.subr.mxu0 0.0
    %v3920 = vand.u32 %v43, 4294901760
    %v3921 = vsub.f32 %v43, %v3920
    %3922 = vmatpush1.msra.mxu0 %v3921
    %3923 = vmatprep.subr.mxu0 0.0
    %v3924 = vand.u32 %v44, 4294901760
    %v3925 = vsub.f32 %v44, %v3924
    %3926 = vmatpush1.msra.mxu0 %v3925
    %3927 = vmatprep.subr.mxu0 0.0
    %v3928 = vand.u32 %v45, 4294901760
    %v3929 = vsub.f32 %v45, %v3928
    %3930 = vmatpush1.msra.mxu0 %v3929
    %3931 = vmatprep.subr.mxu0 0.0
    %v3932 = vand.u32 %v46, 4294901760
    %v3933 = vsub.f32 %v46, %v3932
    %3934 = vmatpush1.msra.mxu0 %v3933
    %3935 = vmatprep.subr.mxu0 0.0
    %v3936 = vand.u32 %v47, 4294901760
    %v3937 = vsub.f32 %v47, %v3936
    %3938 = vmatpush1.msra.mxu0 %v3937
    %3939 = vmatprep.subr.mxu0 0.0
    %v3940 = vand.u32 %v48, 4294901760
    %v3941 = vsub.f32 %v48, %v3940
    %3942 = vmatpush1.msra.mxu0 %v3941
    %3943 = vmatprep.subr.mxu0 0.0
    %v3944 = vand.u32 %v49, 4294901760
    %v3945 = vsub.f32 %v49, %v3944
    %3946 = vmatpush1.msra.mxu0 %v3945
    %3947 = vmatprep.subr.mxu0 0.0
    %v3948 = vand.u32 %v50, 4294901760
    %v3949 = vsub.f32 %v50, %v3948
    %3950 = vmatpush1.msra.mxu0 %v3949
    %3951 = vmatprep.subr.mxu0 0.0
    %v3952 = vand.u32 %v51, 4294901760
    %v3953 = vsub.f32 %v51, %v3952
    %3954 = vmatpush1.msra.mxu0 %v3953
    %3955 = vmatprep.subr.mxu0 0.0
    %v3956 = vand.u32 %v52, 4294901760
    %v3957 = vsub.f32 %v52, %v3956
    %3958 = vmatpush1.msra.mxu0 %v3957
    %3959 = vmatprep.subr.mxu0 0.0
    %v3960 = vand.u32 %v53, 4294901760
    %v3961 = vsub.f32 %v53, %v3960
    %3962 = vmatpush1.msra.mxu0 %v3961
    %3963 = vmatprep.subr.mxu0 0.0
    %v3964 = vand.u32 %v54, 4294901760
    %v3965 = vsub.f32 %v54, %v3964
    %3966 = vmatpush1.msra.mxu0 %v3965
    %3967 = vmatprep.subr.mxu0 0.0
    %v3968 = vand.u32 %v55, 4294901760
    %v3969 = vsub.f32 %v55, %v3968
    %3970 = vmatpush1.msra.mxu0 %v3969
    %3971 = vmatprep.subr.mxu0 0.0
    %v3972 = vand.u32 %v56, 4294901760
    %v3973 = vsub.f32 %v56, %v3972
    %3974 = vmatpush1.msra.mxu0 %v3973
    %3975 = vmatprep.subr.mxu0 0.0
    %v3976 = vand.u32 %v57, 4294901760
    %v3977 = vsub.f32 %v57, %v3976
    %3978 = vmatpush1.msra.mxu0 %v3977
    %3979 = vmatprep.subr.mxu0 0.0
    %v3980 = vand.u32 %v58, 4294901760
    %v3981 = vsub.f32 %v58, %v3980
    %3982 = vmatpush1.msra.mxu0 %v3981
    %3983 = vmatprep.subr.mxu0 0.0
    %v3984 = vand.u32 %v59, 4294901760
    %v3985 = vsub.f32 %v59, %v3984
    %3986 = vmatpush1.msra.mxu0 %v3985
    %3987 = vmatprep.subr.mxu0 0.0
    %v3988 = vand.u32 %v60, 4294901760
    %v3989 = vsub.f32 %v60, %v3988
    %3990 = vmatpush1.msra.mxu0 %v3989
    %3991 = vmatprep.subr.mxu0 0.0
    %v3992 = vand.u32 %v61, 4294901760
    %v3993 = vsub.f32 %v61, %v3992
    %3994 = vmatpush1.msra.mxu0 %v3993
    %3995 = vmatprep.subr.mxu0 0.0
    %v3996 = vand.u32 %v62, 4294901760
    %v3997 = vsub.f32 %v62, %v3996
    %3998 = vmatpush1.msra.mxu0 %v3997
    %3999 = vmatprep.subr.mxu0 0.0
    %v4000 = vand.u32 %v63, 4294901760
    %v4001 = vsub.f32 %v63, %v4000
    %4002 = vmatpush1.msra.mxu0 %v4001
    %4003 = vmatprep.subr.mxu0 0.0
    %v4004 = vand.u32 %v64, 4294901760
    %v4005 = vsub.f32 %v64, %v4004
    %4006 = vmatpush1.msra.mxu0 %v4005
    %4007 = vmatprep.subr.mxu0 0.0
    %v4008 = vand.u32 %v65, 4294901760
    %v4009 = vsub.f32 %v65, %v4008
    %4010 = vmatpush1.msra.mxu0 %v4009
    %4011 = vmatprep.subr.mxu0 0.0
    %v4012 = vand.u32 %v66, 4294901760
    %v4013 = vsub.f32 %v66, %v4012
    %4014 = vmatpush1.msra.mxu0 %v4013
    %4015 = vmatprep.subr.mxu0 0.0
    %v4016 = vand.u32 %v67, 4294901760
    %v4017 = vsub.f32 %v67, %v4016
    %4018 = vmatpush1.msra.mxu0 %v4017
    %4019 = vmatprep.subr.mxu0 0.0
    %v4020 = vand.u32 %v68, 4294901760
    %v4021 = vsub.f32 %v68, %v4020
    %4022 = vmatpush1.msra.mxu0 %v4021
    %4023 = vmatprep.subr.mxu0 0.0
    %v4024 = vand.u32 %v69, 4294901760
    %v4025 = vsub.f32 %v69, %v4024
    %4026 = vmatpush1.msra.mxu0 %v4025
    %4027 = vmatprep.subr.mxu0 0.0
    %v4028 = vand.u32 %v70, 4294901760
    %v4029 = vsub.f32 %v70, %v4028
    %4030 = vmatpush1.msra.mxu0 %v4029
    %4031 = vmatprep.subr.mxu0 0.0
    %v4032 = vand.u32 %v71, 4294901760
    %v4033 = vsub.f32 %v71, %v4032
    %4034 = vmatpush1.msra.mxu0 %v4033
    %4035 = vmatprep.subr.mxu0 0.0
    %v4036 = vand.u32 %v72, 4294901760
    %v4037 = vsub.f32 %v72, %v4036
    %4038 = vmatpush1.msra.mxu0 %v4037
    %4039 = vmatprep.subr.mxu0 0.0
    %v4040 = vand.u32 %v73, 4294901760
    %v4041 = vsub.f32 %v73, %v4040
    %4042 = vmatpush1.msra.mxu0 %v4041
    %4043 = vmatprep.subr.mxu0 0.0
    %v4044 = vand.u32 %v74, 4294901760
    %v4045 = vsub.f32 %v74, %v4044
    %4046 = vmatpush1.msra.mxu0 %v4045
    %v4047 = vand.u32 %v3572, 4294901760
    %v4048 = vsub.f32 %v3572, %v4047
    %4049 = vmatprep.mubr.f32.mxu0 %v4048
    %v4050 = vand.u32 %v3571, 4294901760
    %v4051 = vsub.f32 %v3571, %v4050
    %4052 = vmatmul.mubr.f32.gmra.mrb[0].mxu0 %v4051
    %v4053 = vpop.f32.mrb[0].mxu0
    %v4054 = vadd.f32 %v3916, %v4053
    %v4055 = vpop.f32.mrb[0].mxu0
    %4056 = vdwg.mxu0
    %4057 = vmatprep.subr.mxu0 0.0
    %v4058 = vand.u32 %v43, 4294901760
    %4059 = vmatpush1.msra.mxu0 %v4058
    %4060 = vmatprep.subr.mxu0 0.0
    %v4061 = vand.u32 %v44, 4294901760
    %4062 = vmatpush1.msra.mxu0 %v4061
    %4063 = vmatprep.subr.mxu0 0.0
    %v4064 = vand.u32 %v45, 4294901760
    %4065 = vmatpush1.msra.mxu0 %v4064
    %4066 = vmatprep.subr.mxu0 0.0
    %v4067 = vand.u32 %v46, 4294901760
    %4068 = vmatpush1.msra.mxu0 %v4067
    %4069 = vmatprep.subr.mxu0 0.0
    %v4070 = vand.u32 %v47, 4294901760
    %4071 = vmatpush1.msra.mxu0 %v4070
    %4072 = vmatprep.subr.mxu0 0.0
    %v4073 = vand.u32 %v48, 4294901760
    %4074 = vmatpush1.msra.mxu0 %v4073
    %4075 = vmatprep.subr.mxu0 0.0
    %v4076 = vand.u32 %v49, 4294901760
    %4077 = vmatpush1.msra.mxu0 %v4076
    %4078 = vmatprep.subr.mxu0 0.0
    %v4079 = vand.u32 %v50, 4294901760
    %4080 = vmatpush1.msra.mxu0 %v4079
    %4081 = vmatprep.subr.mxu0 0.0
    %v4082 = vand.u32 %v51, 4294901760
    %4083 = vmatpush1.msra.mxu0 %v4082
    %4084 = vmatprep.subr.mxu0 0.0
    %v4085 = vand.u32 %v52, 4294901760
    %4086 = vmatpush1.msra.mxu0 %v4085
    %4087 = vmatprep.subr.mxu0 0.0
    %v4088 = vand.u32 %v53, 4294901760
    %4089 = vmatpush1.msra.mxu0 %v4088
    %4090 = vmatprep.subr.mxu0 0.0
    %v4091 = vand.u32 %v54, 4294901760
    %4092 = vmatpush1.msra.mxu0 %v4091
    %4093 = vmatprep.subr.mxu0 0.0
    %v4094 = vand.u32 %v55, 4294901760
    %4095 = vmatpush1.msra.mxu0 %v4094
    %4096 = vmatprep.subr.mxu0 0.0
    %v4097 = vand.u32 %v56, 4294901760
    %4098 = vmatpush1.msra.mxu0 %v4097
    %4099 = vmatprep.subr.mxu0 0.0
    %v4100 = vand.u32 %v57, 4294901760
    %4101 = vmatpush1.msra.mxu0 %v4100
    %4102 = vmatprep.subr.mxu0 0.0
    %v4103 = vand.u32 %v58, 4294901760
    %4104 = vmatpush1.msra.mxu0 %v4103
    %4105 = vmatprep.subr.mxu0 0.0
    %v4106 = vand.u32 %v59, 4294901760
    %4107 = vmatpush1.msra.mxu0 %v4106
    %4108 = vmatprep.subr.mxu0 0.0
    %v4109 = vand.u32 %v60, 4294901760
    %4110 = vmatpush1.msra.mxu0 %v4109
    %4111 = vmatprep.subr.mxu0 0.0
    %v4112 = vand.u32 %v61, 4294901760
    %4113 = vmatpush1.msra.mxu0 %v4112
    %4114 = vmatprep.subr.mxu0 0.0
    %v4115 = vand.u32 %v62, 4294901760
    %4116 = vmatpush1.msra.mxu0 %v4115
    %4117 = vmatprep.subr.mxu0 0.0
    %v4118 = vand.u32 %v63, 4294901760
    %4119 = vmatpush1.msra.mxu0 %v4118
    %4120 = vmatprep.subr.mxu0 0.0
    %v4121 = vand.u32 %v64, 4294901760
    %4122 = vmatpush1.msra.mxu0 %v4121
    %4123 = vmatprep.subr.mxu0 0.0
    %v4124 = vand.u32 %v65, 4294901760
    %4125 = vmatpush1.msra.mxu0 %v4124
    %4126 = vmatprep.subr.mxu0 0.0
    %v4127 = vand.u32 %v66, 4294901760
    %4128 = vmatpush1.msra.mxu0 %v4127
    %4129 = vmatprep.subr.mxu0 0.0
    %v4130 = vand.u32 %v67, 4294901760
    %4131 = vmatpush1.msra.mxu0 %v4130
    %4132 = vmatprep.subr.mxu0 0.0
    %v4133 = vand.u32 %v68, 4294901760
    %4134 = vmatpush1.msra.mxu0 %v4133
    %4135 = vmatprep.subr.mxu0 0.0
    %v4136 = vand.u32 %v69, 4294901760
    %4137 = vmatpush1.msra.mxu0 %v4136
    %4138 = vmatprep.subr.mxu0 0.0
    %v4139 = vand.u32 %v70, 4294901760
    %4140 = vmatpush1.msra.mxu0 %v4139
    %4141 = vmatprep.subr.mxu0 0.0
    %v4142 = vand.u32 %v71, 4294901760
    %4143 = vmatpush1.msra.mxu0 %v4142
    %4144 = vmatprep.subr.mxu0 0.0
    %v4145 = vand.u32 %v72, 4294901760
    %4146 = vmatpush1.msra.mxu0 %v4145
    %4147 = vmatprep.subr.mxu0 0.0
    %v4148 = vand.u32 %v73, 4294901760
    %4149 = vmatpush1.msra.mxu0 %v4148
    %4150 = vmatprep.subr.mxu0 0.0
    %v4151 = vand.u32 %v74, 4294901760
    %4152 = vmatpush1.msra.mxu0 %v4151
    %v4153 = vand.u32 %v3572, 4294901760
    %v4154 = vsub.f32 %v3572, %v4153
    %v4155 = vand.u32 %v4154, 4294901760
    %4156 = vmatprep.mubr.f32.mxu0 %v4155
    %v4157 = vand.u32 %v3571, 4294901760
    %v4158 = vsub.f32 %v3571, %v4157
    %v4159 = vand.u32 %v4158, 4294901760
    %4160 = vmatmul.mubr.f32.gmra.mrb[0].mxu0 %v4159
    %v4161 = vpop.f32.mrb[0].mxu0
    %v4162 = vadd.f32 %v4054, %v4161
    %v4163 = vpop.f32.mrb[0].mxu0
    %4164 = vdwg.mxu0
    %4165 = vmatprep.subr.mxu0 0.0
    %v4166 = vand.u32 %v43, 4294901760
    %v4167 = vsub.f32 %v43, %v4166
    %v4168 = vand.u32 %v4167, 4294901760
    %4169 = vmatpush1.msra.mxu0 %v4168
    %4170 = vmatprep.subr.mxu0 0.0
    %v4171 = vand.u32 %v44, 4294901760
    %v4172 = vsub.f32 %v44, %v4171
    %v4173 = vand.u32 %v4172, 4294901760
    %4174 = vmatpush1.msra.mxu0 %v4173
    %4175 = vmatprep.subr.mxu0 0.0
    %v4176 = vand.u32 %v45, 4294901760
    %v4177 = vsub.f32 %v45, %v4176
    %v4178 = vand.u32 %v4177, 4294901760
    %4179 = vmatpush1.msra.mxu0 %v4178
    %4180 = vmatprep.subr.mxu0 0.0
    %v4181 = vand.u32 %v46, 4294901760
    %v4182 = vsub.f32 %v46, %v4181
    %v4183 = vand.u32 %v4182, 4294901760
    %4184 = vmatpush1.msra.mxu0 %v4183
    %4185 = vmatprep.subr.mxu0 0.0
    %v4186 = vand.u32 %v47, 4294901760
    %v4187 = vsub.f32 %v47, %v4186
    %v4188 = vand.u32 %v4187, 4294901760
    %4189 = vmatpush1.msra.mxu0 %v4188
    %4190 = vmatprep.subr.mxu0 0.0
    %v4191 = vand.u32 %v48, 4294901760
    %v4192 = vsub.f32 %v48, %v4191
    %v4193 = vand.u32 %v4192, 4294901760
    %4194 = vmatpush1.msra.mxu0 %v4193
    %4195 = vmatprep.subr.mxu0 0.0
    %v4196 = vand.u32 %v49, 4294901760
    %v4197 = vsub.f32 %v49, %v4196
    %v4198 = vand.u32 %v4197, 4294901760
    %4199 = vmatpush1.msra.mxu0 %v4198
    %4200 = vmatprep.subr.mxu0 0.0
    %v4201 = vand.u32 %v50, 4294901760
    %v4202 = vsub.f32 %v50, %v4201
    %v4203 = vand.u32 %v4202, 4294901760
    %4204 = vmatpush1.msra.mxu0 %v4203
    %4205 = vmatprep.subr.mxu0 0.0
    %v4206 = vand.u32 %v51, 4294901760
    %v4207 = vsub.f32 %v51, %v4206
    %v4208 = vand.u32 %v4207, 4294901760
    %4209 = vmatpush1.msra.mxu0 %v4208
    %4210 = vmatprep.subr.mxu0 0.0
    %v4211 = vand.u32 %v52, 4294901760
    %v4212 = vsub.f32 %v52, %v4211
    %v4213 = vand.u32 %v4212, 4294901760
    %4214 = vmatpush1.msra.mxu0 %v4213
    %4215 = vmatprep.subr.mxu0 0.0
    %v4216 = vand.u32 %v53, 4294901760
    %v4217 = vsub.f32 %v53, %v4216
    %v4218 = vand.u32 %v4217, 4294901760
    %4219 = vmatpush1.msra.mxu0 %v4218
    %4220 = vmatprep.subr.mxu0 0.0
    %v4221 = vand.u32 %v54, 4294901760
    %v4222 = vsub.f32 %v54, %v4221
    %v4223 = vand.u32 %v4222, 4294901760
    %4224 = vmatpush1.msra.mxu0 %v4223
    %4225 = vmatprep.subr.mxu0 0.0
    %v4226 = vand.u32 %v55, 4294901760
    %v4227 = vsub.f32 %v55, %v4226
    %v4228 = vand.u32 %v4227, 4294901760
    %4229 = vmatpush1.msra.mxu0 %v4228
    %4230 = vmatprep.subr.mxu0 0.0
    %v4231 = vand.u32 %v56, 4294901760
    %v4232 = vsub.f32 %v56, %v4231
    %v4233 = vand.u32 %v4232, 4294901760
    %4234 = vmatpush1.msra.mxu0 %v4233
    %4235 = vmatprep.subr.mxu0 0.0
    %v4236 = vand.u32 %v57, 4294901760
    %v4237 = vsub.f32 %v57, %v4236
    %v4238 = vand.u32 %v4237, 4294901760
    %4239 = vmatpush1.msra.mxu0 %v4238
    %4240 = vmatprep.subr.mxu0 0.0
    %v4241 = vand.u32 %v58, 4294901760
    %v4242 = vsub.f32 %v58, %v4241
    %v4243 = vand.u32 %v4242, 4294901760
    %4244 = vmatpush1.msra.mxu0 %v4243
    %4245 = vmatprep.subr.mxu0 0.0
    %v4246 = vand.u32 %v59, 4294901760
    %v4247 = vsub.f32 %v59, %v4246
    %v4248 = vand.u32 %v4247, 4294901760
    %4249 = vmatpush1.msra.mxu0 %v4248
    %4250 = vmatprep.subr.mxu0 0.0
    %v4251 = vand.u32 %v60, 4294901760
    %v4252 = vsub.f32 %v60, %v4251
    %v4253 = vand.u32 %v4252, 4294901760
    %4254 = vmatpush1.msra.mxu0 %v4253
    %4255 = vmatprep.subr.mxu0 0.0
    %v4256 = vand.u32 %v61, 4294901760
    %v4257 = vsub.f32 %v61, %v4256
    %v4258 = vand.u32 %v4257, 4294901760
    %4259 = vmatpush1.msra.mxu0 %v4258
    %4260 = vmatprep.subr.mxu0 0.0
    %v4261 = vand.u32 %v62, 4294901760
    %v4262 = vsub.f32 %v62, %v4261
    %v4263 = vand.u32 %v4262, 4294901760
    %4264 = vmatpush1.msra.mxu0 %v4263
    %4265 = vmatprep.subr.mxu0 0.0
    %v4266 = vand.u32 %v63, 4294901760
    %v4267 = vsub.f32 %v63, %v4266
    %v4268 = vand.u32 %v4267, 4294901760
    %4269 = vmatpush1.msra.mxu0 %v4268
    %4270 = vmatprep.subr.mxu0 0.0
    %v4271 = vand.u32 %v64, 4294901760
    %v4272 = vsub.f32 %v64, %v4271
    %v4273 = vand.u32 %v4272, 4294901760
    %4274 = vmatpush1.msra.mxu0 %v4273
    %4275 = vmatprep.subr.mxu0 0.0
    %v4276 = vand.u32 %v65, 4294901760
    %v4277 = vsub.f32 %v65, %v4276
    %v4278 = vand.u32 %v4277, 4294901760
    %4279 = vmatpush1.msra.mxu0 %v4278
    %4280 = vmatprep.subr.mxu0 0.0
    %v4281 = vand.u32 %v66, 4294901760
    %v4282 = vsub.f32 %v66, %v4281
    %v4283 = vand.u32 %v4282, 4294901760
    %4284 = vmatpush1.msra.mxu0 %v4283
    %4285 = vmatprep.subr.mxu0 0.0
    %v4286 = vand.u32 %v67, 4294901760
    %v4287 = vsub.f32 %v67, %v4286
    %v4288 = vand.u32 %v4287, 4294901760
    %4289 = vmatpush1.msra.mxu0 %v4288
    %4290 = vmatprep.subr.mxu0 0.0
    %v4291 = vand.u32 %v68, 4294901760
    %v4292 = vsub.f32 %v68, %v4291
    %v4293 = vand.u32 %v4292, 4294901760
    %4294 = vmatpush1.msra.mxu0 %v4293
    %4295 = vmatprep.subr.mxu0 0.0
    %v4296 = vand.u32 %v69, 4294901760
    %v4297 = vsub.f32 %v69, %v4296
    %v4298 = vand.u32 %v4297, 4294901760
    %4299 = vmatpush1.msra.mxu0 %v4298
    %4300 = vmatprep.subr.mxu0 0.0
    %v4301 = vand.u32 %v70, 4294901760
    %v4302 = vsub.f32 %v70, %v4301
    %v4303 = vand.u32 %v4302, 4294901760
    %4304 = vmatpush1.msra.mxu0 %v4303
    %4305 = vmatprep.subr.mxu0 0.0
    %v4306 = vand.u32 %v71, 4294901760
    %v4307 = vsub.f32 %v71, %v4306
    %v4308 = vand.u32 %v4307, 4294901760
    %4309 = vmatpush1.msra.mxu0 %v4308
    %4310 = vmatprep.subr.mxu0 0.0
    %v4311 = vand.u32 %v72, 4294901760
    %v4312 = vsub.f32 %v72, %v4311
    %v4313 = vand.u32 %v4312, 4294901760
    %4314 = vmatpush1.msra.mxu0 %v4313
    %4315 = vmatprep.subr.mxu0 0.0
    %v4316 = vand.u32 %v73, 4294901760
    %v4317 = vsub.f32 %v73, %v4316
    %v4318 = vand.u32 %v4317, 4294901760
    %4319 = vmatpush1.msra.mxu0 %v4318
    %4320 = vmatprep.subr.mxu0 0.0
    %v4321 = vand.u32 %v74, 4294901760
    %v4322 = vsub.f32 %v74, %v4321
    %v4323 = vand.u32 %v4322, 4294901760
    %4324 = vmatpush1.msra.mxu0 %v4323
    %v4325 = vand.u32 %v3572, 4294901760
    %4326 = vmatprep.mubr.f32.mxu0 %v4325
    %v4327 = vand.u32 %v3571, 4294901760
    %4328 = vmatmul.mubr.f32.gmra.mrb[0].mxu0 %v4327
    %v4329 = vpop.f32.mrb[0].mxu0
    %v4330 = vadd.f32 %v4162, %v4329
    %v4331 = vpop.f32.mrb[0].mxu0
    %4332 = vdwg.mxu0
    %4333 = vmatprep.subr.mxu0 0.0
    %v4334 = vand.u32 %v43, 4294901760
    %4335 = vmatpush1.msra.mxu0 %v4334
    %4336 = vmatprep.subr.mxu0 0.0
    %v4337 = vand.u32 %v44, 4294901760
    %4338 = vmatpush1.msra.mxu0 %v4337
    %4339 = vmatprep.subr.mxu0 0.0
    %v4340 = vand.u32 %v45, 4294901760
    %4341 = vmatpush1.msra.mxu0 %v4340
    %4342 = vmatprep.subr.mxu0 0.0
    %v4343 = vand.u32 %v46, 4294901760
    %4344 = vmatpush1.msra.mxu0 %v4343
    %4345 = vmatprep.subr.mxu0 0.0
    %v4346 = vand.u32 %v47, 4294901760
    %4347 = vmatpush1.msra.mxu0 %v4346
    %4348 = vmatprep.subr.mxu0 0.0
    %v4349 = vand.u32 %v48, 4294901760
    %4350 = vmatpush1.msra.mxu0 %v4349
    %4351 = vmatprep.subr.mxu0 0.0
    %v4352 = vand.u32 %v49, 4294901760
    %4353 = vmatpush1.msra.mxu0 %v4352
    %4354 = vmatprep.subr.mxu0 0.0
    %v4355 = vand.u32 %v50, 4294901760
    %4356 = vmatpush1.msra.mxu0 %v4355
    %4357 = vmatprep.subr.mxu0 0.0
    %v4358 = vand.u32 %v51, 4294901760
    %4359 = vmatpush1.msra.mxu0 %v4358
    %4360 = vmatprep.subr.mxu0 0.0
    %v4361 = vand.u32 %v52, 4294901760
    %4362 = vmatpush1.msra.mxu0 %v4361
    %4363 = vmatprep.subr.mxu0 0.0
    %v4364 = vand.u32 %v53, 4294901760
    %4365 = vmatpush1.msra.mxu0 %v4364
    %4366 = vmatprep.subr.mxu0 0.0
    %v4367 = vand.u32 %v54, 4294901760
    %4368 = vmatpush1.msra.mxu0 %v4367
    %4369 = vmatprep.subr.mxu0 0.0
    %v4370 = vand.u32 %v55, 4294901760
    %4371 = vmatpush1.msra.mxu0 %v4370
    %4372 = vmatprep.subr.mxu0 0.0
    %v4373 = vand.u32 %v56, 4294901760
    %4374 = vmatpush1.msra.mxu0 %v4373
    %4375 = vmatprep.subr.mxu0 0.0
    %v4376 = vand.u32 %v57, 4294901760
    %4377 = vmatpush1.msra.mxu0 %v4376
    %4378 = vmatprep.subr.mxu0 0.0
    %v4379 = vand.u32 %v58, 4294901760
    %4380 = vmatpush1.msra.mxu0 %v4379
    %4381 = vmatprep.subr.mxu0 0.0
    %v4382 = vand.u32 %v59, 4294901760
    %4383 = vmatpush1.msra.mxu0 %v4382
    %4384 = vmatprep.subr.mxu0 0.0
    %v4385 = vand.u32 %v60, 4294901760
    %4386 = vmatpush1.msra.mxu0 %v4385
    %4387 = vmatprep.subr.mxu0 0.0
    %v4388 = vand.u32 %v61, 4294901760
    %4389 = vmatpush1.msra.mxu0 %v4388
    %4390 = vmatprep.subr.mxu0 0.0
    %v4391 = vand.u32 %v62, 4294901760
    %4392 = vmatpush1.msra.mxu0 %v4391
    %4393 = vmatprep.subr.mxu0 0.0
    %v4394 = vand.u32 %v63, 4294901760
    %4395 = vmatpush1.msra.mxu0 %v4394
    %4396 = vmatprep.subr.mxu0 0.0
    %v4397 = vand.u32 %v64, 4294901760
    %4398 = vmatpush1.msra.mxu0 %v4397
    %4399 = vmatprep.subr.mxu0 0.0
    %v4400 = vand.u32 %v65, 4294901760
    %4401 = vmatpush1.msra.mxu0 %v4400
    %4402 = vmatprep.subr.mxu0 0.0
    %v4403 = vand.u32 %v66, 4294901760
    %4404 = vmatpush1.msra.mxu0 %v4403
    %4405 = vmatprep.subr.mxu0 0.0
    %v4406 = vand.u32 %v67, 4294901760
    %4407 = vmatpush1.msra.mxu0 %v4406
    %4408 = vmatprep.subr.mxu0 0.0
    %v4409 = vand.u32 %v68, 4294901760
    %4410 = vmatpush1.msra.mxu0 %v4409
    %4411 = vmatprep.subr.mxu0 0.0
    %v4412 = vand.u32 %v69, 4294901760
    %4413 = vmatpush1.msra.mxu0 %v4412
    %4414 = vmatprep.subr.mxu0 0.0
    %v4415 = vand.u32 %v70, 4294901760
    %4416 = vmatpush1.msra.mxu0 %v4415
    %4417 = vmatprep.subr.mxu0 0.0
    %v4418 = vand.u32 %v71, 4294901760
    %4419 = vmatpush1.msra.mxu0 %v4418
    %4420 = vmatprep.subr.mxu0 0.0
    %v4421 = vand.u32 %v72, 4294901760
    %4422 = vmatpush1.msra.mxu0 %v4421
    %4423 = vmatprep.subr.mxu0 0.0
    %v4424 = vand.u32 %v73, 4294901760
    %4425 = vmatpush1.msra.mxu0 %v4424
    %4426 = vmatprep.subr.mxu0 0.0
    %v4427 = vand.u32 %v74, 4294901760
    %4428 = vmatpush1.msra.mxu0 %v4427
    %v4429 = vand.u32 %v3572, 4294901760
    %4430 = vmatprep.mubr.f32.mxu0 %v4429
    %v4431 = vand.u32 %v3571, 4294901760
    %4432 = vmatmul.mubr.f32.gmra.mrb[0].mxu0 %v4431
    %v4433 = vpop.f32.mrb[0].mxu0
    %v4434 = vadd.f32 %v4330, %v4433
    %v4435 = vpop.f32.mrb[0].mxu0
    %4436 = vdwg.mxu0
    %4437 = vmatprep.subr.mxu0 0.0
    %v4438 = vand.u32 %v75, 4294901760
    %4439 = vmatpush1.msra.mxu0 %v4438
    %4440 = vmatprep.subr.mxu0 0.0
    %v4441 = vand.u32 %v76, 4294901760
    %4442 = vmatpush1.msra.mxu0 %v4441
    %4443 = vmatprep.subr.mxu0 0.0
    %v4444 = vand.u32 %v77, 4294901760
    %4445 = vmatpush1.msra.mxu0 %v4444
    %4446 = vmatprep.subr.mxu0 0.0
    %v4447 = vand.u32 %v78, 4294901760
    %4448 = vmatpush1.msra.mxu0 %v4447
    %4449 = vmatprep.subr.mxu0 0.0
    %v4450 = vand.u32 %v79, 4294901760
    %4451 = vmatpush1.msra.mxu0 %v4450
    %4452 = vmatprep.subr.mxu0 0.0
    %v4453 = vand.u32 %v80, 4294901760
    %4454 = vmatpush1.msra.mxu0 %v4453
    %4455 = vmatprep.subr.mxu0 0.0
    %v4456 = vand.u32 %v81, 4294901760
    %4457 = vmatpush1.msra.mxu0 %v4456
    %4458 = vmatprep.subr.mxu0 0.0
    %v4459 = vand.u32 %v82, 4294901760
    %4460 = vmatpush1.msra.mxu0 %v4459
    %4461 = vmatprep.subr.mxu0 0.0
    %v4462 = vand.u32 %v83, 4294901760
    %4463 = vmatpush1.msra.mxu0 %v4462
    %4464 = vmatprep.subr.mxu0 0.0
    %v4465 = vand.u32 %v84, 4294901760
    %4466 = vmatpush1.msra.mxu0 %v4465
    %4467 = vmatprep.subr.mxu0 0.0
    %v4468 = vand.u32 %v85, 4294901760
    %4469 = vmatpush1.msra.mxu0 %v4468
    %4470 = vmatprep.subr.mxu0 0.0
    %v4471 = vand.u32 %v86, 4294901760
    %4472 = vmatpush1.msra.mxu0 %v4471
    %4473 = vmatprep.subr.mxu0 0.0
    %v4474 = vand.u32 %v87, 4294901760
    %4475 = vmatpush1.msra.mxu0 %v4474
    %4476 = vmatprep.subr.mxu0 0.0
    %v4477 = vand.u32 %v88, 4294901760
    %4478 = vmatpush1.msra.mxu0 %v4477
    %4479 = vmatprep.subr.mxu0 0.0
    %v4480 = vand.u32 %v89, 4294901760
    %4481 = vmatpush1.msra.mxu0 %v4480
    %4482 = vmatprep.subr.mxu0 0.0
    %v4483 = vand.u32 %v90, 4294901760
    %4484 = vmatpush1.msra.mxu0 %v4483
    %4485 = vmatprep.subr.mxu0 0.0
    %v4486 = vand.u32 %v91, 4294901760
    %4487 = vmatpush1.msra.mxu0 %v4486
    %4488 = vmatprep.subr.mxu0 0.0
    %v4489 = vand.u32 %v92, 4294901760
    %4490 = vmatpush1.msra.mxu0 %v4489
    %4491 = vmatprep.subr.mxu0 0.0
    %v4492 = vand.u32 %v93, 4294901760
    %4493 = vmatpush1.msra.mxu0 %v4492
    %4494 = vmatprep.subr.mxu0 0.0
    %v4495 = vand.u32 %v94, 4294901760
    %4496 = vmatpush1.msra.mxu0 %v4495
    %4497 = vmatprep.subr.mxu0 0.0
    %v4498 = vand.u32 %v95, 4294901760
    %4499 = vmatpush1.msra.mxu0 %v4498
    %4500 = vmatprep.subr.mxu0 0.0
    %v4501 = vand.u32 %v96, 4294901760
    %4502 = vmatpush1.msra.mxu0 %v4501
    %4503 = vmatprep.subr.mxu0 0.0
    %v4504 = vand.u32 %v97, 4294901760
    %4505 = vmatpush1.msra.mxu0 %v4504
    %4506 = vmatprep.subr.mxu0 0.0
    %v4507 = vand.u32 %v98, 4294901760
    %4508 = vmatpush1.msra.mxu0 %v4507
    %4509 = vmatprep.subr.mxu0 0.0
    %v4510 = vand.u32 %v99, 4294901760
    %4511 = vmatpush1.msra.mxu0 %v4510
    %4512 = vmatprep.subr.mxu0 0.0
    %v4513 = vand.u32 %v100, 4294901760
    %4514 = vmatpush1.msra.mxu0 %v4513
    %4515 = vmatprep.subr.mxu0 0.0
    %v4516 = vand.u32 %v101, 4294901760
    %4517 = vmatpush1.msra.mxu0 %v4516
    %4518 = vmatprep.subr.mxu0 0.0
    %v4519 = vand.u32 %v102, 4294901760
    %4520 = vmatpush1.msra.mxu0 %v4519
    %4521 = vmatprep.subr.mxu0 0.0
    %v4522 = vand.u32 %v103, 4294901760
    %4523 = vmatpush1.msra.mxu0 %v4522
    %4524 = vmatprep.subr.mxu0 0.0
    %v4525 = vand.u32 %v104, 4294901760
    %4526 = vmatpush1.msra.mxu0 %v4525
    %4527 = vmatprep.subr.mxu0 0.0
    %v4528 = vand.u32 %v105, 4294901760
    %4529 = vmatpush1.msra.mxu0 %v4528
    %4530 = vmatprep.subr.mxu0 0.0
    %v4531 = vand.u32 %v106, 4294901760
    %4532 = vmatpush1.msra.mxu0 %v4531
    %v4533 = vand.u32 %v3574, 4294901760
    %v4534 = vsub.f32 %v3574, %v4533
    %v4535 = vand.u32 %v4534, 4294901760
    %v4536 = vsub.f32 %v4534, %v4535
    %v4537 = vand.u32 %v4536, 4294901760
    %4538 = vmatprep.mubr.f32.mxu0 %v4537
    %v4539 = vand.u32 %v3573, 4294901760
    %v4540 = vsub.f32 %v3573, %v4539
    %v4541 = vand.u32 %v4540, 4294901760
    %v4542 = vsub.f32 %v4540, %v4541
    %v4543 = vand.u32 %v4542, 4294901760
    %4544 = vmatmul.mubr.f32.gmra.mrb[0].mxu0 %v4543
    %v4545 = vpop.f32.mrb[0].mxu0
    %v4546 = vadd.f32 %v4434, %v4545
    %v4547 = vpop.f32.mrb[0].mxu0
    %4548 = vdwg.mxu0
    %4549 = vmatprep.subr.mxu0 0.0
    %v4550 = vand.u32 %v75, 4294901760
    %v4551 = vsub.f32 %v75, %v4550
    %v4552 = vand.u32 %v4551, 4294901760
    %v4553 = vsub.f32 %v4551, %v4552
    %v4554 = vand.u32 %v4553, 4294901760
    %4555 = vmatpush1.msra.mxu0 %v4554
    %4556 = vmatprep.subr.mxu0 0.0
    %v4557 = vand.u32 %v76, 4294901760
    %v4558 = vsub.f32 %v76, %v4557
    %v4559 = vand.u32 %v4558, 4294901760
    %v4560 = vsub.f32 %v4558, %v4559
    %v4561 = vand.u32 %v4560, 4294901760
    %4562 = vmatpush1.msra.mxu0 %v4561
    %4563 = vmatprep.subr.mxu0 0.0
    %v4564 = vand.u32 %v77, 4294901760
    %v4565 = vsub.f32 %v77, %v4564
    %v4566 = vand.u32 %v4565, 4294901760
    %v4567 = vsub.f32 %v4565, %v4566
    %v4568 = vand.u32 %v4567, 4294901760
    %4569 = vmatpush1.msra.mxu0 %v4568
    %4570 = vmatprep.subr.mxu0 0.0
    %v4571 = vand.u32 %v78, 4294901760
    %v4572 = vsub.f32 %v78, %v4571
    %v4573 = vand.u32 %v4572, 4294901760
    %v4574 = vsub.f32 %v4572, %v4573
    %v4575 = vand.u32 %v4574, 4294901760
    %4576 = vmatpush1.msra.mxu0 %v4575
    %4577 = vmatprep.subr.mxu0 0.0
    %v4578 = vand.u32 %v79, 4294901760
    %v4579 = vsub.f32 %v79, %v4578
    %v4580 = vand.u32 %v4579, 4294901760
    %v4581 = vsub.f32 %v4579, %v4580
    %v4582 = vand.u32 %v4581, 4294901760
    %4583 = vmatpush1.msra.mxu0 %v4582
    %4584 = vmatprep.subr.mxu0 0.0
    %v4585 = vand.u32 %v80, 4294901760
    %v4586 = vsub.f32 %v80, %v4585
    %v4587 = vand.u32 %v4586, 4294901760
    %v4588 = vsub.f32 %v4586, %v4587
    %v4589 = vand.u32 %v4588, 4294901760
    %4590 = vmatpush1.msra.mxu0 %v4589
    %4591 = vmatprep.subr.mxu0 0.0
    %v4592 = vand.u32 %v81, 4294901760
    %v4593 = vsub.f32 %v81, %v4592
    %v4594 = vand.u32 %v4593, 4294901760
    %v4595 = vsub.f32 %v4593, %v4594
    %v4596 = vand.u32 %v4595, 4294901760
    %4597 = vmatpush1.msra.mxu0 %v4596
    %4598 = vmatprep.subr.mxu0 0.0
    %v4599 = vand.u32 %v82, 4294901760
    %v4600 = vsub.f32 %v82, %v4599
    %v4601 = vand.u32 %v4600, 4294901760
    %v4602 = vsub.f32 %v4600, %v4601
    %v4603 = vand.u32 %v4602, 4294901760
    %4604 = vmatpush1.msra.mxu0 %v4603
    %4605 = vmatprep.subr.mxu0 0.0
    %v4606 = vand.u32 %v83, 4294901760
    %v4607 = vsub.f32 %v83, %v4606
    %v4608 = vand.u32 %v4607, 4294901760
    %v4609 = vsub.f32 %v4607, %v4608
    %v4610 = vand.u32 %v4609, 4294901760
    %4611 = vmatpush1.msra.mxu0 %v4610
    %4612 = vmatprep.subr.mxu0 0.0
    %v4613 = vand.u32 %v84, 4294901760
    %v4614 = vsub.f32 %v84, %v4613
    %v4615 = vand.u32 %v4614, 4294901760
    %v4616 = vsub.f32 %v4614, %v4615
    %v4617 = vand.u32 %v4616, 4294901760
    %4618 = vmatpush1.msra.mxu0 %v4617
    %4619 = vmatprep.subr.mxu0 0.0
    %v4620 = vand.u32 %v85, 4294901760
    %v4621 = vsub.f32 %v85, %v4620
    %v4622 = vand.u32 %v4621, 4294901760
    %v4623 = vsub.f32 %v4621, %v4622
    %v4624 = vand.u32 %v4623, 4294901760
    %4625 = vmatpush1.msra.mxu0 %v4624
    %4626 = vmatprep.subr.mxu0 0.0
    %v4627 = vand.u32 %v86, 4294901760
    %v4628 = vsub.f32 %v86, %v4627
    %v4629 = vand.u32 %v4628, 4294901760
    %v4630 = vsub.f32 %v4628, %v4629
    %v4631 = vand.u32 %v4630, 4294901760
    %4632 = vmatpush1.msra.mxu0 %v4631
    %4633 = vmatprep.subr.mxu0 0.0
    %v4634 = vand.u32 %v87, 4294901760
    %v4635 = vsub.f32 %v87, %v4634
    %v4636 = vand.u32 %v4635, 4294901760
    %v4637 = vsub.f32 %v4635, %v4636
    %v4638 = vand.u32 %v4637, 4294901760
    %4639 = vmatpush1.msra.mxu0 %v4638
    %4640 = vmatprep.subr.mxu0 0.0
    %v4641 = vand.u32 %v88, 4294901760
    %v4642 = vsub.f32 %v88, %v4641
    %v4643 = vand.u32 %v4642, 4294901760
    %v4644 = vsub.f32 %v4642, %v4643
    %v4645 = vand.u32 %v4644, 4294901760
    %4646 = vmatpush1.msra.mxu0 %v4645
    %4647 = vmatprep.subr.mxu0 0.0
    %v4648 = vand.u32 %v89, 4294901760
    %v4649 = vsub.f32 %v89, %v4648
    %v4650 = vand.u32 %v4649, 4294901760
    %v4651 = vsub.f32 %v4649, %v4650
    %v4652 = vand.u32 %v4651, 4294901760
    %4653 = vmatpush1.msra.mxu0 %v4652
    %4654 = vmatprep.subr.mxu0 0.0
    %v4655 = vand.u32 %v90, 4294901760
    %v4656 = vsub.f32 %v90, %v4655
    %v4657 = vand.u32 %v4656, 4294901760
    %v4658 = vsub.f32 %v4656, %v4657
    %v4659 = vand.u32 %v4658, 4294901760
    %4660 = vmatpush1.msra.mxu0 %v4659
    %4661 = vmatprep.subr.mxu0 0.0
    %v4662 = vand.u32 %v91, 4294901760
    %v4663 = vsub.f32 %v91, %v4662
    %v4664 = vand.u32 %v4663, 4294901760
    %v4665 = vsub.f32 %v4663, %v4664
    %v4666 = vand.u32 %v4665, 4294901760
    %4667 = vmatpush1.msra.mxu0 %v4666
    %4668 = vmatprep.subr.mxu0 0.0
    %v4669 = vand.u32 %v92, 4294901760
    %v4670 = vsub.f32 %v92, %v4669
    %v4671 = vand.u32 %v4670, 4294901760
    %v4672 = vsub.f32 %v4670, %v4671
    %v4673 = vand.u32 %v4672, 4294901760
    %4674 = vmatpush1.msra.mxu0 %v4673
    %4675 = vmatprep.subr.mxu0 0.0
    %v4676 = vand.u32 %v93, 4294901760
    %v4677 = vsub.f32 %v93, %v4676
    %v4678 = vand.u32 %v4677, 4294901760
    %v4679 = vsub.f32 %v4677, %v4678
    %v4680 = vand.u32 %v4679, 4294901760
    %4681 = vmatpush1.msra.mxu0 %v4680
    %4682 = vmatprep.subr.mxu0 0.0
    %v4683 = vand.u32 %v94, 4294901760
    %v4684 = vsub.f32 %v94, %v4683
    %v4685 = vand.u32 %v4684, 4294901760
    %v4686 = vsub.f32 %v4684, %v4685
    %v4687 = vand.u32 %v4686, 4294901760
    %4688 = vmatpush1.msra.mxu0 %v4687
    %4689 = vmatprep.subr.mxu0 0.0
    %v4690 = vand.u32 %v95, 4294901760
    %v4691 = vsub.f32 %v95, %v4690
    %v4692 = vand.u32 %v4691, 4294901760
    %v4693 = vsub.f32 %v4691, %v4692
    %v4694 = vand.u32 %v4693, 4294901760
    %4695 = vmatpush1.msra.mxu0 %v4694
    %4696 = vmatprep.subr.mxu0 0.0
    %v4697 = vand.u32 %v96, 4294901760
    %v4698 = vsub.f32 %v96, %v4697
    %v4699 = vand.u32 %v4698, 4294901760
    %v4700 = vsub.f32 %v4698, %v4699
    %v4701 = vand.u32 %v4700, 4294901760
    %4702 = vmatpush1.msra.mxu0 %v4701
    %4703 = vmatprep.subr.mxu0 0.0
    %v4704 = vand.u32 %v97, 4294901760
    %v4705 = vsub.f32 %v97, %v4704
    %v4706 = vand.u32 %v4705, 4294901760
    %v4707 = vsub.f32 %v4705, %v4706
    %v4708 = vand.u32 %v4707, 4294901760
    %4709 = vmatpush1.msra.mxu0 %v4708
    %4710 = vmatprep.subr.mxu0 0.0
    %v4711 = vand.u32 %v98, 4294901760
    %v4712 = vsub.f32 %v98, %v4711
    %v4713 = vand.u32 %v4712, 4294901760
    %v4714 = vsub.f32 %v4712, %v4713
    %v4715 = vand.u32 %v4714, 4294901760
    %4716 = vmatpush1.msra.mxu0 %v4715
    %4717 = vmatprep.subr.mxu0 0.0
    %v4718 = vand.u32 %v99, 4294901760
    %v4719 = vsub.f32 %v99, %v4718
    %v4720 = vand.u32 %v4719, 4294901760
    %v4721 = vsub.f32 %v4719, %v4720
    %v4722 = vand.u32 %v4721, 4294901760
    %4723 = vmatpush1.msra.mxu0 %v4722
    %4724 = vmatprep.subr.mxu0 0.0
    %v4725 = vand.u32 %v100, 4294901760
    %v4726 = vsub.f32 %v100, %v4725
    %v4727 = vand.u32 %v4726, 4294901760
    %v4728 = vsub.f32 %v4726, %v4727
    %v4729 = vand.u32 %v4728, 4294901760
    %4730 = vmatpush1.msra.mxu0 %v4729
    %4731 = vmatprep.subr.mxu0 0.0
    %v4732 = vand.u32 %v101, 4294901760
    %v4733 = vsub.f32 %v101, %v4732
    %v4734 = vand.u32 %v4733, 4294901760
    %v4735 = vsub.f32 %v4733, %v4734
    %v4736 = vand.u32 %v4735, 4294901760
    %4737 = vmatpush1.msra.mxu0 %v4736
    %4738 = vmatprep.subr.mxu0 0.0
    %v4739 = vand.u32 %v102, 4294901760
    %v4740 = vsub.f32 %v102, %v4739
    %v4741 = vand.u32 %v4740, 4294901760
    %v4742 = vsub.f32 %v4740, %v4741
    %v4743 = vand.u32 %v4742, 4294901760
    %4744 = vmatpush1.msra.mxu0 %v4743
    %4745 = vmatprep.subr.mxu0 0.0
    %v4746 = vand.u32 %v103, 4294901760
    %v4747 = vsub.f32 %v103, %v4746
    %v4748 = vand.u32 %v4747, 4294901760
    %v4749 = vsub.f32 %v4747, %v4748
    %v4750 = vand.u32 %v4749, 4294901760
    %4751 = vmatpush1.msra.mxu0 %v4750
    %4752 = vmatprep.subr.mxu0 0.0
    %v4753 = vand.u32 %v104, 4294901760
    %v4754 = vsub.f32 %v104, %v4753
    %v4755 = vand.u32 %v4754, 4294901760
    %v4756 = vsub.f32 %v4754, %v4755
    %v4757 = vand.u32 %v4756, 4294901760
    %4758 = vmatpush1.msra.mxu0 %v4757
    %4759 = vmatprep.subr.mxu0 0.0
    %v4760 = vand.u32 %v105, 4294901760
    %v4761 = vsub.f32 %v105, %v4760
    %v4762 = vand.u32 %v4761, 4294901760
    %v4763 = vsub.f32 %v4761, %v4762
    %v4764 = vand.u32 %v4763, 4294901760
    %4765 = vmatpush1.msra.mxu0 %v4764
    %4766 = vmatprep.subr.mxu0 0.0
    %v4767 = vand.u32 %v106, 4294901760
    %v4768 = vsub.f32 %v106, %v4767
    %v4769 = vand.u32 %v4768, 4294901760
    %v4770 = vsub.f32 %v4768, %v4769
    %v4771 = vand.u32 %v4770, 4294901760
    %4772 = vmatpush1.msra.mxu0 %v4771
    %v4773 = vand.u32 %v3574, 4294901760
    %4774 = vmatprep.mubr.f32.mxu0 %v4773
    %v4775 = vand.u32 %v3573, 4294901760
    %4776 = vmatmul.mubr.f32.gmra.mrb[0].mxu0 %v4775
    %v4777 = vpop.f32.mrb[0].mxu0
    %v4778 = vadd.f32 %v4546, %v4777
    %v4779 = vpop.f32.mrb[0].mxu0
    %4780 = vdwg.mxu0
    %4781 = vmatprep.subr.mxu0 0.0
    %v4782 = vand.u32 %v75, 4294901760
    %v4783 = vsub.f32 %v75, %v4782
    %4784 = vmatpush1.msra.mxu0 %v4783
    %4785 = vmatprep.subr.mxu0 0.0
    %v4786 = vand.u32 %v76, 4294901760
    %v4787 = vsub.f32 %v76, %v4786
    %4788 = vmatpush1.msra.mxu0 %v4787
    %4789 = vmatprep.subr.mxu0 0.0
    %v4790 = vand.u32 %v77, 4294901760
    %v4791 = vsub.f32 %v77, %v4790
    %4792 = vmatpush1.msra.mxu0 %v4791
    %4793 = vmatprep.subr.mxu0 0.0
    %v4794 = vand.u32 %v78, 4294901760
    %v4795 = vsub.f32 %v78, %v4794
    %4796 = vmatpush1.msra.mxu0 %v4795
    %4797 = vmatprep.subr.mxu0 0.0
    %v4798 = vand.u32 %v79, 4294901760
    %v4799 = vsub.f32 %v79, %v4798
    %4800 = vmatpush1.msra.mxu0 %v4799
    %4801 = vmatprep.subr.mxu0 0.0
    %v4802 = vand.u32 %v80, 4294901760
    %v4803 = vsub.f32 %v80, %v4802
    %4804 = vmatpush1.msra.mxu0 %v4803
    %4805 = vmatprep.subr.mxu0 0.0
    %v4806 = vand.u32 %v81, 4294901760
    %v4807 = vsub.f32 %v81, %v4806
    %4808 = vmatpush1.msra.mxu0 %v4807
    %4809 = vmatprep.subr.mxu0 0.0
    %v4810 = vand.u32 %v82, 4294901760
    %v4811 = vsub.f32 %v82, %v4810
    %4812 = vmatpush1.msra.mxu0 %v4811
    %4813 = vmatprep.subr.mxu0 0.0
    %v4814 = vand.u32 %v83, 4294901760
    %v4815 = vsub.f32 %v83, %v4814
    %4816 = vmatpush1.msra.mxu0 %v4815
    %4817 = vmatprep.subr.mxu0 0.0
    %v4818 = vand.u32 %v84, 4294901760
    %v4819 = vsub.f32 %v84, %v4818
    %4820 = vmatpush1.msra.mxu0 %v4819
    %4821 = vmatprep.subr.mxu0 0.0
    %v4822 = vand.u32 %v85, 4294901760
    %v4823 = vsub.f32 %v85, %v4822
    %4824 = vmatpush1.msra.mxu0 %v4823
    %4825 = vmatprep.subr.mxu0 0.0
    %v4826 = vand.u32 %v86, 4294901760
    %v4827 = vsub.f32 %v86, %v4826
    %4828 = vmatpush1.msra.mxu0 %v4827
    %4829 = vmatprep.subr.mxu0 0.0
    %v4830 = vand.u32 %v87, 4294901760
    %v4831 = vsub.f32 %v87, %v4830
    %4832 = vmatpush1.msra.mxu0 %v4831
    %4833 = vmatprep.subr.mxu0 0.0
    %v4834 = vand.u32 %v88, 4294901760
    %v4835 = vsub.f32 %v88, %v4834
    %4836 = vmatpush1.msra.mxu0 %v4835
    %4837 = vmatprep.subr.mxu0 0.0
    %v4838 = vand.u32 %v89, 4294901760
    %v4839 = vsub.f32 %v89, %v4838
    %4840 = vmatpush1.msra.mxu0 %v4839
    %4841 = vmatprep.subr.mxu0 0.0
    %v4842 = vand.u32 %v90, 4294901760
    %v4843 = vsub.f32 %v90, %v4842
    %4844 = vmatpush1.msra.mxu0 %v4843
    %4845 = vmatprep.subr.mxu0 0.0
    %v4846 = vand.u32 %v91, 4294901760
    %v4847 = vsub.f32 %v91, %v4846
    %4848 = vmatpush1.msra.mxu0 %v4847
    %4849 = vmatprep.subr.mxu0 0.0
    %v4850 = vand.u32 %v92, 4294901760
    %v4851 = vsub.f32 %v92, %v4850
    %4852 = vmatpush1.msra.mxu0 %v4851
    %4853 = vmatprep.subr.mxu0 0.0
    %v4854 = vand.u32 %v93, 4294901760
    %v4855 = vsub.f32 %v93, %v4854
    %4856 = vmatpush1.msra.mxu0 %v4855
    %4857 = vmatprep.subr.mxu0 0.0
    %v4858 = vand.u32 %v94, 4294901760
    %v4859 = vsub.f32 %v94, %v4858
    %4860 = vmatpush1.msra.mxu0 %v4859
    %4861 = vmatprep.subr.mxu0 0.0
    %v4862 = vand.u32 %v95, 4294901760
    %v4863 = vsub.f32 %v95, %v4862
    %4864 = vmatpush1.msra.mxu0 %v4863
    %4865 = vmatprep.subr.mxu0 0.0
    %v4866 = vand.u32 %v96, 4294901760
    %v4867 = vsub.f32 %v96, %v4866
    %4868 = vmatpush1.msra.mxu0 %v4867
    %4869 = vmatprep.subr.mxu0 0.0
    %v4870 = vand.u32 %v97, 4294901760
    %v4871 = vsub.f32 %v97, %v4870
    %4872 = vmatpush1.msra.mxu0 %v4871
    %4873 = vmatprep.subr.mxu0 0.0
    %v4874 = vand.u32 %v98, 4294901760
    %v4875 = vsub.f32 %v98, %v4874
    %4876 = vmatpush1.msra.mxu0 %v4875
    %4877 = vmatprep.subr.mxu0 0.0
    %v4878 = vand.u32 %v99, 4294901760
    %v4879 = vsub.f32 %v99, %v4878
    %4880 = vmatpush1.msra.mxu0 %v4879
    %4881 = vmatprep.subr.mxu0 0.0
    %v4882 = vand.u32 %v100, 4294901760
    %v4883 = vsub.f32 %v100, %v4882
    %4884 = vmatpush1.msra.mxu0 %v4883
    %4885 = vmatprep.subr.mxu0 0.0
    %v4886 = vand.u32 %v101, 4294901760
    %v4887 = vsub.f32 %v101, %v4886
    %4888 = vmatpush1.msra.mxu0 %v4887
    %4889 = vmatprep.subr.mxu0 0.0
    %v4890 = vand.u32 %v102, 4294901760
    %v4891 = vsub.f32 %v102, %v4890
    %4892 = vmatpush1.msra.mxu0 %v4891
    %4893 = vmatprep.subr.mxu0 0.0
    %v4894 = vand.u32 %v103, 4294901760
    %v4895 = vsub.f32 %v103, %v4894
    %4896 = vmatpush1.msra.mxu0 %v4895
    %4897 = vmatprep.subr.mxu0 0.0
    %v4898 = vand.u32 %v104, 4294901760
    %v4899 = vsub.f32 %v104, %v4898
    %4900 = vmatpush1.msra.mxu0 %v4899
    %4901 = vmatprep.subr.mxu0 0.0
    %v4902 = vand.u32 %v105, 4294901760
    %v4903 = vsub.f32 %v105, %v4902
    %4904 = vmatpush1.msra.mxu0 %v4903
    %4905 = vmatprep.subr.mxu0 0.0
    %v4906 = vand.u32 %v106, 4294901760
    %v4907 = vsub.f32 %v106, %v4906
    %4908 = vmatpush1.msra.mxu0 %v4907
    %v4909 = vand.u32 %v3574, 4294901760
    %v4910 = vsub.f32 %v3574, %v4909
    %4911 = vmatprep.mubr.f32.mxu0 %v4910
    %v4912 = vand.u32 %v3573, 4294901760
    %v4913 = vsub.f32 %v3573, %v4912
    %4914 = vmatmul.mubr.f32.gmra.mrb[0].mxu0 %v4913
    %v4915 = vpop.f32.mrb[0].mxu0
    %v4916 = vadd.f32 %v4778, %v4915
    %v4917 = vpop.f32.mrb[0].mxu0
    %4918 = vdwg.mxu0
    %4919 = vmatprep.subr.mxu0 0.0
    %v4920 = vand.u32 %v75, 4294901760
    %4921 = vmatpush1.msra.mxu0 %v4920
    %4922 = vmatprep.subr.mxu0 0.0
    %v4923 = vand.u32 %v76, 4294901760
    %4924 = vmatpush1.msra.mxu0 %v4923
    %4925 = vmatprep.subr.mxu0 0.0
    %v4926 = vand.u32 %v77, 4294901760
    %4927 = vmatpush1.msra.mxu0 %v4926
    %4928 = vmatprep.subr.mxu0 0.0
    %v4929 = vand.u32 %v78, 4294901760
    %4930 = vmatpush1.msra.mxu0 %v4929
    %4931 = vmatprep.subr.mxu0 0.0
    %v4932 = vand.u32 %v79, 4294901760
    %4933 = vmatpush1.msra.mxu0 %v4932
    %4934 = vmatprep.subr.mxu0 0.0
    %v4935 = vand.u32 %v80, 4294901760
    %4936 = vmatpush1.msra.mxu0 %v4935
    %4937 = vmatprep.subr.mxu0 0.0
    %v4938 = vand.u32 %v81, 4294901760
    %4939 = vmatpush1.msra.mxu0 %v4938
    %4940 = vmatprep.subr.mxu0 0.0
    %v4941 = vand.u32 %v82, 4294901760
    %4942 = vmatpush1.msra.mxu0 %v4941
    %4943 = vmatprep.subr.mxu0 0.0
    %v4944 = vand.u32 %v83, 4294901760
    %4945 = vmatpush1.msra.mxu0 %v4944
    %4946 = vmatprep.subr.mxu0 0.0
    %v4947 = vand.u32 %v84, 4294901760
    %4948 = vmatpush1.msra.mxu0 %v4947
    %4949 = vmatprep.subr.mxu0 0.0
    %v4950 = vand.u32 %v85, 4294901760
    %4951 = vmatpush1.msra.mxu0 %v4950
    %4952 = vmatprep.subr.mxu0 0.0
    %v4953 = vand.u32 %v86, 4294901760
    %4954 = vmatpush1.msra.mxu0 %v4953
    %4955 = vmatprep.subr.mxu0 0.0
    %v4956 = vand.u32 %v87, 4294901760
    %4957 = vmatpush1.msra.mxu0 %v4956
    %4958 = vmatprep.subr.mxu0 0.0
    %v4959 = vand.u32 %v88, 4294901760
    %4960 = vmatpush1.msra.mxu0 %v4959
    %4961 = vmatprep.subr.mxu0 0.0
    %v4962 = vand.u32 %v89, 4294901760
    %4963 = vmatpush1.msra.mxu0 %v4962
    %4964 = vmatprep.subr.mxu0 0.0
    %v4965 = vand.u32 %v90, 4294901760
    %4966 = vmatpush1.msra.mxu0 %v4965
    %4967 = vmatprep.subr.mxu0 0.0
    %v4968 = vand.u32 %v91, 4294901760
    %4969 = vmatpush1.msra.mxu0 %v4968
    %4970 = vmatprep.subr.mxu0 0.0
    %v4971 = vand.u32 %v92, 4294901760
    %4972 = vmatpush1.msra.mxu0 %v4971
    %4973 = vmatprep.subr.mxu0 0.0
    %v4974 = vand.u32 %v93, 4294901760
    %4975 = vmatpush1.msra.mxu0 %v4974
    %4976 = vmatprep.subr.mxu0 0.0
    %v4977 = vand.u32 %v94, 4294901760
    %4978 = vmatpush1.msra.mxu0 %v4977
    %4979 = vmatprep.subr.mxu0 0.0
    %v4980 = vand.u32 %v95, 4294901760
    %4981 = vmatpush1.msra.mxu0 %v4980
    %4982 = vmatprep.subr.mxu0 0.0
    %v4983 = vand.u32 %v96, 4294901760
    %4984 = vmatpush1.msra.mxu0 %v4983
    %4985 = vmatprep.subr.mxu0 0.0
    %v4986 = vand.u32 %v97, 4294901760
    %4987 = vmatpush1.msra.mxu0 %v4986
    %4988 = vmatprep.subr.mxu0 0.0
    %v4989 = vand.u32 %v98, 4294901760
    %4990 = vmatpush1.msra.mxu0 %v4989
    %4991 = vmatprep.subr.mxu0 0.0
    %v4992 = vand.u32 %v99, 4294901760
    %4993 = vmatpush1.msra.mxu0 %v4992
    %4994 = vmatprep.subr.mxu0 0.0
    %v4995 = vand.u32 %v100, 4294901760
    %4996 = vmatpush1.msra.mxu0 %v4995
    %4997 = vmatprep.subr.mxu0 0.0
    %v4998 = vand.u32 %v101, 4294901760
    %4999 = vmatpush1.msra.mxu0 %v4998
    %5000 = vmatprep.subr.mxu0 0.0
    %v5001 = vand.u32 %v102, 4294901760
    %5002 = vmatpush1.msra.mxu0 %v5001
    %5003 = vmatprep.subr.mxu0 0.0
    %v5004 = vand.u32 %v103, 4294901760
    %5005 = vmatpush1.msra.mxu0 %v5004
    %5006 = vmatprep.subr.mxu0 0.0
    %v5007 = vand.u32 %v104, 4294901760
    %5008 = vmatpush1.msra.mxu0 %v5007
    %5009 = vmatprep.subr.mxu0 0.0
    %v5010 = vand.u32 %v105, 4294901760
    %5011 = vmatpush1.msra.mxu0 %v5010
    %5012 = vmatprep.subr.mxu0 0.0
    %v5013 = vand.u32 %v106, 4294901760
    %5014 = vmatpush1.msra.mxu0 %v5013
    %v5015 = vand.u32 %v3574, 4294901760
    %v5016 = vsub.f32 %v3574, %v5015
    %v5017 = vand.u32 %v5016, 4294901760
    %5018 = vmatprep.mubr.f32.mxu0 %v5017
    %v5019 = vand.u32 %v3573, 4294901760
    %v5020 = vsub.f32 %v3573, %v5019
    %v5021 = vand.u32 %v5020, 4294901760
    %5022 = vmatmul.mubr.f32.gmra.mrb[0].mxu0 %v5021
    %v5023 = vpop.f32.mrb[0].mxu0
    %v5024 = vadd.f32 %v4916, %v5023
    %v5025 = vpop.f32.mrb[0].mxu0
    %5026 = vdwg.mxu0
    %5027 = vmatprep.subr.mxu0 0.0
    %v5028 = vand.u32 %v75, 4294901760
    %v5029 = vsub.f32 %v75, %v5028
    %v5030 = vand.u32 %v5029, 4294901760
    %5031 = vmatpush1.msra.mxu0 %v5030
    %5032 = vmatprep.subr.mxu0 0.0
    %v5033 = vand.u32 %v76, 4294901760
    %v5034 = vsub.f32 %v76, %v5033
    %v5035 = vand.u32 %v5034, 4294901760
    %5036 = vmatpush1.msra.mxu0 %v5035
    %5037 = vmatprep.subr.mxu0 0.0
    %v5038 = vand.u32 %v77, 4294901760
    %v5039 = vsub.f32 %v77, %v5038
    %v5040 = vand.u32 %v5039, 4294901760
    %5041 = vmatpush1.msra.mxu0 %v5040
    %5042 = vmatprep.subr.mxu0 0.0
    %v5043 = vand.u32 %v78, 4294901760
    %v5044 = vsub.f32 %v78, %v5043
    %v5045 = vand.u32 %v5044, 4294901760
    %5046 = vmatpush1.msra.mxu0 %v5045
    %5047 = vmatprep.subr.mxu0 0.0
    %v5048 = vand.u32 %v79, 4294901760
    %v5049 = vsub.f32 %v79, %v5048
    %v5050 = vand.u32 %v5049, 4294901760
    %5051 = vmatpush1.msra.mxu0 %v5050
    %5052 = vmatprep.subr.mxu0 0.0
    %v5053 = vand.u32 %v80, 4294901760
    %v5054 = vsub.f32 %v80, %v5053
    %v5055 = vand.u32 %v5054, 4294901760
    %5056 = vmatpush1.msra.mxu0 %v5055
    %5057 = vmatprep.subr.mxu0 0.0
    %v5058 = vand.u32 %v81, 4294901760
    %v5059 = vsub.f32 %v81, %v5058
    %v5060 = vand.u32 %v5059, 4294901760
    %5061 = vmatpush1.msra.mxu0 %v5060
    %5062 = vmatprep.subr.mxu0 0.0
    %v5063 = vand.u32 %v82, 4294901760
    %v5064 = vsub.f32 %v82, %v5063
    %v5065 = vand.u32 %v5064, 4294901760
    %5066 = vmatpush1.msra.mxu0 %v5065
    %5067 = vmatprep.subr.mxu0 0.0
    %v5068 = vand.u32 %v83, 4294901760
    %v5069 = vsub.f32 %v83, %v5068
    %v5070 = vand.u32 %v5069, 4294901760
    %5071 = vmatpush1.msra.mxu0 %v5070
    %5072 = vmatprep.subr.mxu0 0.0
    %v5073 = vand.u32 %v84, 4294901760
    %v5074 = vsub.f32 %v84, %v5073
    %v5075 = vand.u32 %v5074, 4294901760
    %5076 = vmatpush1.msra.mxu0 %v5075
    %5077 = vmatprep.subr.mxu0 0.0
    %v5078 = vand.u32 %v85, 4294901760
    %v5079 = vsub.f32 %v85, %v5078
    %v5080 = vand.u32 %v5079, 4294901760
    %5081 = vmatpush1.msra.mxu0 %v5080
    %5082 = vmatprep.subr.mxu0 0.0
    %v5083 = vand.u32 %v86, 4294901760
    %v5084 = vsub.f32 %v86, %v5083
    %v5085 = vand.u32 %v5084, 4294901760
    %5086 = vmatpush1.msra.mxu0 %v5085
    %5087 = vmatprep.subr.mxu0 0.0
    %v5088 = vand.u32 %v87, 4294901760
    %v5089 = vsub.f32 %v87, %v5088
    %v5090 = vand.u32 %v5089, 4294901760
    %5091 = vmatpush1.msra.mxu0 %v5090
    %5092 = vmatprep.subr.mxu0 0.0
    %v5093 = vand.u32 %v88, 4294901760
    %v5094 = vsub.f32 %v88, %v5093
    %v5095 = vand.u32 %v5094, 4294901760
    %5096 = vmatpush1.msra.mxu0 %v5095
    %5097 = vmatprep.subr.mxu0 0.0
    %v5098 = vand.u32 %v89, 4294901760
    %v5099 = vsub.f32 %v89, %v5098
    %v5100 = vand.u32 %v5099, 4294901760
    %5101 = vmatpush1.msra.mxu0 %v5100
    %5102 = vmatprep.subr.mxu0 0.0
    %v5103 = vand.u32 %v90, 4294901760
    %v5104 = vsub.f32 %v90, %v5103
    %v5105 = vand.u32 %v5104, 4294901760
    %5106 = vmatpush1.msra.mxu0 %v5105
    %5107 = vmatprep.subr.mxu0 0.0
    %v5108 = vand.u32 %v91, 4294901760
    %v5109 = vsub.f32 %v91, %v5108
    %v5110 = vand.u32 %v5109, 4294901760
    %5111 = vmatpush1.msra.mxu0 %v5110
    %5112 = vmatprep.subr.mxu0 0.0
    %v5113 = vand.u32 %v92, 4294901760
    %v5114 = vsub.f32 %v92, %v5113
    %v5115 = vand.u32 %v5114, 4294901760
    %5116 = vmatpush1.msra.mxu0 %v5115
    %5117 = vmatprep.subr.mxu0 0.0
    %v5118 = vand.u32 %v93, 4294901760
    %v5119 = vsub.f32 %v93, %v5118
    %v5120 = vand.u32 %v5119, 4294901760
    %5121 = vmatpush1.msra.mxu0 %v5120
    %5122 = vmatprep.subr.mxu0 0.0
    %v5123 = vand.u32 %v94, 4294901760
    %v5124 = vsub.f32 %v94, %v5123
    %v5125 = vand.u32 %v5124, 4294901760
    %5126 = vmatpush1.msra.mxu0 %v5125
    %5127 = vmatprep.subr.mxu0 0.0
    %v5128 = vand.u32 %v95, 4294901760
    %v5129 = vsub.f32 %v95, %v5128
    %v5130 = vand.u32 %v5129, 4294901760
    %5131 = vmatpush1.msra.mxu0 %v5130
    %5132 = vmatprep.subr.mxu0 0.0
    %v5133 = vand.u32 %v96, 4294901760
    %v5134 = vsub.f32 %v96, %v5133
    %v5135 = vand.u32 %v5134, 4294901760
    %5136 = vmatpush1.msra.mxu0 %v5135
    %5137 = vmatprep.subr.mxu0 0.0
    %v5138 = vand.u32 %v97, 4294901760
    %v5139 = vsub.f32 %v97, %v5138
    %v5140 = vand.u32 %v5139, 4294901760
    %5141 = vmatpush1.msra.mxu0 %v5140
    %5142 = vmatprep.subr.mxu0 0.0
    %v5143 = vand.u32 %v98, 4294901760
    %v5144 = vsub.f32 %v98, %v5143
    %v5145 = vand.u32 %v5144, 4294901760
    %5146 = vmatpush1.msra.mxu0 %v5145
    %5147 = vmatprep.subr.mxu0 0.0
    %v5148 = vand.u32 %v99, 4294901760
    %v5149 = vsub.f32 %v99, %v5148
    %v5150 = vand.u32 %v5149, 4294901760
    %5151 = vmatpush1.msra.mxu0 %v5150
    %5152 = vmatprep.subr.mxu0 0.0
    %v5153 = vand.u32 %v100, 4294901760
    %v5154 = vsub.f32 %v100, %v5153
    %v5155 = vand.u32 %v5154, 4294901760
    %5156 = vmatpush1.msra.mxu0 %v5155
    %5157 = vmatprep.subr.mxu0 0.0
    %v5158 = vand.u32 %v101, 4294901760
    %v5159 = vsub.f32 %v101, %v5158
    %v5160 = vand.u32 %v5159, 4294901760
    %5161 = vmatpush1.msra.mxu0 %v5160
    %5162 = vmatprep.subr.mxu0 0.0
    %v5163 = vand.u32 %v102, 4294901760
    %v5164 = vsub.f32 %v102, %v5163
    %v5165 = vand.u32 %v5164, 4294901760
    %5166 = vmatpush1.msra.mxu0 %v5165
    %5167 = vmatprep.subr.mxu0 0.0
    %v5168 = vand.u32 %v103, 4294901760
    %v5169 = vsub.f32 %v103, %v5168
    %v5170 = vand.u32 %v5169, 4294901760
    %5171 = vmatpush1.msra.mxu0 %v5170
    %5172 = vmatprep.subr.mxu0 0.0
    %v5173 = vand.u32 %v104, 4294901760
    %v5174 = vsub.f32 %v104, %v5173
    %v5175 = vand.u32 %v5174, 4294901760
    %5176 = vmatpush1.msra.mxu0 %v5175
    %5177 = vmatprep.subr.mxu0 0.0
    %v5178 = vand.u32 %v105, 4294901760
    %v5179 = vsub.f32 %v105, %v5178
    %v5180 = vand.u32 %v5179, 4294901760
    %5181 = vmatpush1.msra.mxu0 %v5180
    %5182 = vmatprep.subr.mxu0 0.0
    %v5183 = vand.u32 %v106, 4294901760
    %v5184 = vsub.f32 %v106, %v5183
    %v5185 = vand.u32 %v5184, 4294901760
    %5186 = vmatpush1.msra.mxu0 %v5185
    %v5187 = vand.u32 %v3574, 4294901760
    %5188 = vmatprep.mubr.f32.mxu0 %v5187
    %v5189 = vand.u32 %v3573, 4294901760
    %5190 = vmatmul.mubr.f32.gmra.mrb[0].mxu0 %v5189
    %v5191 = vpop.f32.mrb[0].mxu0
    %v5192 = vadd.f32 %v5024, %v5191
    %v5193 = vpop.f32.mrb[0].mxu0
    %5194 = vdwg.mxu0
    %5195 = vmatprep.subr.mxu0 0.0
    %v5196 = vand.u32 %v75, 4294901760
    %5197 = vmatpush1.msra.mxu0 %v5196
    %5198 = vmatprep.subr.mxu0 0.0
    %v5199 = vand.u32 %v76, 4294901760
    %5200 = vmatpush1.msra.mxu0 %v5199
    %5201 = vmatprep.subr.mxu0 0.0
    %v5202 = vand.u32 %v77, 4294901760
    %5203 = vmatpush1.msra.mxu0 %v5202
    %5204 = vmatprep.subr.mxu0 0.0
    %v5205 = vand.u32 %v78, 4294901760
    %5206 = vmatpush1.msra.mxu0 %v5205
    %5207 = vmatprep.subr.mxu0 0.0
    %v5208 = vand.u32 %v79, 4294901760
    %5209 = vmatpush1.msra.mxu0 %v5208
    %5210 = vmatprep.subr.mxu0 0.0
    %v5211 = vand.u32 %v80, 4294901760
    %5212 = vmatpush1.msra.mxu0 %v5211
    %5213 = vmatprep.subr.mxu0 0.0
    %v5214 = vand.u32 %v81, 4294901760
    %5215 = vmatpush1.msra.mxu0 %v5214
    %5216 = vmatprep.subr.mxu0 0.0
    %v5217 = vand.u32 %v82, 4294901760
    %5218 = vmatpush1.msra.mxu0 %v5217
    %5219 = vmatprep.subr.mxu0 0.0
    %v5220 = vand.u32 %v83, 4294901760
    %5221 = vmatpush1.msra.mxu0 %v5220
    %5222 = vmatprep.subr.mxu0 0.0
    %v5223 = vand.u32 %v84, 4294901760
    %5224 = vmatpush1.msra.mxu0 %v5223
    %5225 = vmatprep.subr.mxu0 0.0
    %v5226 = vand.u32 %v85, 4294901760
    %5227 = vmatpush1.msra.mxu0 %v5226
    %5228 = vmatprep.subr.mxu0 0.0
    %v5229 = vand.u32 %v86, 4294901760
    %5230 = vmatpush1.msra.mxu0 %v5229
    %5231 = vmatprep.subr.mxu0 0.0
    %v5232 = vand.u32 %v87, 4294901760
    %5233 = vmatpush1.msra.mxu0 %v5232
    %5234 = vmatprep.subr.mxu0 0.0
    %v5235 = vand.u32 %v88, 4294901760
    %5236 = vmatpush1.msra.mxu0 %v5235
    %5237 = vmatprep.subr.mxu0 0.0
    %v5238 = vand.u32 %v89, 4294901760
    %5239 = vmatpush1.msra.mxu0 %v5238
    %5240 = vmatprep.subr.mxu0 0.0
    %v5241 = vand.u32 %v90, 4294901760
    %5242 = vmatpush1.msra.mxu0 %v5241
    %5243 = vmatprep.subr.mxu0 0.0
    %v5244 = vand.u32 %v91, 4294901760
    %5245 = vmatpush1.msra.mxu0 %v5244
    %5246 = vmatprep.subr.mxu0 0.0
    %v5247 = vand.u32 %v92, 4294901760
    %5248 = vmatpush1.msra.mxu0 %v5247
    %5249 = vmatprep.subr.mxu0 0.0
    %v5250 = vand.u32 %v93, 4294901760
    %5251 = vmatpush1.msra.mxu0 %v5250
    %5252 = vmatprep.subr.mxu0 0.0
    %v5253 = vand.u32 %v94, 4294901760
    %5254 = vmatpush1.msra.mxu0 %v5253
    %5255 = vmatprep.subr.mxu0 0.0
    %v5256 = vand.u32 %v95, 4294901760
    %5257 = vmatpush1.msra.mxu0 %v5256
    %5258 = vmatprep.subr.mxu0 0.0
    %v5259 = vand.u32 %v96, 4294901760
    %5260 = vmatpush1.msra.mxu0 %v5259
    %5261 = vmatprep.subr.mxu0 0.0
    %v5262 = vand.u32 %v97, 4294901760
    %5263 = vmatpush1.msra.mxu0 %v5262
    %5264 = vmatprep.subr.mxu0 0.0
    %v5265 = vand.u32 %v98, 4294901760
    %5266 = vmatpush1.msra.mxu0 %v5265
    %5267 = vmatprep.subr.mxu0 0.0
    %v5268 = vand.u32 %v99, 4294901760
    %5269 = vmatpush1.msra.mxu0 %v5268
    %5270 = vmatprep.subr.mxu0 0.0
    %v5271 = vand.u32 %v100, 4294901760
    %5272 = vmatpush1.msra.mxu0 %v5271
    %5273 = vmatprep.subr.mxu0 0.0
    %v5274 = vand.u32 %v101, 4294901760
    %5275 = vmatpush1.msra.mxu0 %v5274
    %5276 = vmatprep.subr.mxu0 0.0
    %v5277 = vand.u32 %v102, 4294901760
    %5278 = vmatpush1.msra.mxu0 %v5277
    %5279 = vmatprep.subr.mxu0 0.0
    %v5280 = vand.u32 %v103, 4294901760
    %5281 = vmatpush1.msra.mxu0 %v5280
    %5282 = vmatprep.subr.mxu0 0.0
    %v5283 = vand.u32 %v104, 4294901760
    %5284 = vmatpush1.msra.mxu0 %v5283
    %5285 = vmatprep.subr.mxu0 0.0
    %v5286 = vand.u32 %v105, 4294901760
    %5287 = vmatpush1.msra.mxu0 %v5286
    %5288 = vmatprep.subr.mxu0 0.0
    %v5289 = vand.u32 %v106, 4294901760
    %5290 = vmatpush1.msra.mxu0 %v5289
    %v5291 = vand.u32 %v3574, 4294901760
    %5292 = vmatprep.mubr.f32.mxu0 %v5291
    %v5293 = vand.u32 %v3573, 4294901760
    %5294 = vmatmul.mubr.f32.gmra.mrb[0].mxu0 %v5293
    %v5295 = vpop.f32.mrb[0].mxu0
    %v5296 = vadd.f32 %v5192, %v5295
    %v5297 = vpop.f32.mrb[0].mxu0
    %5298 = vdwg.mxu0
    %v5299 = vmax.f32 %v3568, 1e-24
    %v5300 = vrsqrt.pop %v5299
    %v5301 = vmul.f32 %v1840, %v5300
    %v5302 = vmax.f32 %v5296, 1e-24
    %v5303 = vrsqrt.pop %v5302
    %v5304 = vmul.f32 %v5301, %v5303
    %v5305 = vmul.f32 %v5304, 10.0
    %vm5306 = vcmask 130048
    %v5307 = vsel %vm5306, %v5305, -inf
    %5308 = vmax.xlane.f32.xlu0 %v5307
    %v5309 = vpop.xlane.xlu0 %5308
    %v5310 = vmax.f32 %v5309, %v42
    %v5311 = vsub.f32 %v42, %v5310
    %v5312 = vmul.f32 %v5311, 1.442695
    %v5313 = vpow.pop %v5312
    %v5314 = vsub.f32 %v5305, %v5310
    %v5315 = vmul.f32 %v5314, 1.442695
    %v5316 = vpow.pop %v5315
    %v5317 = vsel %vm5306, %v5316, 0.0
    %5318 = vadd.xlane.f32.xlu0 %v5317
    %v5319 = vpop.xlane.xlu0 %5318
    %v5320 = vadd.f32 %v5313, %v5319
    %v5321 = vlog2.pop %v5320
    %v5322 = vmul.f32 %v5321, 0.6931472
    %v5323 = vadd.f32 %v5310, %v5322
    %v5324 = vsub.f32 %v5323, %v42
    %s5325 = smul.u32 0, 8
    %v5326 = vlaneseq
    %v5327 = vshrl.u32 %v5326, 7
    %v5328 = vstv %s5325
    %v5329 = vadd.s32 %v5328, %v5327
    %vm5330 = vcmp.lt.s32.totalorder %v5329, 8
    %v5331 = vsel %vm5330, %v5324, 0.0
    %vm5332 = vcmask 7168
    %v5333 = vsel %vm5332, %v5331, 0.0
    %5334 = vadd.xlane.f32.xlu0 %v5333
    %v5335 = vpop.xlane.xlu0 %5334
    %v5336 = vrot.slane %v5335, 4
    %v5337 = vadd.f32 %v5335, %v5336
    %v5338 = vrot.slane %v5337, 2
    %v5339 = vadd.f32 %v5337, %v5338
    %v5340 = vrot.slane %v5339, 1
    %v5341 = vadd.f32 %v5339, %v5340
    %s5342 = vtos %v5341
    %v5343 = vstv %s5342
    %5344 = vst [vmem:[#allocation2] sm:$0xff] %v5343
    // Predicated region
    $region22: #{tpu_custom_call.1} parent=1 // pred_check
      _
    $region23: #{tpu_custom_call.1} parent=1 // pred_check_branch
      %5346 = sbr.rel (0) target = $region25
    $region24: #{tpu_custom_call.1} parent=1 // pred_region
      %s5348 = ssub.s32 128, 128
      %5349 = vsyncadd [#allocation3], %s5348
      %s5351 = sshll.u32 [#allocation2], 4
      %s5352 = int_to_ptr.vmem [resolvable:$true] %s5351
      %5354 = dma.vmem_to_hbm [thread:$0]  %s5352, 128, %s5, [#allocation3]
    $region25: #{tpu_custom_call.1} parent=1 // pred_fallthru
      _
    // Predicated region
    $region26: #{tpu_custom_call.1} parent=1 // pred_check
      _
    $region27: #{tpu_custom_call.1} parent=1 // pred_check_branch
      %5356 = sbr.rel (0) target = $region29
    $region28: #{tpu_custom_call.1} parent=1 // pred_region
      %5357 = dma.done [#allocation3], 128
    $region29: #{tpu_custom_call.1} parent=1 // pred_fallthru
      _
    %5358 = vsyncpa [#allocation3], 1

</llo_original>
